<compile_context>
chip_gen: v7x
topology: tpu7x:2x2x1
jax: 0.10.0
libtpu: 0.0.40
codegen_flags: <defaults>
</compile_context>

<pallas_src>
import jax
import jax.numpy as jnp
from jax import lax
from jax.experimental import pallas as pl
from jax.experimental.pallas import tpu as pltpu

EPS = 1e-5  # InstanceNorm2d default eps


# ---------------------------------------------------------------------------
# Kernel
# ---------------------------------------------------------------------------
def _make_resblock_kernel(H, W, C, PW):
    """Build the fused ResBlock-chain kernel for fixed H, W, C.

    PW = roundup(W + 1, 8): padded scratch width.  The image sits at columns
    [0:W]; columns [W:PW] stay permanently zero (right zero pad + sublane
    alignment fill).  The left zero pad is virtual (handled in recombination).
    """

    def conv3x3_in(pad_ref, w_ref, b):
        """3x3 'same' conv (no bias) + InstanceNorm(affine=False) -> f32.

        pad_ref: (H+2, PW, C) scratch; rows [1:H+1] x cols [0:W] hold data,
                 row 0, row H+1 and cols [W:PW] are zero.
        w_ref:   (nb*3, C, 3C) resident weight stack; block b uses rows
                 [3b:3b+3] (one per kh), each with the 3 kw taps concatenated
                 along the output axis.
        """
        zero_col = jnp.zeros((H, 1, C), jnp.float32)   # virtual left zero pad
        y = None
        for kh in range(3):
            wk = w_ref[3 * b + kh]                                 # (C, 3C)
            # Contiguous slab of H padded rows -> (H*PW, C); no strided slice.
            slab = pad_ref[kh:kh + H, :, :].reshape(H * PW, C)
            res = jnp.dot(slab, wk, preferred_element_type=jnp.float32)
            res = res.reshape(H, PW, 3 * C)
            # Fold the kw shifts immediately: only (H, W, C) stays live.
            if W > 1:
                left = jnp.concatenate(
                    [zero_col, res[:, 0:W - 1, 0:C]], axis=1)      # kw = 0
            else:
                left = zero_col
            contrib = (left
                       + res[:, 0:W, C:2 * C]                      # kw = 1
                       + res[:, 1:W + 1, 2 * C:3 * C])             # kw = 2
            y = contrib if y is None else y + contrib              # (H, W, C)

        # InstanceNorm2d (affine=False): per-channel stats over H*W,
        # biased variance, two-pass (numerically robust) form in f32.
        mean = jnp.mean(y, axis=(0, 1), keepdims=True)             # (1, 1, C)
        cent = y - mean
        var = jnp.mean(cent * cent, axis=(0, 1), keepdims=True)
        return cent * lax.rsqrt(var + EPS)                         # (H, W, C)

    def kernel(x_ref, w1_ref, w2_ref, o_ref, pad_ref):
        # x_ref : (1, H, W, C)     input sample (consumed only at b == 0)
        # w*_ref: (nb*3, C, 3C)    all blocks' conv weights, VMEM resident
        # o_ref : (1, H, W, C)     resident activation / residual carrier
        # pad_ref: (H+2, PW, C)    zero-bordered conv scratch (compute dtype)
        b = pl.program_id(1)

        @pl.when(b == 0)
        def _init():
            # Zero only the never-overwritten border of the scratch (the
            # interior is fully overwritten before every use).  Re-done at
            # every b == 0 so it is correct no matter how the "parallel"
            # batch axis is split across TensorCores (cheap: border only).
            zrow = jnp.zeros((1, PW, C), pad_ref.dtype)
            pad_ref[0:1, :, :] = zrow
            pad_ref[H + 1:H + 2, :, :] = zrow
            pad_ref[1:H + 1, W:PW, :] = jnp.zeros((H, PW - W, C),
                                                  pad_ref.dtype)
            # Seed the resident activation from the HBM input.
            o_ref[0] = x_ref[0]

        x = o_ref[0].astype(jnp.float32)                           # (H, W, C)

        # ---- conv1 -> InstanceNorm -> ReLU ----
        # (conv bias omitted: cancelled exactly by the IN mean subtraction)
        pad_ref[1:H + 1, 0:W, :] = x.astype(pad_ref.dtype)   # aligned store
        h = jnp.maximum(conv3x3_in(pad_ref, w1_ref, b), 0.0)

        # ---- conv2 -> InstanceNorm ----
        pad_ref[1:H + 1, 0:W, :] = h.astype(pad_ref.dtype)
        h2 = conv3x3_in(pad_ref, w2_ref, b)

        # ---- residual add; stays resident in o_ref for the next block ----
        o_ref[0] = (x + h2).astype(o_ref.dtype)

    return kernel


def _vmem_limit_bytes(nb, H, W, C, PW, act_itemsize, w_itemsize):
    """Scoped-VMEM budget derived from the actual buffer set, with margin."""
    act = H * W * C
    buf = 2 * act * act_itemsize                       # x input (2 buffers)
    buf += 2 * act * act_itemsize                      # output block (2 bufs)
    buf += 2 * nb * 3 * C * 3 * C * w_itemsize         # w1+w2, single copy
    buf += (H + 2) * PW * C * w_itemsize               # padded conv scratch
    # transient values: one kh matmul result + folded acc + x/h/h2 (f32)
    buf += H * PW * 3 * C * 4 + 4 * act * 4
    est = int(buf * 1.3) + (4 << 20)                   # Mosaic internals
    try:
        cap = int(pltpu.get_tpu_info().vmem_capacity_bytes) - (8 << 20)
    except Exception:
        cap = 56 << 20                                 # safe on v5e/v6e/v7x
    return min(max(est, 16 << 20), cap)


def _resblocks_pallas(x_nhwc, wflat1, wflat2):
    """x_nhwc: (N, H, W, C); wflat*: (nb*3, C, 3C) compute dtype."""
    N, H, W, C = x_nhwc.shape
    nb = wflat1.shape[0] // 3
    PW = ((W + 1 + 7) // 8) * 8            # padded width, sublane aligned
    kernel = _make_resblock_kernel(H, W, C, PW)
    vmem = _vmem_limit_bytes(nb, H, W, C, PW,
                             jnp.dtype(x_nhwc.dtype).itemsize,
                             jnp.dtype(wflat1.dtype).itemsize)

    return pl.pallas_call(
        kernel,
        out_shape=jax.ShapeDtypeStruct((N, H, W, C), x_nhwc.dtype),
        grid_spec=pltpu.PrefetchScalarGridSpec(
            num_scalar_prefetch=0,
            grid=(N, nb),                  # block axis innermost
            in_specs=[
                # sample block: index constant over b -> fetched once per n
                pl.BlockSpec((1, H, W, C), lambda n, b: (n, 0, 0, 0)),
                # all weights VMEM-resident for the whole grid: one DMA total,
                # no per-sample re-streaming, no double-buffer copy.
                pl.BlockSpec(memory_space=pltpu.MemorySpace.VMEM),
                pl.BlockSpec(memory_space=pltpu.MemorySpace.VMEM),
            ],
            # output block index constant over b -> resident accumulator,
            # written back to HBM once per sample.
            out_specs=pl.BlockSpec((1, H, W, C), lambda n, b: (n, 0, 0, 0)),
            scratch_shapes=[pltpu.VMEM((H + 2, PW, C), wflat1.dtype)],
        ),
        compiler_params=pltpu.CompilerParams(
            dimension_semantics=("parallel", "arbitrary"),
            vmem_limit_bytes=vmem),
    )(x_nhwc, wflat1, wflat2)


# ---------------------------------------------------------------------------
# Public wrapper (PyTorch-style NCHW in / out)
# ---------------------------------------------------------------------------
def resblocks_forward(x_nchw, params, *, compute_dtype=jnp.bfloat16,
                      chain_dtype=None,
                      norm='in', activation='relu', pad_type='zero'):
    """ResBlocks forward.

    x_nchw: (N, C, H, W) float32.  For full v7x megacore use, keep N >= 2.
    params: list of (w1, b1, w2, b2); w* are HWIO (3, 3, C, C), b* (1, C).
            The biases are ignored by the kernel (exactly cancelled by the
            affine-free InstanceNorm); kept in the pytree for PyTorch parity.
    compute_dtype: dtype of the MXU matmul operands (f32 accumulation).
    chain_dtype:   dtype of the HBM/pipeline-resident activation chain
            (default: x dtype).  Use bf16 on VMEM-tight chips (v7x) to halve
            the activation buffers; the result is cast back to the x dtype.
    """
    assert (norm, activation, pad_type) == ('in', 'relu', 'zero'), (
        "kernel implements only the ResBlocks default config "
        "(norm='in', activation='relu', pad_type='zero')")
    orig_dtype = x_nchw.dtype
    x = jnp.transpose(x_nchw, (0, 2, 3, 1))                  # NCHW -> NHWC
    if chain_dtype is not None:
        x = x.astype(chain_dtype)

    C = x.shape[-1]
    nb = len(params)

    def prep(w):  # (3,3,C,C) HWIO -> (3, C, 3C): concat kw taps on out axis
        return jnp.concatenate([w[:, 0], w[:, 1], w[:, 2]], axis=-1)

    wflat1 = jnp.stack([prep(w1) for (w1, _b1, _w2, _b2) in params])
    wflat2 = jnp.stack([prep(w2) for (_w1, _b1, w2, _b2) in params])
    wflat1 = wflat1.reshape(nb * 3, C, 3 * C).astype(compute_dtype)
    wflat2 = wflat2.reshape(nb * 3, C, 3 * C).astype(compute_dtype)

    out = _resblocks_pallas(x, wflat1, wflat2)
    out = jnp.transpose(out, (0, 3, 1, 2))                   # NHWC -> NCHW
    return out.astype(orig_dtype)


def init_params(key, num_blocks, dim):
    params = []
    fan_in = 3 * 3 * dim
    wstd = (2.0 / fan_in) ** 0.5
    for _ in range(num_blocks):
        key, k1, k2, k3, k4 = jax.random.split(key, 5)
        w1 = wstd * jax.random.normal(k1, (3, 3, dim, dim), jnp.float32)
        b1 = 0.01 * jax.random.normal(k2, (1, dim), jnp.float32)
        w2 = wstd * jax.random.normal(k3, (3, 3, dim, dim), jnp.float32)
        b2 = 0.01 * jax.random.normal(k4, (1, dim), jnp.float32)
        params.append((w1, b1, w2, b2))
    return params


# ---------------------------------------------------------------------------
# Pure-JAX reference (mirrors the PyTorch semantics, biases included)
# ---------------------------------------------------------------------------
def resblocks_reference(x_nchw, params, *, compute_dtype=jnp.float32):
    """If compute_dtype=bf16, the conv inputs/weights are cast the same way
    the kernel casts them, so the comparison is apples-to-apples."""
    def conv_in(h, w, b):
        y = lax.conv_general_dilated(
            h.astype(compute_dtype), w.astype(compute_dtype),
            window_strides=(1, 1), padding=((1, 1), (1, 1)),
            dimension_numbers=('NCHW', 'HWIO', 'NCHW'),
            preferred_element_type=jnp.float32)
        y = y + b.reshape(1, -1, 1, 1)       # bias (cancelled by IN below)
        mean = y.mean(axis=(2, 3), keepdims=True)
        var = ((y - mean) ** 2).mean(axis=(2, 3), keepdims=True)
        return (y - mean) * lax.rsqrt(var + EPS)

    x = x_nchw
    for (w1, b1, w2, b2) in params:
        h = jax.nn.relu(conv_in(x, w1, b1))
        h = conv_in(h, w2, b2)
        x = x + h
    return x


if __name__ == "__main__":
    num_blocks = 2
    dim = 4          # NOTE: real GANWriting dims (e.g. 256/512) are lane-dense;
    N, H, W = 2, 16, 16  # dim=4 only exercises 4/128 lanes (test-size config).

    key = jax.random.PRNGKey(0)
    key, kx = jax.random.split(key)
    x = jax.random.normal(kx, (N, dim, H, W), jnp.float32)   # NCHW, like PyTorch
    params = init_params(key, num_blocks, dim)

    # Strict structural check: f32 compute path vs. PyTorch-semantics reference
    out32 = jax.block_until_ready(
        resblocks_forward(x, params, compute_dtype=jnp.float32))
    ref32 = resblocks_reference(x, params, compute_dtype=jnp.float32)
    assert out32.shape == ref32.shape == (N, dim, H, W)
    assert jnp.allclose(out32, ref32, atol=1e-3, rtol=1e-3), \
        float(jnp.max(jnp.abs(out32 - ref32)))

    # Fast path: bf16 MXU matmuls (default). Tolerance is loose because the
    # two pipelines quantize slightly different f32 values to bf16 at the
    # conv inputs (1-ulp rounding differences can propagate).
    out = jax.block_until_ready(resblocks_forward(x, params))
    refb = resblocks_reference(x, params, compute_dtype=jnp.bfloat16)
    assert out.shape == (N, dim, H, W)
    assert jnp.allclose(out, refb, atol=5e-2, rtol=5e-2), \
        float(jnp.max(jnp.abs(out - refb)))

    print("KERNEL_OK")
</pallas_src>

<mosaic_0001>
module attributes {stable_mosaic.version = 11 : i64} {
  func.func @kernel(%arg0: i32, %arg1: i32, %arg2: memref<1x16x16x4xf32, #tpu.memory_space<vmem>>, %arg3: memref<6x4x12xf32, #tpu.memory_space<vmem>>, %arg4: memref<6x4x12xf32, #tpu.memory_space<vmem>>, %arg5: memref<1x16x16x4xf32, #tpu.memory_space<vmem>>, %arg6: memref<18x24x4xf32, #tpu.memory_space<vmem>>) attributes {dimension_semantics = [#tpu.dimension_semantics<parallel>, #tpu.dimension_semantics<arbitrary>], iteration_bounds = array<i64: 2, 2>, scalar_prefetch = 0 : i64, scratch_operands = 1 : i64, tpu.core_type = #tpu.core_type<tc>, window_params = [{transform_indices = @transform_0, window_bounds = array<i64: 1, 16, 16, 4>}, {pipeline_mode = #tpu.pipeline_mode<synchronous>, transform_indices = @transform_1, window_bounds = array<i64: 6, 4, 12>}, {pipeline_mode = #tpu.pipeline_mode<synchronous>, transform_indices = @transform_2, window_bounds = array<i64: 6, 4, 12>}, {transform_indices = @transform_3, window_bounds = array<i64: 1, 16, 16, 4>}]} {
    %c0_i32 = arith.constant 0 : i32
    %0 = arith.cmpi eq, %arg1, %c0_i32 : i32
    %1 = arith.extui %0 : i1 to i32
    %c0_i32_0 = arith.constant 0 : i32
    %2 = arith.cmpi ne, %1, %c0_i32_0 : i32
    scf.if %2 {
      %cst_69 = arith.constant 0.000000e+00 : f32
      %141 = vector.broadcast %cst_69 : f32 to vector<1x24x4xf32>
      %c0_70 = arith.constant 0 : index
      %c0_71 = arith.constant 0 : index
      %c0_72 = arith.constant 0 : index
      %142 = vector.load %arg6[%c0_70, %c0_71, %c0_72] : memref<18x24x4xf32, #tpu.memory_space<vmem>>, vector<1x24x4xf32>
      tpu.vector_store %arg6[%c0_70, %c0_71, %c0_72], %141 {strides = array<i32>} : memref<18x24x4xf32, #tpu.memory_space<vmem>>, vector<1x24x4xf32>,
      %c17 = arith.constant 17 : index
      %c0_73 = arith.constant 0 : index
      %c0_74 = arith.constant 0 : index
      %143 = vector.load %arg6[%c17, %c0_73, %c0_74] : memref<18x24x4xf32, #tpu.memory_space<vmem>>, vector<1x24x4xf32>
      tpu.vector_store %arg6[%c17, %c0_73, %c0_74], %141 {strides = array<i32>} : memref<18x24x4xf32, #tpu.memory_space<vmem>>, vector<1x24x4xf32>,
      %cst_75 = arith.constant 0.000000e+00 : f32
      %144 = vector.broadcast %cst_75 : f32 to vector<16x8x4xf32>
      %c1_76 = arith.constant 1 : index
      %c16 = arith.constant 16 : index
      %c0_77 = arith.constant 0 : index
      %145 = vector.load %arg6[%c1_76, %c16, %c0_77] : memref<18x24x4xf32, #tpu.memory_space<vmem>>, vector<16x8x4xf32>
      tpu.vector_store %arg6[%c1_76, %c16, %c0_77], %144 {strides = array<i32>} : memref<18x24x4xf32, #tpu.memory_space<vmem>>, vector<16x8x4xf32>,
      %c0_78 = arith.constant 0 : index
      %c0_79 = arith.constant 0 : index
      %c0_80 = arith.constant 0 : index
      %c0_81 = arith.constant 0 : index
      %146 = vector.load %arg2[%c0_78, %c0_79, %c0_80, %c0_81] : memref<1x16x16x4xf32, #tpu.memory_space<vmem>>, vector<1x16x16x4xf32>
      %147 = vector.shape_cast %146 : vector<1x16x16x4xf32> to vector<16x16x4xf32>
      %c0_82 = arith.constant 0 : index
      %c0_83 = arith.constant 0 : index
      %c0_84 = arith.constant 0 : index
      %c0_85 = arith.constant 0 : index
      %148 = vector.load %arg5[%c0_82, %c0_83, %c0_84, %c0_85] : memref<1x16x16x4xf32, #tpu.memory_space<vmem>>, vector<1x16x16x4xf32>
      %149 = vector.shape_cast %148 : vector<1x16x16x4xf32> to vector<16x16x4xf32>
      %150 = vector.shape_cast %147 : vector<16x16x4xf32> to vector<1x16x16x4xf32>
      tpu.vector_store %arg5[%c0_82, %c0_83, %c0_84, %c0_85], %150 {strides = array<i32>} : memref<1x16x16x4xf32, #tpu.memory_space<vmem>>, vector<1x16x16x4xf32>,
    } else {
    }
    %c0 = arith.constant 0 : index
    %c0_1 = arith.constant 0 : index
    %c0_2 = arith.constant 0 : index
    %c0_3 = arith.constant 0 : index
    %3 = vector.load %arg5[%c0, %c0_1, %c0_2, %c0_3] : memref<1x16x16x4xf32, #tpu.memory_space<vmem>>, vector<1x16x16x4xf32>
    %4 = vector.shape_cast %3 : vector<1x16x16x4xf32> to vector<16x16x4xf32>
    %c1 = arith.constant 1 : index
    %c0_4 = arith.constant 0 : index
    %c0_5 = arith.constant 0 : index
    %5 = vector.load %arg6[%c1, %c0_4, %c0_5] : memref<18x24x4xf32, #tpu.memory_space<vmem>>, vector<16x16x4xf32>
    tpu.vector_store %arg6[%c1, %c0_4, %c0_5], %4 {strides = array<i32>} : memref<18x24x4xf32, #tpu.memory_space<vmem>>, vector<16x16x4xf32>,
    %cst = arith.constant 0.000000e+00 : f32
    %6 = vector.broadcast %cst : f32 to vector<16x1x4xf32>
    %c3_i32 = arith.constant 3 : i32
    %7 = arith.muli %c3_i32, %arg1 : i32
    %c0_i32_6 = arith.constant 0 : i32
    %8 = arith.addi %7, %c0_i32_6 : i32
    %9 = arith.index_cast %8 : i32 to index
    %c0_7 = arith.constant 0 : index
    %c0_8 = arith.constant 0 : index
    %10 = vector.load %arg3[%9, %c0_7, %c0_8] : memref<6x4x12xf32, #tpu.memory_space<vmem>>, vector<1x4x12xf32>
    %11 = vector.shape_cast %10 : vector<1x4x12xf32> to vector<4x12xf32>
    %c0_9 = arith.constant 0 : index
    %c0_10 = arith.constant 0 : index
    %c0_11 = arith.constant 0 : index
    %12 = vector.load %arg6[%c0_9, %c0_10, %c0_11] : memref<18x24x4xf32, #tpu.memory_space<vmem>>, vector<16x24x4xf32>
    %13 = vector.shape_cast %12 : vector<16x24x4xf32> to vector<384x4xf32>
    %cst_12 = arith.constant dense<0.000000e+00> : vector<384x12xf32>
    %14 = tpu.matmul %13, %11, %cst_12 {dimension_numbers = #tpu.dot_dimension_numbers<[1], [0], [0], [1], [0, 0, 1, 1], [], []>} : vector<384x4xf32>, vector<4x12xf32>, vector<384x12xf32> -> vector<384x12xf32>
    %15 = vector.shape_cast %14 : vector<384x12xf32> to vector<16x24x12xf32>
    %16 = vector.extract_strided_slice %15 {offsets = [0, 0, 0], sizes = [16, 15, 4], strides = [1, 1, 1]} : vector<16x24x12xf32> to vector<16x15x4xf32>
    %17 = tpu.concatenate %6, %16 in 1 : vector<16x1x4xf32>, vector<16x15x4xf32> -> vector<16x16x4xf32>
    %18 = vector.extract_strided_slice %15 {offsets = [0, 0, 4], sizes = [16, 16, 4], strides = [1, 1, 1]} : vector<16x24x12xf32> to vector<16x16x4xf32>
    %19 = arith.addf %17, %18 : vector<16x16x4xf32>
    %20 = vector.extract_strided_slice %15 {offsets = [0, 1, 8], sizes = [16, 16, 4], strides = [1, 1, 1]} : vector<16x24x12xf32> to vector<16x16x4xf32>
    %21 = arith.addf %19, %20 : vector<16x16x4xf32>
    %c3_i32_13 = arith.constant 3 : i32
    %22 = arith.muli %c3_i32_13, %arg1 : i32
    %c1_i32 = arith.constant 1 : i32
    %23 = arith.addi %22, %c1_i32 : i32
    %24 = arith.index_cast %23 : i32 to index
    %c0_14 = arith.constant 0 : index
    %c0_15 = arith.constant 0 : index
    %25 = vector.load %arg3[%24, %c0_14, %c0_15] : memref<6x4x12xf32, #tpu.memory_space<vmem>>, vector<1x4x12xf32>
    %26 = vector.shape_cast %25 : vector<1x4x12xf32> to vector<4x12xf32>
    %c1_16 = arith.constant 1 : index
    %c0_17 = arith.constant 0 : index
    %c0_18 = arith.constant 0 : index
    %27 = vector.load %arg6[%c1_16, %c0_17, %c0_18] : memref<18x24x4xf32, #tpu.memory_space<vmem>>, vector<16x24x4xf32>
    %28 = vector.shape_cast %27 : vector<16x24x4xf32> to vector<384x4xf32>
    %cst_19 = arith.constant dense<0.000000e+00> : vector<384x12xf32>
    %29 = tpu.matmul %28, %26, %cst_19 {dimension_numbers = #tpu.dot_dimension_numbers<[1], [0], [0], [1], [0, 0, 1, 1], [], []>} : vector<384x4xf32>, vector<4x12xf32>, vector<384x12xf32> -> vector<384x12xf32>
    %30 = vector.shape_cast %29 : vector<384x12xf32> to vector<16x24x12xf32>
    %31 = vector.extract_strided_slice %30 {offsets = [0, 0, 0], sizes = [16, 15, 4], strides = [1, 1, 1]} : vector<16x24x12xf32> to vector<16x15x4xf32>
    %32 = tpu.concatenate %6, %31 in 1 : vector<16x1x4xf32>, vector<16x15x4xf32> -> vector<16x16x4xf32>
    %33 = vector.extract_strided_slice %30 {offsets = [0, 0, 4], sizes = [16, 16, 4], strides = [1, 1, 1]} : vector<16x24x12xf32> to vector<16x16x4xf32>
    %34 = arith.addf %32, %33 : vector<16x16x4xf32>
    %35 = vector.extract_strided_slice %30 {offsets = [0, 1, 8], sizes = [16, 16, 4], strides = [1, 1, 1]} : vector<16x24x12xf32> to vector<16x16x4xf32>
    %36 = arith.addf %34, %35 : vector<16x16x4xf32>
    %37 = arith.addf %21, %36 : vector<16x16x4xf32>
    %c3_i32_20 = arith.constant 3 : i32
    %38 = arith.muli %c3_i32_20, %arg1 : i32
    %c2_i32 = arith.constant 2 : i32
    %39 = arith.addi %38, %c2_i32 : i32
    %40 = arith.index_cast %39 : i32 to index
    %c0_21 = arith.constant 0 : index
    %c0_22 = arith.constant 0 : index
    %41 = vector.load %arg3[%40, %c0_21, %c0_22] : memref<6x4x12xf32, #tpu.memory_space<vmem>>, vector<1x4x12xf32>
    %42 = vector.shape_cast %41 : vector<1x4x12xf32> to vector<4x12xf32>
    %c2 = arith.constant 2 : index
    %c0_23 = arith.constant 0 : index
    %c0_24 = arith.constant 0 : index
    %43 = vector.load %arg6[%c2, %c0_23, %c0_24] : memref<18x24x4xf32, #tpu.memory_space<vmem>>, vector<16x24x4xf32>
    %44 = vector.shape_cast %43 : vector<16x24x4xf32> to vector<384x4xf32>
    %cst_25 = arith.constant dense<0.000000e+00> : vector<384x12xf32>
    %45 = tpu.matmul %44, %42, %cst_25 {dimension_numbers = #tpu.dot_dimension_numbers<[1], [0], [0], [1], [0, 0, 1, 1], [], []>} : vector<384x4xf32>, vector<4x12xf32>, vector<384x12xf32> -> vector<384x12xf32>
    %46 = vector.shape_cast %45 : vector<384x12xf32> to vector<16x24x12xf32>
    %47 = vector.extract_strided_slice %46 {offsets = [0, 0, 0], sizes = [16, 15, 4], strides = [1, 1, 1]} : vector<16x24x12xf32> to vector<16x15x4xf32>
    %48 = tpu.concatenate %6, %47 in 1 : vector<16x1x4xf32>, vector<16x15x4xf32> -> vector<16x16x4xf32>
    %49 = vector.extract_strided_slice %46 {offsets = [0, 0, 4], sizes = [16, 16, 4], strides = [1, 1, 1]} : vector<16x24x12xf32> to vector<16x16x4xf32>
    %50 = arith.addf %48, %49 : vector<16x16x4xf32>
    %51 = vector.extract_strided_slice %46 {offsets = [0, 1, 8], sizes = [16, 16, 4], strides = [1, 1, 1]} : vector<16x24x12xf32> to vector<16x16x4xf32>
    %52 = arith.addf %50, %51 : vector<16x16x4xf32>
    %53 = arith.addf %37, %52 : vector<16x16x4xf32>
    %cst_26 = arith.constant dense<0.000000e+00> : vector<4xf32>
    %54 = vector.multi_reduction <add>, %53, %cst_26 [0, 1] : vector<16x16x4xf32> to vector<4xf32>
    %55 = vector.shape_cast %54 : vector<4xf32> to vector<1x1x4xf32>
    %cst_27 = arith.constant 2.560000e+02 : f32
    %56 = vector.broadcast %cst_27 : f32 to vector<1x1x4xf32>
    %57 = arith.divf %55, %56 : vector<1x1x4xf32>
    %58 = vector.broadcast %57 : vector<1x1x4xf32> to vector<16x16x4xf32>
    %59 = arith.subf %53, %58 : vector<16x16x4xf32>
    %60 = arith.mulf %59, %59 : vector<16x16x4xf32>
    %cst_28 = arith.constant dense<0.000000e+00> : vector<4xf32>
    %61 = vector.multi_reduction <add>, %60, %cst_28 [0, 1] : vector<16x16x4xf32> to vector<4xf32>
    %62 = vector.shape_cast %61 : vector<4xf32> to vector<1x1x4xf32>
    %cst_29 = arith.constant 2.560000e+02 : f32
    %63 = vector.broadcast %cst_29 : f32 to vector<1x1x4xf32>
    %64 = arith.divf %62, %63 : vector<1x1x4xf32>
    %cst_30 = arith.constant 9.99999974E-6 : f32
    %65 = vector.broadcast %cst_30 : f32 to vector<1x1x4xf32>
    %66 = arith.addf %64, %65 : vector<1x1x4xf32>
    %67 = math.rsqrt %66 : vector<1x1x4xf32>
    %68 = vector.broadcast %67 : vector<1x1x4xf32> to vector<16x16x4xf32>
    %69 = arith.mulf %59, %68 : vector<16x16x4xf32>
    %cst_31 = arith.constant 0.000000e+00 : f32
    %70 = vector.broadcast %cst_31 : f32 to vector<16x16x4xf32>
    %71 = arith.maximumf %69, %70 : vector<16x16x4xf32>
    %c1_32 = arith.constant 1 : index
    %c0_33 = arith.constant 0 : index
    %c0_34 = arith.constant 0 : index
    %72 = vector.load %arg6[%c1_32, %c0_33, %c0_34] : memref<18x24x4xf32, #tpu.memory_space<vmem>>, vector<16x16x4xf32>
    tpu.vector_store %arg6[%c1_32, %c0_33, %c0_34], %71 {strides = array<i32>} : memref<18x24x4xf32, #tpu.memory_space<vmem>>, vector<16x16x4xf32>,
    %cst_35 = arith.constant 0.000000e+00 : f32
    %73 = vector.broadcast %cst_35 : f32 to vector<16x1x4xf32>
    %c3_i32_36 = arith.constant 3 : i32
    %74 = arith.muli %c3_i32_36, %arg1 : i32
    %c0_i32_37 = arith.constant 0 : i32
    %75 = arith.addi %74, %c0_i32_37 : i32
    %76 = arith.index_cast %75 : i32 to index
    %c0_38 = arith.constant 0 : index
    %c0_39 = arith.constant 0 : index
    %77 = vector.load %arg4[%76, %c0_38, %c0_39] : memref<6x4x12xf32, #tpu.memory_space<vmem>>, vector<1x4x12xf32>
    %78 = vector.shape_cast %77 : vector<1x4x12xf32> to vector<4x12xf32>
    %c0_40 = arith.constant 0 : index
    %c0_41 = arith.constant 0 : index
    %c0_42 = arith.constant 0 : index
    %79 = vector.load %arg6[%c0_40, %c0_41, %c0_42] : memref<18x24x4xf32, #tpu.memory_space<vmem>>, vector<16x24x4xf32>
    %80 = vector.shape_cast %79 : vector<16x24x4xf32> to vector<384x4xf32>
    %cst_43 = arith.constant dense<0.000000e+00> : vector<384x12xf32>
    %81 = tpu.matmul %80, %78, %cst_43 {dimension_numbers = #tpu.dot_dimension_numbers<[1], [0], [0], [1], [0, 0, 1, 1], [], []>} : vector<384x4xf32>, vector<4x12xf32>, vector<384x12xf32> -> vector<384x12xf32>
    %82 = vector.shape_cast %81 : vector<384x12xf32> to vector<16x24x12xf32>
    %83 = vector.extract_strided_slice %82 {offsets = [0, 0, 0], sizes = [16, 15, 4], strides = [1, 1, 1]} : vector<16x24x12xf32> to vector<16x15x4xf32>
    %84 = tpu.concatenate %73, %83 in 1 : vector<16x1x4xf32>, vector<16x15x4xf32> -> vector<16x16x4xf32>
    %85 = vector.extract_strided_slice %82 {offsets = [0, 0, 4], sizes = [16, 16, 4], strides = [1, 1, 1]} : vector<16x24x12xf32> to vector<16x16x4xf32>
    %86 = arith.addf %84, %85 : vector<16x16x4xf32>
    %87 = vector.extract_strided_slice %82 {offsets = [0, 1, 8], sizes = [16, 16, 4], strides = [1, 1, 1]} : vector<16x24x12xf32> to vector<16x16x4xf32>
    %88 = arith.addf %86, %87 : vector<16x16x4xf32>
    %c3_i32_44 = arith.constant 3 : i32
    %89 = arith.muli %c3_i32_44, %arg1 : i32
    %c1_i32_45 = arith.constant 1 : i32
    %90 = arith.addi %89, %c1_i32_45 : i32
    %91 = arith.index_cast %90 : i32 to index
    %c0_46 = arith.constant 0 : index
    %c0_47 = arith.constant 0 : index
    %92 = vector.load %arg4[%91, %c0_46, %c0_47] : memref<6x4x12xf32, #tpu.memory_space<vmem>>, vector<1x4x12xf32>
    %93 = vector.shape_cast %92 : vector<1x4x12xf32> to vector<4x12xf32>
    %c1_48 = arith.constant 1 : index
    %c0_49 = arith.constant 0 : index
    %c0_50 = arith.constant 0 : index
    %94 = vector.load %arg6[%c1_48, %c0_49, %c0_50] : memref<18x24x4xf32, #tpu.memory_space<vmem>>, vector<16x24x4xf32>
    %95 = vector.shape_cast %94 : vector<16x24x4xf32> to vector<384x4xf32>
    %cst_51 = arith.constant dense<0.000000e+00> : vector<384x12xf32>
    %96 = tpu.matmul %95, %93, %cst_51 {dimension_numbers = #tpu.dot_dimension_numbers<[1], [0], [0], [1], [0, 0, 1, 1], [], []>} : vector<384x4xf32>, vector<4x12xf32>, vector<384x12xf32> -> vector<384x12xf32>
    %97 = vector.shape_cast %96 : vector<384x12xf32> to vector<16x24x12xf32>
    %98 = vector.extract_strided_slice %97 {offsets = [0, 0, 0], sizes = [16, 15, 4], strides = [1, 1, 1]} : vector<16x24x12xf32> to vector<16x15x4xf32>
    %99 = tpu.concatenate %73, %98 in 1 : vector<16x1x4xf32>, vector<16x15x4xf32> -> vector<16x16x4xf32>
    %100 = vector.extract_strided_slice %97 {offsets = [0, 0, 4], sizes = [16, 16, 4], strides = [1, 1, 1]} : vector<16x24x12xf32> to vector<16x16x4xf32>
    %101 = arith.addf %99, %100 : vector<16x16x4xf32>
    %102 = vector.extract_strided_slice %97 {offsets = [0, 1, 8], sizes = [16, 16, 4], strides = [1, 1, 1]} : vector<16x24x12xf32> to vector<16x16x4xf32>
    %103 = arith.addf %101, %102 : vector<16x16x4xf32>
    %104 = arith.addf %88, %103 : vector<16x16x4xf32>
    %c3_i32_52 = arith.constant 3 : i32
    %105 = arith.muli %c3_i32_52, %arg1 : i32
    %c2_i32_53 = arith.constant 2 : i32
    %106 = arith.addi %105, %c2_i32_53 : i32
    %107 = arith.index_cast %106 : i32 to index
    %c0_54 = arith.constant 0 : index
    %c0_55 = arith.constant 0 : index
    %108 = vector.load %arg4[%107, %c0_54, %c0_55] : memref<6x4x12xf32, #tpu.memory_space<vmem>>, vector<1x4x12xf32>
    %109 = vector.shape_cast %108 : vector<1x4x12xf32> to vector<4x12xf32>
    %c2_56 = arith.constant 2 : index
    %c0_57 = arith.constant 0 : index
    %c0_58 = arith.constant 0 : index
    %110 = vector.load %arg6[%c2_56, %c0_57, %c0_58] : memref<18x24x4xf32, #tpu.memory_space<vmem>>, vector<16x24x4xf32>
    %111 = vector.shape_cast %110 : vector<16x24x4xf32> to vector<384x4xf32>
    %cst_59 = arith.constant dense<0.000000e+00> : vector<384x12xf32>
    %112 = tpu.matmul %111, %109, %cst_59 {dimension_numbers = #tpu.dot_dimension_numbers<[1], [0], [0], [1], [0, 0, 1, 1], [], []>} : vector<384x4xf32>, vector<4x12xf32>, vector<384x12xf32> -> vector<384x12xf32>
    %113 = vector.shape_cast %112 : vector<384x12xf32> to vector<16x24x12xf32>
    %114 = vector.extract_strided_slice %113 {offsets = [0, 0, 0], sizes = [16, 15, 4], strides = [1, 1, 1]} : vector<16x24x12xf32> to vector<16x15x4xf32>
    %115 = tpu.concatenate %73, %114 in 1 : vector<16x1x4xf32>, vector<16x15x4xf32> -> vector<16x16x4xf32>
    %116 = vector.extract_strided_slice %113 {offsets = [0, 0, 4], sizes = [16, 16, 4], strides = [1, 1, 1]} : vector<16x24x12xf32> to vector<16x16x4xf32>
    %117 = arith.addf %115, %116 : vector<16x16x4xf32>
    %118 = vector.extract_strided_slice %113 {offsets = [0, 1, 8], sizes = [16, 16, 4], strides = [1, 1, 1]} : vector<16x24x12xf32> to vector<16x16x4xf32>
    %119 = arith.addf %117, %118 : vector<16x16x4xf32>
    %120 = arith.addf %104, %119 : vector<16x16x4xf32>
    %cst_60 = arith.constant dense<0.000000e+00> : vector<4xf32>
    %121 = vector.multi_reduction <add>, %120, %cst_60 [0, 1] : vector<16x16x4xf32> to vector<4xf32>
    %122 = vector.shape_cast %121 : vector<4xf32> to vector<1x1x4xf32>
    %cst_61 = arith.constant 2.560000e+02 : f32
    %123 = vector.broadcast %cst_61 : f32 to vector<1x1x4xf32>
    %124 = arith.divf %122, %123 : vector<1x1x4xf32>
    %125 = vector.broadcast %124 : vector<1x1x4xf32> to vector<16x16x4xf32>
    %126 = arith.subf %120, %125 : vector<16x16x4xf32>
    %127 = arith.mulf %126, %126 : vector<16x16x4xf32>
    %cst_62 = arith.constant dense<0.000000e+00> : vector<4xf32>
    %128 = vector.multi_reduction <add>, %127, %cst_62 [0, 1] : vector<16x16x4xf32> to vector<4xf32>
    %129 = vector.shape_cast %128 : vector<4xf32> to vector<1x1x4xf32>
    %cst_63 = arith.constant 2.560000e+02 : f32
    %130 = vector.broadcast %cst_63 : f32 to vector<1x1x4xf32>
    %131 = arith.divf %129, %130 : vector<1x1x4xf32>
    %cst_64 = arith.constant 9.99999974E-6 : f32
    %132 = vector.broadcast %cst_64 : f32 to vector<1x1x4xf32>
    %133 = arith.addf %131, %132 : vector<1x1x4xf32>
    %134 = math.rsqrt %133 : vector<1x1x4xf32>
    %135 = vector.broadcast %134 : vector<1x1x4xf32> to vector<16x16x4xf32>
    %136 = arith.mulf %126, %135 : vector<16x16x4xf32>
    %137 = arith.addf %4, %136 : vector<16x16x4xf32>
    %c0_65 = arith.constant 0 : index
    %c0_66 = arith.constant 0 : index
    %c0_67 = arith.constant 0 : index
    %c0_68 = arith.constant 0 : index
    %138 = vector.load %arg5[%c0_65, %c0_66, %c0_67, %c0_68] : memref<1x16x16x4xf32, #tpu.memory_space<vmem>>, vector<1x16x16x4xf32>
    %139 = vector.shape_cast %138 : vector<1x16x16x4xf32> to vector<16x16x4xf32>
    %140 = vector.shape_cast %137 : vector<16x16x4xf32> to vector<1x16x16x4xf32>
    tpu.vector_store %arg5[%c0_65, %c0_66, %c0_67, %c0_68], %140 {strides = array<i32>} : memref<1x16x16x4xf32, #tpu.memory_space<vmem>>, vector<1x16x16x4xf32>,
    return
  }
  func.func @transform_0(%arg0: i32, %arg1: i32) -> (i32, i32, i32, i32) {
    %c0_i32 = arith.constant 0 : i32
    %c0_i32_0 = arith.constant 0 : i32
    %c0_i32_1 = arith.constant 0 : i32
    %c0_i32_2 = arith.constant 0 : i32
    return %arg0, %c0_i32, %c0_i32_0, %c0_i32_1 : i32, i32, i32, i32
  }
  func.func @transform_1(%arg0: i32, %arg1: i32) -> (i32, i32, i32) {
    %c0_i32 = arith.constant 0 : i32
    %c0_i32_0 = arith.constant 0 : i32
    %c0_i32_1 = arith.constant 0 : i32
    %c0_i32_2 = arith.constant 0 : i32
    return %c0_i32, %c0_i32_0, %c0_i32_1 : i32, i32, i32
  }
  func.func @transform_2(%arg0: i32, %arg1: i32) -> (i32, i32, i32) {
    %c0_i32 = arith.constant 0 : i32
    %c0_i32_0 = arith.constant 0 : i32
    %c0_i32_1 = arith.constant 0 : i32
    %c0_i32_2 = arith.constant 0 : i32
    return %c0_i32, %c0_i32_0, %c0_i32_1 : i32, i32, i32
  }
  func.func @transform_3(%arg0: i32, %arg1: i32) -> (i32, i32, i32, i32) {
    %c0_i32 = arith.constant 0 : i32
    %c0_i32_0 = arith.constant 0 : i32
    %c0_i32_1 = arith.constant 0 : i32
    %c0_i32_2 = arith.constant 0 : i32
    return %arg0, %c0_i32, %c0_i32_0, %c0_i32_1 : i32, i32, i32, i32
  }
}

</mosaic_0001>

<llo_original>
// kernel: tpu_custom_call.1
$region0: #{tpu_custom_call.1}
  #allocation0 [shape = 'u32[]', space=smem, size = 0x4, offset = 0x4, fixed_abs, tag = 'smem constant byte address 0x4 - core index']
  #allocation1 [shape = 'u32[144,128]{1,0:T(1,128)}', space=vmem, size = 0x12000, scoped, tag = 'internal scratch']
  #allocation2 [shape = 'f32[18,24,4]{2,1,0:T(8,128)}', space=vmem, size = 0x36000, scoped, tag = 'scratch operand']
  %s0 = inlined_call_operand.vmem [shape: f32[2,16,16,4], index: 0, kind: input, shape index: {}]
  %s1 = inlined_call_operand.vmem [shape: f32[6,4,12], index: 1, kind: input, shape index: {}]
  %s2 = inlined_call_operand.vmem [shape: f32[6,4,12], index: 2, kind: input, shape index: {}]
  %s3 = inlined_call_operand.vmem [shape: f32[2,16,16,4], index: 3, kind: output, shape index: {}]
  %s4 = sld [smem:[#allocation0]]
  $region49: #{tpu_custom_call.1} parent=0
    _
  %s6 = ssub.s32 1, %s4
  %s7 = scalar_select 0, %s6, %s4
  loop: start=0, step=1, limit=6
  $region2: #{tpu_custom_call.1} parent=0 // loop_pre_header
    _
  $region3: #{tpu_custom_call.1} parent=0 // loop_header
    %s9 = sphi 0, %s13
    %p10 = scmp.ge.s32.totalorder %s9, 6
    %s16 = sphi 0, %s28
    %s17 = sphi 0, %s24
    %s18 = sphi 0, %s16
    %s19 = sphi 0, %s17
    %s20 = sphi 0, %s18
    %s21 = sphi 0, %s19
    %s31 = sphi 0, %s33
    %s34 = sphi 0, %s31
    %s35 = sphi 0, %s34
    %s51 = sphi 0, %s35
    %s55 = sphi 0, %s55
    %s57 = sphi 0, %s55
    %s58 = sphi 0, %s57
    %s72 = sphi 0, %s58
    %s76 = sphi 0, %s76
    %s78 = sphi 0, %s76
    %s79 = sphi 0, %s78
    %s93 = sphi 0, %s79
    %s99 = sphi 0, %s101
    %s102 = sphi 0, %s99
    %s103 = sphi 0, %s102
    %s119 = sphi 0, %s103
  $region4: #{tpu_custom_call.1} parent=0 // loop_header_branch
    %12 = sbr.rel (%p10) target = $region8
  $region5: #{tpu_custom_call.1} parent=0 // loop_body
    %s14 = ssub.s32 %s9, 1
    %s15 = ssub.s32 %s9, 2
    %s22 = sadd.s32 1, %s17
    %p23 = scmp.ge.s32.totalorder %s22, 2
    %s24 = scalar_select %p23, 0, %s22
    %s25 = sadd.s32 1, %s16
    %s26 = scalar_select %p23, %s25, %s16
    %p27 = scmp.ge.s32.totalorder %s26, 2
    %s28 = scalar_select %p27, 0, %s26
    %s29 = ssub.s32 %s16, %s28
    %p30 = scmp.eq.s32.totalorder %s29, 0
    %s32 = sadd.s32 %s31, 1
    %s33 = scalar_select %p30, %s31, %s32
    %p36 = pneg %p30
    %p37 = scmp.eq.s32.totalorder %s9, 3
    %p38 = por %p36, %p37
    %p39 = scmp.ne.s32.totalorder %s31, %s34
    %p40 = scmp.eq.s32.totalorder %s9, 0
    %p41 = por %p39, %p40
    %p42 = scmp.ne.s32.totalorder %s31, %s34
    %p43 = scmp.eq.s32.totalorder %s14, 3
    %p44 = por %p42, %p43
    %p45 = scmp.ne.s32.totalorder %s34, %s35
    %p46 = scmp.eq.s32.totalorder %s14, 0
    %p47 = por %p45, %p46
    %p48 = scmp.ne.s32.totalorder %s34, %s35
    %p49 = scmp.eq.s32.totalorder %s15, 3
    %p50 = por %p48, %p49
    %p52 = scmp.ne.s32.totalorder %s35, %s51
    %p53 = scmp.eq.s32.totalorder %s15, 0
    %p54 = por %p52, %p53
    %s56 = sadd.s32 %s55, 1
    %p59 = scmp.eq.s32.totalorder %s9, 3
    %p60 = scmp.ne.s32.totalorder %s55, %s57
    %p61 = scmp.eq.s32.totalorder %s9, 0
    %p62 = por %p60, %p61
    %p63 = scmp.ne.s32.totalorder %s55, %s57
    %p64 = scmp.eq.s32.totalorder %s14, 3
    %p65 = por %p63, %p64
    %p66 = scmp.ne.s32.totalorder %s57, %s58
    %p67 = scmp.eq.s32.totalorder %s14, 0
    %p68 = por %p66, %p67
    %p69 = scmp.ne.s32.totalorder %s57, %s58
    %p70 = scmp.eq.s32.totalorder %s15, 3
    %p71 = por %p69, %p70
    %p73 = scmp.ne.s32.totalorder %s58, %s72
    %p74 = scmp.eq.s32.totalorder %s15, 0
    %p75 = por %p73, %p74
    %s77 = sadd.s32 %s76, 1
    %p80 = scmp.eq.s32.totalorder %s9, 3
    %p81 = scmp.ne.s32.totalorder %s76, %s78
    %p82 = scmp.eq.s32.totalorder %s9, 0
    %p83 = por %p81, %p82
    %p84 = scmp.ne.s32.totalorder %s76, %s78
    %p85 = scmp.eq.s32.totalorder %s14, 3
    %p86 = por %p84, %p85
    %p87 = scmp.ne.s32.totalorder %s78, %s79
    %p88 = scmp.eq.s32.totalorder %s14, 0
    %p89 = por %p87, %p88
    %p90 = scmp.ne.s32.totalorder %s78, %s79
    %p91 = scmp.eq.s32.totalorder %s15, 3
    %p92 = por %p90, %p91
    %p94 = scmp.ne.s32.totalorder %s79, %s93
    %p95 = scmp.eq.s32.totalorder %s15, 0
    %p96 = por %p94, %p95
    %s97 = ssub.s32 %s16, %s28
    %p98 = scmp.eq.s32.totalorder %s97, 0
    %s100 = sadd.s32 %s99, 1
    %s101 = scalar_select %p98, %s99, %s100
    %p104 = pneg %p98
    %p105 = scmp.eq.s32.totalorder %s9, 3
    %p106 = por %p104, %p105
    %p107 = scmp.ne.s32.totalorder %s99, %s102
    %p108 = scmp.eq.s32.totalorder %s9, 0
    %p109 = por %p107, %p108
    %p110 = scmp.ne.s32.totalorder %s99, %s102
    %p111 = scmp.eq.s32.totalorder %s14, 3
    %p112 = por %p110, %p111
    %p113 = scmp.ne.s32.totalorder %s102, %s103
    %p114 = scmp.eq.s32.totalorder %s14, 0
    %p115 = por %p113, %p114
    %p116 = scmp.ne.s32.totalorder %s102, %s103
    %p117 = scmp.eq.s32.totalorder %s15, 3
    %p118 = por %p116, %p117
    %p120 = scmp.ne.s32.totalorder %s103, %s119
    %p121 = scmp.eq.s32.totalorder %s15, 0
    %p122 = por %p120, %p121
    %p123 = scmp.le.s32.totalorder 1, %s9
    %p124 = scmp.lt.s32.totalorder %s9, 5
    %p125 = pnand %p123, %p124
    %p126 = pneg %p125
    // Predicated region
    $region9: #{tpu_custom_call.1} parent=5 // pred_check
      _
    $region10: #{tpu_custom_call.1} parent=5 // pred_check_branch
      %128 = sbr.rel (%p125) target = $region12
    $region11: #{tpu_custom_call.1} parent=5 // pred_region
      %s129 = ssub.s32 %s9, 1
      // Predicated region
      $region13: #{tpu_custom_call.1} parent=11 // pred_check
        %p130 = pneg %p68
      $region14: #{tpu_custom_call.1} parent=11 // pred_check_branch
        %132 = sbr.rel (%p130) target = $region16
      $region15: #{tpu_custom_call.1} parent=11 // pred_region
        _
      $region16: #{tpu_custom_call.1} parent=11 // pred_fallthru
        _
      // Predicated region
      $region17: #{tpu_custom_call.1} parent=11 // pred_check
        %p133 = pneg %p89
      $region18: #{tpu_custom_call.1} parent=11 // pred_check_branch
        %135 = sbr.rel (%p133) target = $region20
      $region19: #{tpu_custom_call.1} parent=11 // pred_region
        _
      $region20: #{tpu_custom_call.1} parent=11 // pred_fallthru
        _
    $region12: #{tpu_custom_call.1} parent=5 // pred_fallthru
      _
    %p136 = scmp.lt.s32.totalorder %s9, 4
    // Predicated region
    $region21: #{tpu_custom_call.1} parent=5 // pred_check
      %p137 = pneg %p136
    $region22: #{tpu_custom_call.1} parent=5 // pred_check_branch
      %139 = sbr.rel (%p137) target = $region24
    $region23: #{tpu_custom_call.1} parent=5 // pred_region
      // Predicated region
      $region25: #{tpu_custom_call.1} parent=23 // pred_check
        %p140 = pneg %p41
      $region26: #{tpu_custom_call.1} parent=23 // pred_check_branch
        %142 = sbr.rel (%p140) target = $region28
      $region27: #{tpu_custom_call.1} parent=23 // pred_region
        %p143 = scmp.lt.s32.totalorder %s16, 1
        %s144 = scalar_select %p143, %s16, 1
        %s145 = smul.addr %s144, 32
        %s146 = smul.addr %s145, 8
        %s147 = scalar_lea.vmem %s0, %s146
      $region28: #{tpu_custom_call.1} parent=23 // pred_fallthru
        _
    $region24: #{tpu_custom_call.1} parent=5 // pred_fallthru
      _
    %p148 = scmp.le.s32.totalorder 1, %s9
    %p149 = scmp.lt.s32.totalorder %s9, 5
    %p150 = pnand %p148, %p149
    %p151 = pneg %p150
    // Predicated region
    $region29: #{tpu_custom_call.1} parent=5 // pred_check
      _
    $region30: #{tpu_custom_call.1} parent=5 // pred_check_branch
      %153 = sbr.rel (%p150) target = $region32
    $region31: #{tpu_custom_call.1} parent=5 // pred_region
      %s154 = ssub.s32 %s9, 1
      %p155 = scmp.lt.s32.totalorder %s18, 1
      %s156 = scalar_select %p155, %s18, 1
      %s157 = smul.addr %s156, 32
      %s158 = smul.addr %s157, 8
      %s159 = scalar_lea.vmem %s0, %s158
      %p160 = pneg %p47
      %p161 = pneg %p44
      %p162 = pneg %p68
      %p163 = pneg %p65
      %p164 = pneg %p89
      %p165 = pneg %p86
      %p166 = pneg %p115
      %p167 = pneg %p112
      %p168 = scmp.lt.s32.totalorder %s18, 1
      %s169 = scalar_select %p168, %s18, 1
      %s170 = smul.addr %s169, 32
      %s171 = smul.addr %s170, 8
      %s172 = scalar_lea.vmem %s3, %s171
      %p173 = scmp.lt.s32.totalorder %s18, 1
      %s174 = scalar_select %p173, %s18, 1
      %s175 = smul.addr %s174, 32
      %s176 = smul.addr %s175, 8
      %s177 = scalar_lea.vmem %s0, %s176
      %p178 = scmp.lt.s32.totalorder %s18, 1
      %s179 = scalar_select %p178, %s18, 1
      %s180 = smul.addr %s179, 32
      %s181 = smul.addr %s180, 8
      %s182 = scalar_lea.vmem %s3, %s181
      %p183 = scmp.eq.s32.totalorder %s19, 0
      // Predicated region
      $region33: #{tpu_custom_call.1} parent=31 // pred_check
        %p184 = pneg %p183
      $region34: #{tpu_custom_call.1} parent=31 // pred_check_branch
        %186 = sbr.rel (%p184) target = $region36
      $region35: #{tpu_custom_call.1} parent=31 // pred_region
        %vm187 = vcmask 31744
        %188 = vst.msk [vmem:[#allocation2] sm:$0xff] %vm187, 0.0
        %189 = vst.msk [vmem:[#allocation2 + $0x8] sm:$0xff] %vm187, 0.0
        %190 = vst.msk [vmem:[#allocation2 + $0x10] sm:$0xff] %vm187, 0.0
        %s191 = scalar_lea.vmem [#allocation2], 408
        %192 = vst.msk [vmem:[%s191] sm:$0xff] %vm187, 0.0
        %193 = vst.msk [vmem:[%s191 + $0x8] sm:$0xff] %vm187, 0.0
        %194 = vst.msk [vmem:[%s191 + $0x10] sm:$0xff] %vm187, 0.0
        %s195 = scalar_lea.vmem [#allocation2], 24
        %196 = vst.msk [vmem:[%s195 + $0x10] sm:$0xff] %vm187, 0.0
        %197 = vst.msk [vmem:[%s195 + $0x28] sm:$0xff] %vm187, 0.0
        %198 = vst.msk [vmem:[%s195 + $0x40] sm:$0xff] %vm187, 0.0
        %199 = vst.msk [vmem:[%s195 + $0x58] sm:$0xff] %vm187, 0.0
        %200 = vst.msk [vmem:[%s195 + $0x70] sm:$0xff] %vm187, 0.0
        %201 = vst.msk [vmem:[%s195 + $0x88] sm:$0xff] %vm187, 0.0
        %202 = vst.msk [vmem:[%s195 + $0xa0] sm:$0xff] %vm187, 0.0
        %203 = vst.msk [vmem:[%s195 + $0xb8] sm:$0xff] %vm187, 0.0
        %204 = vst.msk [vmem:[%s195 + $0xd0] sm:$0xff] %vm187, 0.0
        %205 = vst.msk [vmem:[%s195 + $0xe8] sm:$0xff] %vm187, 0.0
        %206 = vst.msk [vmem:[%s195 + $0x100] sm:$0xff] %vm187, 0.0
        %207 = vst.msk [vmem:[%s195 + $0x118] sm:$0xff] %vm187, 0.0
        %208 = vst.msk [vmem:[%s195 + $0x130] sm:$0xff] %vm187, 0.0
        %209 = vst.msk [vmem:[%s195 + $0x148] sm:$0xff] %vm187, 0.0
        %210 = vst.msk [vmem:[%s195 + $0x160] sm:$0xff] %vm187, 0.0
        %211 = vst.msk [vmem:[%s195 + $0x178] sm:$0xff] %vm187, 0.0
        %v212 = vld [vmem:[%s177] sm:$0xff]
        %v213 = vld [vmem:[%s177 + $0x8] sm:$0xff]
        %v214 = vld [vmem:[%s177 + $0x10] sm:$0xff]
        %v215 = vld [vmem:[%s177 + $0x18] sm:$0xff]
        %v216 = vld [vmem:[%s177 + $0x20] sm:$0xff]
        %v217 = vld [vmem:[%s177 + $0x28] sm:$0xff]
        %v218 = vld [vmem:[%s177 + $0x30] sm:$0xff]
        %v219 = vld [vmem:[%s177 + $0x38] sm:$0xff]
        %v220 = vld [vmem:[%s177 + $0x40] sm:$0xff]
        %v221 = vld [vmem:[%s177 + $0x48] sm:$0xff]
        %v222 = vld [vmem:[%s177 + $0x50] sm:$0xff]
        %v223 = vld [vmem:[%s177 + $0x58] sm:$0xff]
        %v224 = vld [vmem:[%s177 + $0x60] sm:$0xff]
        %v225 = vld [vmem:[%s177 + $0x68] sm:$0xff]
        %v226 = vld [vmem:[%s177 + $0x70] sm:$0xff]
        %v227 = vld [vmem:[%s177 + $0x78] sm:$0xff]
        %v228 = vld [vmem:[%s177 + $0x80] sm:$0xff]
        %v229 = vld [vmem:[%s177 + $0x88] sm:$0xff]
        %v230 = vld [vmem:[%s177 + $0x90] sm:$0xff]
        %v231 = vld [vmem:[%s177 + $0x98] sm:$0xff]
        %v232 = vld [vmem:[%s177 + $0xa0] sm:$0xff]
        %v233 = vld [vmem:[%s177 + $0xa8] sm:$0xff]
        %v234 = vld [vmem:[%s177 + $0xb0] sm:$0xff]
        %v235 = vld [vmem:[%s177 + $0xb8] sm:$0xff]
        %v236 = vld [vmem:[%s177 + $0xc0] sm:$0xff]
        %v237 = vld [vmem:[%s177 + $0xc8] sm:$0xff]
        %v238 = vld [vmem:[%s177 + $0xd0] sm:$0xff]
        %v239 = vld [vmem:[%s177 + $0xd8] sm:$0xff]
        %v240 = vld [vmem:[%s177 + $0xe0] sm:$0xff]
        %v241 = vld [vmem:[%s177 + $0xe8] sm:$0xff]
        %v242 = vld [vmem:[%s177 + $0xf0] sm:$0xff]
        %v243 = vld [vmem:[%s177 + $0xf8] sm:$0xff]
        %244 = vst.msk [vmem:[%s182] sm:$0xff] %vm187, %v212
        %245 = vst.msk [vmem:[%s182 + $0x8] sm:$0xff] %vm187, %v213
        %246 = vst.msk [vmem:[%s182 + $0x10] sm:$0xff] %vm187, %v214
        %247 = vst.msk [vmem:[%s182 + $0x18] sm:$0xff] %vm187, %v215
        %248 = vst.msk [vmem:[%s182 + $0x20] sm:$0xff] %vm187, %v216
        %249 = vst.msk [vmem:[%s182 + $0x28] sm:$0xff] %vm187, %v217
        %250 = vst.msk [vmem:[%s182 + $0x30] sm:$0xff] %vm187, %v218
        %251 = vst.msk [vmem:[%s182 + $0x38] sm:$0xff] %vm187, %v219
        %252 = vst.msk [vmem:[%s182 + $0x40] sm:$0xff] %vm187, %v220
        %253 = vst.msk [vmem:[%s182 + $0x48] sm:$0xff] %vm187, %v221
        %254 = vst.msk [vmem:[%s182 + $0x50] sm:$0xff] %vm187, %v222
        %255 = vst.msk [vmem:[%s182 + $0x58] sm:$0xff] %vm187, %v223
        %256 = vst.msk [vmem:[%s182 + $0x60] sm:$0xff] %vm187, %v224
        %257 = vst.msk [vmem:[%s182 + $0x68] sm:$0xff] %vm187, %v225
        %258 = vst.msk [vmem:[%s182 + $0x70] sm:$0xff] %vm187, %v226
        %259 = vst.msk [vmem:[%s182 + $0x78] sm:$0xff] %vm187, %v227
        %260 = vst.msk [vmem:[%s182 + $0x80] sm:$0xff] %vm187, %v228
        %261 = vst.msk [vmem:[%s182 + $0x88] sm:$0xff] %vm187, %v229
        %262 = vst.msk [vmem:[%s182 + $0x90] sm:$0xff] %vm187, %v230
        %263 = vst.msk [vmem:[%s182 + $0x98] sm:$0xff] %vm187, %v231
        %264 = vst.msk [vmem:[%s182 + $0xa0] sm:$0xff] %vm187, %v232
        %265 = vst.msk [vmem:[%s182 + $0xa8] sm:$0xff] %vm187, %v233
        %266 = vst.msk [vmem:[%s182 + $0xb0] sm:$0xff] %vm187, %v234
        %267 = vst.msk [vmem:[%s182 + $0xb8] sm:$0xff] %vm187, %v235
        %268 = vst.msk [vmem:[%s182 + $0xc0] sm:$0xff] %vm187, %v236
        %269 = vst.msk [vmem:[%s182 + $0xc8] sm:$0xff] %vm187, %v237
        %270 = vst.msk [vmem:[%s182 + $0xd0] sm:$0xff] %vm187, %v238
        %271 = vst.msk [vmem:[%s182 + $0xd8] sm:$0xff] %vm187, %v239
        %272 = vst.msk [vmem:[%s182 + $0xe0] sm:$0xff] %vm187, %v240
        %273 = vst.msk [vmem:[%s182 + $0xe8] sm:$0xff] %vm187, %v241
        %274 = vst.msk [vmem:[%s182 + $0xf0] sm:$0xff] %vm187, %v242
        %275 = vst.msk [vmem:[%s182 + $0xf8] sm:$0xff] %vm187, %v243
      $region36: #{tpu_custom_call.1} parent=31 // pred_fallthru
        _
      %v276 = vld [vmem:[%s182] sm:$0xff]
      %v277 = vld [vmem:[%s182 + $0x8] sm:$0xff]
      %v278 = vld [vmem:[%s182 + $0x10] sm:$0xff]
      %v279 = vld [vmem:[%s182 + $0x18] sm:$0xff]
      %v280 = vld [vmem:[%s182 + $0x20] sm:$0xff]
      %v281 = vld [vmem:[%s182 + $0x28] sm:$0xff]
      %v282 = vld [vmem:[%s182 + $0x30] sm:$0xff]
      %v283 = vld [vmem:[%s182 + $0x38] sm:$0xff]
      %v284 = vld [vmem:[%s182 + $0x40] sm:$0xff]
      %v285 = vld [vmem:[%s182 + $0x48] sm:$0xff]
      %v286 = vld [vmem:[%s182 + $0x50] sm:$0xff]
      %v287 = vld [vmem:[%s182 + $0x58] sm:$0xff]
      %v288 = vld [vmem:[%s182 + $0x60] sm:$0xff]
      %v289 = vld [vmem:[%s182 + $0x68] sm:$0xff]
      %v290 = vld [vmem:[%s182 + $0x70] sm:$0xff]
      %v291 = vld [vmem:[%s182 + $0x78] sm:$0xff]
      %v292 = vld [vmem:[%s182 + $0x80] sm:$0xff]
      %v293 = vld [vmem:[%s182 + $0x88] sm:$0xff]
      %v294 = vld [vmem:[%s182 + $0x90] sm:$0xff]
      %v295 = vld [vmem:[%s182 + $0x98] sm:$0xff]
      %v296 = vld [vmem:[%s182 + $0xa0] sm:$0xff]
      %v297 = vld [vmem:[%s182 + $0xa8] sm:$0xff]
      %v298 = vld [vmem:[%s182 + $0xb0] sm:$0xff]
      %v299 = vld [vmem:[%s182 + $0xb8] sm:$0xff]
      %v300 = vld [vmem:[%s182 + $0xc0] sm:$0xff]
      %v301 = vld [vmem:[%s182 + $0xc8] sm:$0xff]
      %v302 = vld [vmem:[%s182 + $0xd0] sm:$0xff]
      %v303 = vld [vmem:[%s182 + $0xd8] sm:$0xff]
      %v304 = vld [vmem:[%s182 + $0xe0] sm:$0xff]
      %v305 = vld [vmem:[%s182 + $0xe8] sm:$0xff]
      %v306 = vld [vmem:[%s182 + $0xf0] sm:$0xff]
      %v307 = vld [vmem:[%s182 + $0xf8] sm:$0xff]
      %s308 = scalar_lea.vmem [#allocation2], 24
      %vm309 = vcmask 31744
      %310 = vst.msk [vmem:[%s308] sm:$0xff] %vm309, %v276
      %311 = vst.msk [vmem:[%s308 + $0x8] sm:$0xff] %vm309, %v277
      %312 = vst.msk [vmem:[%s308 + $0x18] sm:$0xff] %vm309, %v278
      %313 = vst.msk [vmem:[%s308 + $0x20] sm:$0xff] %vm309, %v279
      %314 = vst.msk [vmem:[%s308 + $0x30] sm:$0xff] %vm309, %v280
      %315 = vst.msk [vmem:[%s308 + $0x38] sm:$0xff] %vm309, %v281
      %316 = vst.msk [vmem:[%s308 + $0x48] sm:$0xff] %vm309, %v282
      %317 = vst.msk [vmem:[%s308 + $0x50] sm:$0xff] %vm309, %v283
      %318 = vst.msk [vmem:[%s308 + $0x60] sm:$0xff] %vm309, %v284
      %319 = vst.msk [vmem:[%s308 + $0x68] sm:$0xff] %vm309, %v285
      %320 = vst.msk [vmem:[%s308 + $0x78] sm:$0xff] %vm309, %v286
      %321 = vst.msk [vmem:[%s308 + $0x80] sm:$0xff] %vm309, %v287
      %322 = vst.msk [vmem:[%s308 + $0x90] sm:$0xff] %vm309, %v288
      %323 = vst.msk [vmem:[%s308 + $0x98] sm:$0xff] %vm309, %v289
      %324 = vst.msk [vmem:[%s308 + $0xa8] sm:$0xff] %vm309, %v290
      %325 = vst.msk [vmem:[%s308 + $0xb0] sm:$0xff] %vm309, %v291
      %326 = vst.msk [vmem:[%s308 + $0xc0] sm:$0xff] %vm309, %v292
      %327 = vst.msk [vmem:[%s308 + $0xc8] sm:$0xff] %vm309, %v293
      %328 = vst.msk [vmem:[%s308 + $0xd8] sm:$0xff] %vm309, %v294
      %329 = vst.msk [vmem:[%s308 + $0xe0] sm:$0xff] %vm309, %v295
      %330 = vst.msk [vmem:[%s308 + $0xf0] sm:$0xff] %vm309, %v296
      %331 = vst.msk [vmem:[%s308 + $0xf8] sm:$0xff] %vm309, %v297
      %332 = vst.msk [vmem:[%s308 + $0x108] sm:$0xff] %vm309, %v298
      %333 = vst.msk [vmem:[%s308 + $0x110] sm:$0xff] %vm309, %v299
      %334 = vst.msk [vmem:[%s308 + $0x120] sm:$0xff] %vm309, %v300
      %335 = vst.msk [vmem:[%s308 + $0x128] sm:$0xff] %vm309, %v301
      %336 = vst.msk [vmem:[%s308 + $0x138] sm:$0xff] %vm309, %v302
      %337 = vst.msk [vmem:[%s308 + $0x140] sm:$0xff] %vm309, %v303
      %338 = vst.msk [vmem:[%s308 + $0x150] sm:$0xff] %vm309, %v304
      %339 = vst.msk [vmem:[%s308 + $0x158] sm:$0xff] %vm309, %v305
      %340 = vst.msk [vmem:[%s308 + $0x168] sm:$0xff] %vm309, %v306
      %341 = vst.msk [vmem:[%s308 + $0x170] sm:$0xff] %vm309, %v307
      %s342 = smul.u32 %s19, 3
      %s343 = smul.u32 %s342, 4
      %s344 = scalar_lea.vmem %s1, %s343
      %v345 = vld [vmem:[%s344] sm:$0xf]
      %v346 = vld [vmem:[#allocation2] sm:$0xff]
      %v347 = vld [vmem:[#allocation2 + $0x8] sm:$0xff]
      %v348 = vld [vmem:[#allocation2 + $0x10] sm:$0xff]
      %v349 = vld [vmem:[#allocation2 + $0x18] sm:$0xff]
      %v350 = vld [vmem:[#allocation2 + $0x20] sm:$0xff]
      %v351 = vld [vmem:[#allocation2 + $0x28] sm:$0xff]
      %v352 = vld [vmem:[#allocation2 + $0x30] sm:$0xff]
      %v353 = vld [vmem:[#allocation2 + $0x38] sm:$0xff]
      %v354 = vld [vmem:[#allocation2 + $0x40] sm:$0xff]
      %v355 = vld [vmem:[#allocation2 + $0x48] sm:$0xff]
      %v356 = vld [vmem:[#allocation2 + $0x50] sm:$0xff]
      %v357 = vld [vmem:[#allocation2 + $0x58] sm:$0xff]
      %v358 = vld [vmem:[#allocation2 + $0x60] sm:$0xff]
      %v359 = vld [vmem:[#allocation2 + $0x68] sm:$0xff]
      %v360 = vld [vmem:[#allocation2 + $0x70] sm:$0xff]
      %v361 = vld [vmem:[#allocation2 + $0x78] sm:$0xff]
      %v362 = vld [vmem:[#allocation2 + $0x80] sm:$0xff]
      %v363 = vld [vmem:[#allocation2 + $0x88] sm:$0xff]
      %v364 = vld [vmem:[#allocation2 + $0x90] sm:$0xff]
      %v365 = vld [vmem:[#allocation2 + $0x98] sm:$0xff]
      %v366 = vld [vmem:[#allocation2 + $0xa0] sm:$0xff]
      %v367 = vld [vmem:[#allocation2 + $0xa8] sm:$0xff]
      %v368 = vld [vmem:[#allocation2 + $0xb0] sm:$0xff]
      %v369 = vld [vmem:[#allocation2 + $0xb8] sm:$0xff]
      %v370 = vld [vmem:[#allocation2 + $0xc0] sm:$0xff]
      %v371 = vld [vmem:[#allocation2 + $0xc8] sm:$0xff]
      %v372 = vld [vmem:[#allocation2 + $0xd0] sm:$0xff]
      %v373 = vld [vmem:[#allocation2 + $0xd8] sm:$0xff]
      %v374 = vld [vmem:[#allocation2 + $0xe0] sm:$0xff]
      %v375 = vld [vmem:[#allocation2 + $0xe8] sm:$0xff]
      %v376 = vld [vmem:[#allocation2 + $0xf0] sm:$0xff]
      %v377 = vld [vmem:[#allocation2 + $0xf8] sm:$0xff]
      %v378 = vld [vmem:[#allocation2 + $0x100] sm:$0xff]
      %v379 = vld [vmem:[#allocation2 + $0x108] sm:$0xff]
      %v380 = vld [vmem:[#allocation2 + $0x110] sm:$0xff]
      %v381 = vld [vmem:[#allocation2 + $0x118] sm:$0xff]
      %v382 = vld [vmem:[#allocation2 + $0x120] sm:$0xff]
      %v383 = vld [vmem:[#allocation2 + $0x128] sm:$0xff]
      %v384 = vld [vmem:[#allocation2 + $0x130] sm:$0xff]
      %v385 = vld [vmem:[#allocation2 + $0x138] sm:$0xff]
      %v386 = vld [vmem:[#allocation2 + $0x140] sm:$0xff]
      %v387 = vld [vmem:[#allocation2 + $0x148] sm:$0xff]
      %v388 = vld [vmem:[#allocation2 + $0x150] sm:$0xff]
      %v389 = vld [vmem:[#allocation2 + $0x158] sm:$0xff]
      %v390 = vld [vmem:[#allocation2 + $0x160] sm:$0xff]
      %v391 = vld [vmem:[#allocation2 + $0x168] sm:$0xff]
      %v392 = vld [vmem:[#allocation2 + $0x170] sm:$0xff]
      %v393 = vld [vmem:[#allocation2 + $0x178] sm:$0xff]
      %v395 = vsel %vm309, %v346, 0
      %v398 = vsel %vm309, %v347, 0
      %v401 = vsel %vm309, %v348, 0
      %v404 = vsel %vm309, %v349, 0
      %v407 = vsel %vm309, %v350, 0
      %v410 = vsel %vm309, %v351, 0
      %v413 = vsel %vm309, %v352, 0
      %v416 = vsel %vm309, %v353, 0
      %v419 = vsel %vm309, %v354, 0
      %v422 = vsel %vm309, %v355, 0
      %v425 = vsel %vm309, %v356, 0
      %v428 = vsel %vm309, %v357, 0
      %v431 = vsel %vm309, %v358, 0
      %v434 = vsel %vm309, %v359, 0
      %v437 = vsel %vm309, %v360, 0
      %v440 = vsel %vm309, %v361, 0
      %v443 = vsel %vm309, %v362, 0
      %v446 = vsel %vm309, %v363, 0
      %v449 = vsel %vm309, %v364, 0
      %v452 = vsel %vm309, %v365, 0
      %v455 = vsel %vm309, %v366, 0
      %v458 = vsel %vm309, %v367, 0
      %v461 = vsel %vm309, %v368, 0
      %v464 = vsel %vm309, %v369, 0
      %v467 = vsel %vm309, %v370, 0
      %v470 = vsel %vm309, %v371, 0
      %v473 = vsel %vm309, %v372, 0
      %v476 = vsel %vm309, %v373, 0
      %v479 = vsel %vm309, %v374, 0
      %v482 = vsel %vm309, %v375, 0
      %v485 = vsel %vm309, %v376, 0
      %v488 = vsel %vm309, %v377, 0
      %v491 = vsel %vm309, %v378, 0
      %v494 = vsel %vm309, %v379, 0
      %v497 = vsel %vm309, %v380, 0
      %v500 = vsel %vm309, %v381, 0
      %v503 = vsel %vm309, %v382, 0
      %v506 = vsel %vm309, %v383, 0
      %v509 = vsel %vm309, %v384, 0
      %v512 = vsel %vm309, %v385, 0
      %v515 = vsel %vm309, %v386, 0
      %v518 = vsel %vm309, %v387, 0
      %v521 = vsel %vm309, %v388, 0
      %v524 = vsel %vm309, %v389, 0
      %v527 = vsel %vm309, %v390, 0
      %v530 = vsel %vm309, %v391, 0
      %v533 = vsel %vm309, %v392, 0
      %v536 = vsel %vm309, %v393, 0
      %vm538 = vcmask 1043456
      %v540 = vsel %vm538, %v345, 0
      %542 = vmatprep.subr.mxu0 0.0
      %543 = vmatpush1.msra.mxu0 %v540
      %544 = vmatprep.subr.mxu0 0.0
      %545 = vmatpush1.msra.mxu0 0.0
      %546 = vmatprep.subr.mxu0 0.0
      %547 = vmatpush1.msra.mxu0 0.0
      %548 = vmatprep.subr.mxu0 0.0
      %549 = vmatpush1.msra.mxu0 0.0
      %550 = vmatprep.subr.mxu0 0.0
      %551 = vmatpush1.msra.mxu0 0.0
      %552 = vmatprep.subr.mxu0 0.0
      %553 = vmatpush1.msra.mxu0 0.0
      %554 = vmatprep.subr.mxu0 0.0
      %555 = vmatpush1.msra.mxu0 0.0
      %556 = vmatprep.subr.mxu0 0.0
      %557 = vmatpush1.msra.mxu0 0.0
      %558 = vmatprep.subr.mxu0 0.0
      %559 = vmatpush1.msra.mxu0 0.0
      %560 = vmatprep.subr.mxu0 0.0
      %561 = vmatpush1.msra.mxu0 0.0
      %562 = vmatprep.subr.mxu0 0.0
      %563 = vmatpush1.msra.mxu0 0.0
      %564 = vmatprep.subr.mxu0 0.0
      %565 = vmatpush1.msra.mxu0 0.0
      %566 = vmatprep.subr.mxu0 0.0
      %567 = vmatpush1.msra.mxu0 0.0
      %568 = vmatprep.subr.mxu0 0.0
      %569 = vmatpush1.msra.mxu0 0.0
      %570 = vmatprep.subr.mxu0 0.0
      %571 = vmatpush1.msra.mxu0 0.0
      %572 = vmatprep.subr.mxu0 0.0
      %573 = vmatpush1.msra.mxu0 0.0
      %574 = vmatprep.subr.mxu0 0.0
      %575 = vmatpush1.msra.mxu0 0.0
      %576 = vmatprep.subr.mxu0 0.0
      %577 = vmatpush1.msra.mxu0 0.0
      %578 = vmatprep.subr.mxu0 0.0
      %579 = vmatpush1.msra.mxu0 0.0
      %580 = vmatprep.subr.mxu0 0.0
      %581 = vmatpush1.msra.mxu0 0.0
      %582 = vmatprep.subr.mxu0 0.0
      %583 = vmatpush1.msra.mxu0 0.0
      %584 = vmatprep.subr.mxu0 0.0
      %585 = vmatpush1.msra.mxu0 0.0
      %586 = vmatprep.subr.mxu0 0.0
      %587 = vmatpush1.msra.mxu0 0.0
      %588 = vmatprep.subr.mxu0 0.0
      %589 = vmatpush1.msra.mxu0 0.0
      %590 = vmatprep.subr.mxu0 0.0
      %591 = vmatpush1.msra.mxu0 0.0
      %592 = vmatprep.subr.mxu0 0.0
      %593 = vmatpush1.msra.mxu0 0.0
      %594 = vmatprep.subr.mxu0 0.0
      %595 = vmatpush1.msra.mxu0 0.0
      %596 = vmatprep.subr.mxu0 0.0
      %597 = vmatpush1.msra.mxu0 0.0
      %598 = vmatprep.subr.mxu0 0.0
      %599 = vmatpush1.msra.mxu0 0.0
      %600 = vmatprep.subr.mxu0 0.0
      %601 = vmatpush1.msra.mxu0 0.0
      %602 = vmatprep.subr.mxu0 0.0
      %603 = vmatpush1.msra.mxu0 0.0
      %604 = vmatprep.subr.mxu0 0.0
      %605 = vmatpush1.msra.mxu0 0.0
      %606 = vmatprep.mubr.f32.mxu0 0.0
      %607 = vmatmul.mubr.f32.gmra.mrb[0].mxu0 %v395
      %v608 = vpop.f32.mrb[0].mxu0
      %v609 = vadd.f32 0.0, %v608
      %v610 = vpop.f32.mrb[0].mxu0
      %611 = vmatprep.mubr.f32.mxu0 0.0
      %612 = vmatmul.mubr.f32.gmra.mrb[0].mxu0 %v398
      %v613 = vpop.f32.mrb[0].mxu0
      %v614 = vadd.f32 0.0, %v613
      %v615 = vpop.f32.mrb[0].mxu0
      %616 = vmatprep.mubr.f32.mxu0 0.0
      %617 = vmatmul.mubr.f32.gmra.mrb[0].mxu0 %v401
      %v618 = vpop.f32.mrb[0].mxu0
      %v619 = vadd.f32 0.0, %v618
      %v620 = vpop.f32.mrb[0].mxu0
      %621 = vmatprep.mubr.f32.mxu0 0.0
      %622 = vmatmul.mubr.f32.gmra.mrb[0].mxu0 %v404
      %v623 = vpop.f32.mrb[0].mxu0
      %v624 = vadd.f32 0.0, %v623
      %v625 = vpop.f32.mrb[0].mxu0
      %626 = vmatprep.mubr.f32.mxu0 0.0
      %627 = vmatmul.mubr.f32.gmra.mrb[0].mxu0 %v407
      %v628 = vpop.f32.mrb[0].mxu0
      %v629 = vadd.f32 0.0, %v628
      %v630 = vpop.f32.mrb[0].mxu0
      %631 = vmatprep.mubr.f32.mxu0 0.0
      %632 = vmatmul.mubr.f32.gmra.mrb[0].mxu0 %v410
      %v633 = vpop.f32.mrb[0].mxu0
      %v634 = vadd.f32 0.0, %v633
      %v635 = vpop.f32.mrb[0].mxu0
      %636 = vmatprep.mubr.f32.mxu0 0.0
      %637 = vmatmul.mubr.f32.gmra.mrb[0].mxu0 %v413
      %v638 = vpop.f32.mrb[0].mxu0
      %v639 = vadd.f32 0.0, %v638
      %v640 = vpop.f32.mrb[0].mxu0
      %641 = vmatprep.mubr.f32.mxu0 0.0
      %642 = vmatmul.mubr.f32.gmra.mrb[0].mxu0 %v416
      %v643 = vpop.f32.mrb[0].mxu0
      %v644 = vadd.f32 0.0, %v643
      %v645 = vpop.f32.mrb[0].mxu0
      %646 = vmatprep.mubr.f32.mxu0 0.0
      %647 = vmatmul.mubr.f32.gmra.mrb[0].mxu0 %v419
      %v648 = vpop.f32.mrb[0].mxu0
      %v649 = vadd.f32 0.0, %v648
      %v650 = vpop.f32.mrb[0].mxu0
      %651 = vmatprep.mubr.f32.mxu0 0.0
      %652 = vmatmul.mubr.f32.gmra.mrb[0].mxu0 %v422
      %v653 = vpop.f32.mrb[0].mxu0
      %v654 = vadd.f32 0.0, %v653
      %v655 = vpop.f32.mrb[0].mxu0
      %656 = vmatprep.mubr.f32.mxu0 0.0
      %657 = vmatmul.mubr.f32.gmra.mrb[0].mxu0 %v425
      %v658 = vpop.f32.mrb[0].mxu0
      %v659 = vadd.f32 0.0, %v658
      %v660 = vpop.f32.mrb[0].mxu0
      %661 = vmatprep.mubr.f32.mxu0 0.0
      %662 = vmatmul.mubr.f32.gmra.mrb[0].mxu0 %v428
      %v663 = vpop.f32.mrb[0].mxu0
      %v664 = vadd.f32 0.0, %v663
      %v665 = vpop.f32.mrb[0].mxu0
      %666 = vmatprep.mubr.f32.mxu0 0.0
      %667 = vmatmul.mubr.f32.gmra.mrb[0].mxu0 %v431
      %v668 = vpop.f32.mrb[0].mxu0
      %v669 = vadd.f32 0.0, %v668
      %v670 = vpop.f32.mrb[0].mxu0
      %671 = vmatprep.mubr.f32.mxu0 0.0
      %672 = vmatmul.mubr.f32.gmra.mrb[0].mxu0 %v434
      %v673 = vpop.f32.mrb[0].mxu0
      %v674 = vadd.f32 0.0, %v673
      %v675 = vpop.f32.mrb[0].mxu0
      %676 = vmatprep.mubr.f32.mxu0 0.0
      %677 = vmatmul.mubr.f32.gmra.mrb[0].mxu0 %v437
      %v678 = vpop.f32.mrb[0].mxu0
      %v679 = vadd.f32 0.0, %v678
      %v680 = vpop.f32.mrb[0].mxu0
      %681 = vmatprep.mubr.f32.mxu0 0.0
      %682 = vmatmul.mubr.f32.gmra.mrb[0].mxu0 %v440
      %v683 = vpop.f32.mrb[0].mxu0
      %v684 = vadd.f32 0.0, %v683
      %v685 = vpop.f32.mrb[0].mxu0
      %686 = vmatprep.mubr.f32.mxu0 0.0
      %687 = vmatmul.mubr.f32.gmra.mrb[0].mxu0 %v443
      %v688 = vpop.f32.mrb[0].mxu0
      %v689 = vadd.f32 0.0, %v688
      %v690 = vpop.f32.mrb[0].mxu0
      %691 = vmatprep.mubr.f32.mxu0 0.0
      %692 = vmatmul.mubr.f32.gmra.mrb[0].mxu0 %v446
      %v693 = vpop.f32.mrb[0].mxu0
      %v694 = vadd.f32 0.0, %v693
      %v695 = vpop.f32.mrb[0].mxu0
      %696 = vmatprep.mubr.f32.mxu0 0.0
      %697 = vmatmul.mubr.f32.gmra.mrb[0].mxu0 %v449
      %v698 = vpop.f32.mrb[0].mxu0
      %v699 = vadd.f32 0.0, %v698
      %v700 = vpop.f32.mrb[0].mxu0
      %701 = vmatprep.mubr.f32.mxu0 0.0
      %702 = vmatmul.mubr.f32.gmra.mrb[0].mxu0 %v452
      %v703 = vpop.f32.mrb[0].mxu0
      %v704 = vadd.f32 0.0, %v703
      %v705 = vpop.f32.mrb[0].mxu0
      %706 = vmatprep.mubr.f32.mxu0 0.0
      %707 = vmatmul.mubr.f32.gmra.mrb[0].mxu0 %v455
      %v708 = vpop.f32.mrb[0].mxu0
      %v709 = vadd.f32 0.0, %v708
      %v710 = vpop.f32.mrb[0].mxu0
      %711 = vmatprep.mubr.f32.mxu0 0.0
      %712 = vmatmul.mubr.f32.gmra.mrb[0].mxu0 %v458
      %v713 = vpop.f32.mrb[0].mxu0
      %v714 = vadd.f32 0.0, %v713
      %v715 = vpop.f32.mrb[0].mxu0
      %716 = vmatprep.mubr.f32.mxu0 0.0
      %717 = vmatmul.mubr.f32.gmra.mrb[0].mxu0 %v461
      %v718 = vpop.f32.mrb[0].mxu0
      %v719 = vadd.f32 0.0, %v718
      %v720 = vpop.f32.mrb[0].mxu0
      %721 = vmatprep.mubr.f32.mxu0 0.0
      %722 = vmatmul.mubr.f32.gmra.mrb[0].mxu0 %v464
      %v723 = vpop.f32.mrb[0].mxu0
      %v724 = vadd.f32 0.0, %v723
      %v725 = vpop.f32.mrb[0].mxu0
      %726 = vmatprep.mubr.f32.mxu0 0.0
      %727 = vmatmul.mubr.f32.gmra.mrb[0].mxu0 %v467
      %v728 = vpop.f32.mrb[0].mxu0
      %v729 = vadd.f32 0.0, %v728
      %v730 = vpop.f32.mrb[0].mxu0
      %731 = vmatprep.mubr.f32.mxu0 0.0
      %732 = vmatmul.mubr.f32.gmra.mrb[0].mxu0 %v470
      %v733 = vpop.f32.mrb[0].mxu0
      %v734 = vadd.f32 0.0, %v733
      %v735 = vpop.f32.mrb[0].mxu0
      %736 = vmatprep.mubr.f32.mxu0 0.0
      %737 = vmatmul.mubr.f32.gmra.mrb[0].mxu0 %v473
      %v738 = vpop.f32.mrb[0].mxu0
      %v739 = vadd.f32 0.0, %v738
      %v740 = vpop.f32.mrb[0].mxu0
      %741 = vmatprep.mubr.f32.mxu0 0.0
      %742 = vmatmul.mubr.f32.gmra.mrb[0].mxu0 %v476
      %v743 = vpop.f32.mrb[0].mxu0
      %v744 = vadd.f32 0.0, %v743
      %v745 = vpop.f32.mrb[0].mxu0
      %746 = vmatprep.mubr.f32.mxu0 0.0
      %747 = vmatmul.mubr.f32.gmra.mrb[0].mxu0 %v479
      %v748 = vpop.f32.mrb[0].mxu0
      %v749 = vadd.f32 0.0, %v748
      %v750 = vpop.f32.mrb[0].mxu0
      %751 = vmatprep.mubr.f32.mxu0 0.0
      %752 = vmatmul.mubr.f32.gmra.mrb[0].mxu0 %v482
      %v753 = vpop.f32.mrb[0].mxu0
      %v754 = vadd.f32 0.0, %v753
      %v755 = vpop.f32.mrb[0].mxu0
      %756 = vmatprep.mubr.f32.mxu0 0.0
      %757 = vmatmul.mubr.f32.gmra.mrb[0].mxu0 %v485
      %v758 = vpop.f32.mrb[0].mxu0
      %v759 = vadd.f32 0.0, %v758
      %v760 = vpop.f32.mrb[0].mxu0
      %761 = vmatprep.mubr.f32.mxu0 0.0
      %762 = vmatmul.mubr.f32.gmra.mrb[0].mxu0 %v488
      %v763 = vpop.f32.mrb[0].mxu0
      %v764 = vadd.f32 0.0, %v763
      %v765 = vpop.f32.mrb[0].mxu0
      %766 = vmatprep.mubr.f32.mxu0 0.0
      %767 = vmatmul.mubr.f32.gmra.mrb[0].mxu0 %v491
      %v768 = vpop.f32.mrb[0].mxu0
      %v769 = vadd.f32 0.0, %v768
      %v770 = vpop.f32.mrb[0].mxu0
      %771 = vmatprep.mubr.f32.mxu0 0.0
      %772 = vmatmul.mubr.f32.gmra.mrb[0].mxu0 %v494
      %v773 = vpop.f32.mrb[0].mxu0
      %v774 = vadd.f32 0.0, %v773
      %v775 = vpop.f32.mrb[0].mxu0
      %776 = vmatprep.mubr.f32.mxu0 0.0
      %777 = vmatmul.mubr.f32.gmra.mrb[0].mxu0 %v497
      %v778 = vpop.f32.mrb[0].mxu0
      %v779 = vadd.f32 0.0, %v778
      %v780 = vpop.f32.mrb[0].mxu0
      %781 = vmatprep.mubr.f32.mxu0 0.0
      %782 = vmatmul.mubr.f32.gmra.mrb[0].mxu0 %v500
      %v783 = vpop.f32.mrb[0].mxu0
      %v784 = vadd.f32 0.0, %v783
      %v785 = vpop.f32.mrb[0].mxu0
      %786 = vmatprep.mubr.f32.mxu0 0.0
      %787 = vmatmul.mubr.f32.gmra.mrb[0].mxu0 %v503
      %v788 = vpop.f32.mrb[0].mxu0
      %v789 = vadd.f32 0.0, %v788
      %v790 = vpop.f32.mrb[0].mxu0
      %791 = vmatprep.mubr.f32.mxu0 0.0
      %792 = vmatmul.mubr.f32.gmra.mrb[0].mxu0 %v506
      %v793 = vpop.f32.mrb[0].mxu0
      %v794 = vadd.f32 0.0, %v793
      %v795 = vpop.f32.mrb[0].mxu0
      %796 = vmatprep.mubr.f32.mxu0 0.0
      %797 = vmatmul.mubr.f32.gmra.mrb[0].mxu0 %v509
      %v798 = vpop.f32.mrb[0].mxu0
      %v799 = vadd.f32 0.0, %v798
      %v800 = vpop.f32.mrb[0].mxu0
      %801 = vmatprep.mubr.f32.mxu0 0.0
      %802 = vmatmul.mubr.f32.gmra.mrb[0].mxu0 %v512
      %v803 = vpop.f32.mrb[0].mxu0
      %v804 = vadd.f32 0.0, %v803
      %v805 = vpop.f32.mrb[0].mxu0
      %806 = vmatprep.mubr.f32.mxu0 0.0
      %807 = vmatmul.mubr.f32.gmra.mrb[0].mxu0 %v515
      %v808 = vpop.f32.mrb[0].mxu0
      %v809 = vadd.f32 0.0, %v808
      %v810 = vpop.f32.mrb[0].mxu0
      %811 = vmatprep.mubr.f32.mxu0 0.0
      %812 = vmatmul.mubr.f32.gmra.mrb[0].mxu0 %v518
      %v813 = vpop.f32.mrb[0].mxu0
      %v814 = vadd.f32 0.0, %v813
      %v815 = vpop.f32.mrb[0].mxu0
      %816 = vmatprep.mubr.f32.mxu0 0.0
      %817 = vmatmul.mubr.f32.gmra.mrb[0].mxu0 %v521
      %v818 = vpop.f32.mrb[0].mxu0
      %v819 = vadd.f32 0.0, %v818
      %v820 = vpop.f32.mrb[0].mxu0
      %821 = vmatprep.mubr.f32.mxu0 0.0
      %822 = vmatmul.mubr.f32.gmra.mrb[0].mxu0 %v524
      %v823 = vpop.f32.mrb[0].mxu0
      %v824 = vadd.f32 0.0, %v823
      %v825 = vpop.f32.mrb[0].mxu0
      %826 = vmatprep.mubr.f32.mxu0 0.0
      %827 = vmatmul.mubr.f32.gmra.mrb[0].mxu0 %v527
      %v828 = vpop.f32.mrb[0].mxu0
      %v829 = vadd.f32 0.0, %v828
      %v830 = vpop.f32.mrb[0].mxu0
      %831 = vmatprep.mubr.f32.mxu0 0.0
      %832 = vmatmul.mubr.f32.gmra.mrb[0].mxu0 %v530
      %v833 = vpop.f32.mrb[0].mxu0
      %v834 = vadd.f32 0.0, %v833
      %v835 = vpop.f32.mrb[0].mxu0
      %836 = vmatprep.mubr.f32.mxu0 0.0
      %837 = vmatmul.mubr.f32.gmra.mrb[0].mxu0 %v533
      %v838 = vpop.f32.mrb[0].mxu0
      %v839 = vadd.f32 0.0, %v838
      %v840 = vpop.f32.mrb[0].mxu0
      %841 = vmatprep.mubr.f32.mxu0 0.0
      %842 = vmatmul.mubr.f32.gmra.mrb[0].mxu0 %v536
      %v843 = vpop.f32.mrb[0].mxu0
      %v844 = vadd.f32 0.0, %v843
      %v845 = vpop.f32.mrb[0].mxu0
      %846 = vdwg.mxu0
      %vm879 = vcmask 1040384
      %v880 = vrot.slane %v609, 7
      %v881 = vrot.slane %v614, 7
      %v882 = vsel %vm879, %v880, %v881
      %v883 = vrot.slane %v624, 7
      %v884 = vrot.slane %v629, 7
      %v885 = vsel %vm879, %v883, %v884
      %v886 = vrot.slane %v639, 7
      %v887 = vrot.slane %v644, 7
      %v888 = vsel %vm879, %v886, %v887
      %v889 = vrot.slane %v654, 7
      %v890 = vrot.slane %v659, 7
      %v891 = vsel %vm879, %v889, %v890
      %v892 = vrot.slane %v669, 7
      %v893 = vrot.slane %v674, 7
      %v894 = vsel %vm879, %v892, %v893
      %v895 = vrot.slane %v684, 7
      %v896 = vrot.slane %v689, 7
      %v897 = vsel %vm879, %v895, %v896
      %v898 = vrot.slane %v699, 7
      %v899 = vrot.slane %v704, 7
      %v900 = vsel %vm879, %v898, %v899
      %v901 = vrot.slane %v714, 7
      %v902 = vrot.slane %v719, 7
      %v903 = vsel %vm879, %v901, %v902
      %v904 = vrot.slane %v729, 7
      %v905 = vrot.slane %v734, 7
      %v906 = vsel %vm879, %v904, %v905
      %v907 = vrot.slane %v744, 7
      %v908 = vrot.slane %v749, 7
      %v909 = vsel %vm879, %v907, %v908
      %v910 = vrot.slane %v759, 7
      %v911 = vrot.slane %v764, 7
      %v912 = vsel %vm879, %v910, %v911
      %v913 = vrot.slane %v774, 7
      %v914 = vrot.slane %v779, 7
      %v915 = vsel %vm879, %v913, %v914
      %v916 = vrot.slane %v789, 7
      %v917 = vrot.slane %v794, 7
      %v918 = vsel %vm879, %v916, %v917
      %v919 = vrot.slane %v804, 7
      %v920 = vrot.slane %v809, 7
      %v921 = vsel %vm879, %v919, %v920
      %v922 = vrot.slane %v819, 7
      %v923 = vrot.slane %v824, 7
      %v924 = vsel %vm879, %v922, %v923
      %v925 = vrot.slane %v834, 7
      %v926 = vrot.slane %v839, 7
      %v927 = vsel %vm879, %v925, %v926
      %v960 = vsel %vm879, 0.0, %v880
      %v961 = vsel %vm879, 0.0, %v883
      %v962 = vsel %vm879, 0.0, %v886
      %v963 = vsel %vm879, 0.0, %v889
      %v964 = vsel %vm879, 0.0, %v892
      %v965 = vsel %vm879, 0.0, %v895
      %v966 = vsel %vm879, 0.0, %v898
      %v967 = vsel %vm879, 0.0, %v901
      %v968 = vsel %vm879, 0.0, %v904
      %v969 = vsel %vm879, 0.0, %v907
      %v970 = vsel %vm879, 0.0, %v910
      %v971 = vsel %vm879, 0.0, %v913
      %v972 = vsel %vm879, 0.0, %v916
      %v973 = vsel %vm879, 0.0, %v919
      %v974 = vsel %vm879, 0.0, %v922
      %v975 = vsel %vm879, 0.0, %v925
      %976 = vrot.lane.b32.xlu0 %v609, 124
      %v977 = vpop.permute.xlu0 %976
      %978 = vrot.lane.b32.xlu0 %v614, 124
      %v979 = vpop.permute.xlu0 %978
      %980 = vrot.lane.b32.xlu0 %v624, 124
      %v981 = vpop.permute.xlu0 %980
      %982 = vrot.lane.b32.xlu0 %v629, 124
      %v983 = vpop.permute.xlu0 %982
      %984 = vrot.lane.b32.xlu0 %v639, 124
      %v985 = vpop.permute.xlu0 %984
      %986 = vrot.lane.b32.xlu0 %v644, 124
      %v987 = vpop.permute.xlu0 %986
      %988 = vrot.lane.b32.xlu0 %v654, 124
      %v989 = vpop.permute.xlu0 %988
      %990 = vrot.lane.b32.xlu0 %v659, 124
      %v991 = vpop.permute.xlu0 %990
      %992 = vrot.lane.b32.xlu0 %v669, 124
      %v993 = vpop.permute.xlu0 %992
      %994 = vrot.lane.b32.xlu0 %v674, 124
      %v995 = vpop.permute.xlu0 %994
      %996 = vrot.lane.b32.xlu0 %v684, 124
      %v997 = vpop.permute.xlu0 %996
      %998 = vrot.lane.b32.xlu0 %v689, 124
      %v999 = vpop.permute.xlu0 %998
      %1000 = vrot.lane.b32.xlu0 %v699, 124
      %v1001 = vpop.permute.xlu0 %1000
      %1002 = vrot.lane.b32.xlu0 %v704, 124
      %v1003 = vpop.permute.xlu0 %1002
      %1004 = vrot.lane.b32.xlu0 %v714, 124
      %v1005 = vpop.permute.xlu0 %1004
      %1006 = vrot.lane.b32.xlu0 %v719, 124
      %v1007 = vpop.permute.xlu0 %1006
      %1008 = vrot.lane.b32.xlu0 %v729, 124
      %v1009 = vpop.permute.xlu0 %1008
      %1010 = vrot.lane.b32.xlu0 %v734, 124
      %v1011 = vpop.permute.xlu0 %1010
      %1012 = vrot.lane.b32.xlu0 %v744, 124
      %v1013 = vpop.permute.xlu0 %1012
      %1014 = vrot.lane.b32.xlu0 %v749, 124
      %v1015 = vpop.permute.xlu0 %1014
      %1016 = vrot.lane.b32.xlu0 %v759, 124
      %v1017 = vpop.permute.xlu0 %1016
      %1018 = vrot.lane.b32.xlu0 %v764, 124
      %v1019 = vpop.permute.xlu0 %1018
      %1020 = vrot.lane.b32.xlu0 %v774, 124
      %v1021 = vpop.permute.xlu0 %1020
      %1022 = vrot.lane.b32.xlu0 %v779, 124
      %v1023 = vpop.permute.xlu0 %1022
      %1024 = vrot.lane.b32.xlu0 %v789, 124
      %v1025 = vpop.permute.xlu0 %1024
      %1026 = vrot.lane.b32.xlu0 %v794, 124
      %v1027 = vpop.permute.xlu0 %1026
      %1028 = vrot.lane.b32.xlu0 %v804, 124
      %v1029 = vpop.permute.xlu0 %1028
      %1030 = vrot.lane.b32.xlu0 %v809, 124
      %v1031 = vpop.permute.xlu0 %1030
      %1032 = vrot.lane.b32.xlu0 %v819, 124
      %v1033 = vpop.permute.xlu0 %1032
      %1034 = vrot.lane.b32.xlu0 %v824, 124
      %v1035 = vpop.permute.xlu0 %1034
      %1036 = vrot.lane.b32.xlu0 %v834, 124
      %v1037 = vpop.permute.xlu0 %1036
      %1038 = vrot.lane.b32.xlu0 %v839, 124
      %v1039 = vpop.permute.xlu0 %1038
      %v1072 = vadd.f32 %v960, %v977
      %v1073 = vadd.f32 %v882, %v979
      %v1074 = vadd.f32 %v961, %v981
      %v1075 = vadd.f32 %v885, %v983
      %v1076 = vadd.f32 %v962, %v985
      %v1077 = vadd.f32 %v888, %v987
      %v1078 = vadd.f32 %v963, %v989
      %v1079 = vadd.f32 %v891, %v991
      %v1080 = vadd.f32 %v964, %v993
      %v1081 = vadd.f32 %v894, %v995
      %v1082 = vadd.f32 %v965, %v997
      %v1083 = vadd.f32 %v897, %v999
      %v1084 = vadd.f32 %v966, %v1001
      %v1085 = vadd.f32 %v900, %v1003
      %v1086 = vadd.f32 %v967, %v1005
      %v1087 = vadd.f32 %v903, %v1007
      %v1088 = vadd.f32 %v968, %v1009
      %v1089 = vadd.f32 %v906, %v1011
      %v1090 = vadd.f32 %v969, %v1013
      %v1091 = vadd.f32 %v909, %v1015
      %v1092 = vadd.f32 %v970, %v1017
      %v1093 = vadd.f32 %v912, %v1019
      %v1094 = vadd.f32 %v971, %v1021
      %v1095 = vadd.f32 %v915, %v1023
      %v1096 = vadd.f32 %v972, %v1025
      %v1097 = vadd.f32 %v918, %v1027
      %v1098 = vadd.f32 %v973, %v1029
      %v1099 = vadd.f32 %v921, %v1031
      %v1100 = vadd.f32 %v974, %v1033
      %v1101 = vadd.f32 %v924, %v1035
      %v1102 = vadd.f32 %v975, %v1037
      %v1103 = vadd.f32 %v927, %v1039
      %vm1120 = vcmask 1046528
      %v1121 = vrot.slane %v609, 1
      %v1122 = vrot.slane %v614, 1
      %v1123 = vsel %vm1120, %v1121, %v1122
      %v1124 = vrot.slane %v619, 1
      %v1125 = vsel %vm1120, %v1122, %v1124
      %v1126 = vrot.slane %v624, 1
      %v1127 = vrot.slane %v629, 1
      %v1128 = vsel %vm1120, %v1126, %v1127
      %v1129 = vrot.slane %v634, 1
      %v1130 = vsel %vm1120, %v1127, %v1129
      %v1131 = vrot.slane %v639, 1
      %v1132 = vrot.slane %v644, 1
      %v1133 = vsel %vm1120, %v1131, %v1132
      %v1134 = vrot.slane %v649, 1
      %v1135 = vsel %vm1120, %v1132, %v1134
      %v1136 = vrot.slane %v654, 1
      %v1137 = vrot.slane %v659, 1
      %v1138 = vsel %vm1120, %v1136, %v1137
      %v1139 = vrot.slane %v664, 1
      %v1140 = vsel %vm1120, %v1137, %v1139
      %v1141 = vrot.slane %v669, 1
      %v1142 = vrot.slane %v674, 1
      %v1143 = vsel %vm1120, %v1141, %v1142
      %v1144 = vrot.slane %v679, 1
      %v1145 = vsel %vm1120, %v1142, %v1144
      %v1146 = vrot.slane %v684, 1
      %v1147 = vrot.slane %v689, 1
      %v1148 = vsel %vm1120, %v1146, %v1147
      %v1149 = vrot.slane %v694, 1
      %v1150 = vsel %vm1120, %v1147, %v1149
      %v1151 = vrot.slane %v699, 1
      %v1152 = vrot.slane %v704, 1
      %v1153 = vsel %vm1120, %v1151, %v1152
      %v1154 = vrot.slane %v709, 1
      %v1155 = vsel %vm1120, %v1152, %v1154
      %v1156 = vrot.slane %v714, 1
      %v1157 = vrot.slane %v719, 1
      %v1158 = vsel %vm1120, %v1156, %v1157
      %v1159 = vrot.slane %v724, 1
      %v1160 = vsel %vm1120, %v1157, %v1159
      %v1161 = vrot.slane %v729, 1
      %v1162 = vrot.slane %v734, 1
      %v1163 = vsel %vm1120, %v1161, %v1162
      %v1164 = vrot.slane %v739, 1
      %v1165 = vsel %vm1120, %v1162, %v1164
      %v1166 = vrot.slane %v744, 1
      %v1167 = vrot.slane %v749, 1
      %v1168 = vsel %vm1120, %v1166, %v1167
      %v1169 = vrot.slane %v754, 1
      %v1170 = vsel %vm1120, %v1167, %v1169
      %v1171 = vrot.slane %v759, 1
      %v1172 = vrot.slane %v764, 1
      %v1173 = vsel %vm1120, %v1171, %v1172
      %v1174 = vrot.slane %v769, 1
      %v1175 = vsel %vm1120, %v1172, %v1174
      %v1176 = vrot.slane %v774, 1
      %v1177 = vrot.slane %v779, 1
      %v1178 = vsel %vm1120, %v1176, %v1177
      %v1179 = vrot.slane %v784, 1
      %v1180 = vsel %vm1120, %v1177, %v1179
      %v1181 = vrot.slane %v789, 1
      %v1182 = vrot.slane %v794, 1
      %v1183 = vsel %vm1120, %v1181, %v1182
      %v1184 = vrot.slane %v799, 1
      %v1185 = vsel %vm1120, %v1182, %v1184
      %v1186 = vrot.slane %v804, 1
      %v1187 = vrot.slane %v809, 1
      %v1188 = vsel %vm1120, %v1186, %v1187
      %v1189 = vrot.slane %v814, 1
      %v1190 = vsel %vm1120, %v1187, %v1189
      %v1191 = vrot.slane %v819, 1
      %v1192 = vrot.slane %v824, 1
      %v1193 = vsel %vm1120, %v1191, %v1192
      %v1194 = vrot.slane %v829, 1
      %v1195 = vsel %vm1120, %v1192, %v1194
      %v1196 = vrot.slane %v834, 1
      %v1197 = vrot.slane %v839, 1
      %v1198 = vsel %vm1120, %v1196, %v1197
      %v1199 = vrot.slane %v844, 1
      %v1200 = vsel %vm1120, %v1197, %v1199
      %1201 = vrot.lane.b32.xlu0 %v1123, 120
      %v1202 = vpop.permute.xlu0 %1201
      %1203 = vrot.lane.b32.xlu0 %v1125, 120
      %v1204 = vpop.permute.xlu0 %1203
      %1205 = vrot.lane.b32.xlu0 %v1128, 120
      %v1206 = vpop.permute.xlu0 %1205
      %1207 = vrot.lane.b32.xlu0 %v1130, 120
      %v1208 = vpop.permute.xlu0 %1207
      %1209 = vrot.lane.b32.xlu0 %v1133, 120
      %v1210 = vpop.permute.xlu0 %1209
      %1211 = vrot.lane.b32.xlu0 %v1135, 120
      %v1212 = vpop.permute.xlu0 %1211
      %1213 = vrot.lane.b32.xlu0 %v1138, 120
      %v1214 = vpop.permute.xlu0 %1213
      %1215 = vrot.lane.b32.xlu0 %v1140, 120
      %v1216 = vpop.permute.xlu0 %1215
      %1217 = vrot.lane.b32.xlu0 %v1143, 120
      %v1218 = vpop.permute.xlu0 %1217
      %1219 = vrot.lane.b32.xlu0 %v1145, 120
      %v1220 = vpop.permute.xlu0 %1219
      %1221 = vrot.lane.b32.xlu0 %v1148, 120
      %v1222 = vpop.permute.xlu0 %1221
      %1223 = vrot.lane.b32.xlu0 %v1150, 120
      %v1224 = vpop.permute.xlu0 %1223
      %1225 = vrot.lane.b32.xlu0 %v1153, 120
      %v1226 = vpop.permute.xlu0 %1225
      %1227 = vrot.lane.b32.xlu0 %v1155, 120
      %v1228 = vpop.permute.xlu0 %1227
      %1229 = vrot.lane.b32.xlu0 %v1158, 120
      %v1230 = vpop.permute.xlu0 %1229
      %1231 = vrot.lane.b32.xlu0 %v1160, 120
      %v1232 = vpop.permute.xlu0 %1231
      %1233 = vrot.lane.b32.xlu0 %v1163, 120
      %v1234 = vpop.permute.xlu0 %1233
      %1235 = vrot.lane.b32.xlu0 %v1165, 120
      %v1236 = vpop.permute.xlu0 %1235
      %1237 = vrot.lane.b32.xlu0 %v1168, 120
      %v1238 = vpop.permute.xlu0 %1237
      %1239 = vrot.lane.b32.xlu0 %v1170, 120
      %v1240 = vpop.permute.xlu0 %1239
      %1241 = vrot.lane.b32.xlu0 %v1173, 120
      %v1242 = vpop.permute.xlu0 %1241
      %1243 = vrot.lane.b32.xlu0 %v1175, 120
      %v1244 = vpop.permute.xlu0 %1243
      %1245 = vrot.lane.b32.xlu0 %v1178, 120
      %v1246 = vpop.permute.xlu0 %1245
      %1247 = vrot.lane.b32.xlu0 %v1180, 120
      %v1248 = vpop.permute.xlu0 %1247
      %1249 = vrot.lane.b32.xlu0 %v1183, 120
      %v1250 = vpop.permute.xlu0 %1249
      %1251 = vrot.lane.b32.xlu0 %v1185, 120
      %v1252 = vpop.permute.xlu0 %1251
      %1253 = vrot.lane.b32.xlu0 %v1188, 120
      %v1254 = vpop.permute.xlu0 %1253
      %1255 = vrot.lane.b32.xlu0 %v1190, 120
      %v1256 = vpop.permute.xlu0 %1255
      %1257 = vrot.lane.b32.xlu0 %v1193, 120
      %v1258 = vpop.permute.xlu0 %1257
      %1259 = vrot.lane.b32.xlu0 %v1195, 120
      %v1260 = vpop.permute.xlu0 %1259
      %1261 = vrot.lane.b32.xlu0 %v1198, 120
      %v1262 = vpop.permute.xlu0 %1261
      %1263 = vrot.lane.b32.xlu0 %v1200, 120
      %v1264 = vpop.permute.xlu0 %1263
      %v1297 = vadd.f32 %v1072, %v1202
      %v1298 = vadd.f32 %v1073, %v1204
      %v1299 = vadd.f32 %v1074, %v1206
      %v1300 = vadd.f32 %v1075, %v1208
      %v1301 = vadd.f32 %v1076, %v1210
      %v1302 = vadd.f32 %v1077, %v1212
      %v1303 = vadd.f32 %v1078, %v1214
      %v1304 = vadd.f32 %v1079, %v1216
      %v1305 = vadd.f32 %v1080, %v1218
      %v1306 = vadd.f32 %v1081, %v1220
      %v1307 = vadd.f32 %v1082, %v1222
      %v1308 = vadd.f32 %v1083, %v1224
      %v1309 = vadd.f32 %v1084, %v1226
      %v1310 = vadd.f32 %v1085, %v1228
      %v1311 = vadd.f32 %v1086, %v1230
      %v1312 = vadd.f32 %v1087, %v1232
      %v1313 = vadd.f32 %v1088, %v1234
      %v1314 = vadd.f32 %v1089, %v1236
      %v1315 = vadd.f32 %v1090, %v1238
      %v1316 = vadd.f32 %v1091, %v1240
      %v1317 = vadd.f32 %v1092, %v1242
      %v1318 = vadd.f32 %v1093, %v1244
      %v1319 = vadd.f32 %v1094, %v1246
      %v1320 = vadd.f32 %v1095, %v1248
      %v1321 = vadd.f32 %v1096, %v1250
      %v1322 = vadd.f32 %v1097, %v1252
      %v1323 = vadd.f32 %v1098, %v1254
      %v1324 = vadd.f32 %v1099, %v1256
      %v1325 = vadd.f32 %v1100, %v1258
      %v1326 = vadd.f32 %v1101, %v1260
      %v1327 = vadd.f32 %v1102, %v1262
      %v1328 = vadd.f32 %v1103, %v1264
      %s1329 = sadd.s32 %s342, 1
      %s1330 = smul.u32 %s1329, 4
      %s1331 = scalar_lea.vmem %s1, %s1330
      %v1332 = vld [vmem:[%s1331] sm:$0xf]
      %v1333 = vld [vmem:[%s308] sm:$0xff]
      %v1334 = vld [vmem:[%s308 + $0x8] sm:$0xff]
      %v1335 = vld [vmem:[%s308 + $0x10] sm:$0xff]
      %v1336 = vld [vmem:[%s308 + $0x18] sm:$0xff]
      %v1337 = vld [vmem:[%s308 + $0x20] sm:$0xff]
      %v1338 = vld [vmem:[%s308 + $0x28] sm:$0xff]
      %v1339 = vld [vmem:[%s308 + $0x30] sm:$0xff]
      %v1340 = vld [vmem:[%s308 + $0x38] sm:$0xff]
      %v1341 = vld [vmem:[%s308 + $0x40] sm:$0xff]
      %v1342 = vld [vmem:[%s308 + $0x48] sm:$0xff]
      %v1343 = vld [vmem:[%s308 + $0x50] sm:$0xff]
      %v1344 = vld [vmem:[%s308 + $0x58] sm:$0xff]
      %v1345 = vld [vmem:[%s308 + $0x60] sm:$0xff]
      %v1346 = vld [vmem:[%s308 + $0x68] sm:$0xff]
      %v1347 = vld [vmem:[%s308 + $0x70] sm:$0xff]
      %v1348 = vld [vmem:[%s308 + $0x78] sm:$0xff]
      %v1349 = vld [vmem:[%s308 + $0x80] sm:$0xff]
      %v1350 = vld [vmem:[%s308 + $0x88] sm:$0xff]
      %v1351 = vld [vmem:[%s308 + $0x90] sm:$0xff]
      %v1352 = vld [vmem:[%s308 + $0x98] sm:$0xff]
      %v1353 = vld [vmem:[%s308 + $0xa0] sm:$0xff]
      %v1354 = vld [vmem:[%s308 + $0xa8] sm:$0xff]
      %v1355 = vld [vmem:[%s308 + $0xb0] sm:$0xff]
      %v1356 = vld [vmem:[%s308 + $0xb8] sm:$0xff]
      %v1357 = vld [vmem:[%s308 + $0xc0] sm:$0xff]
      %v1358 = vld [vmem:[%s308 + $0xc8] sm:$0xff]
      %v1359 = vld [vmem:[%s308 + $0xd0] sm:$0xff]
      %v1360 = vld [vmem:[%s308 + $0xd8] sm:$0xff]
      %v1361 = vld [vmem:[%s308 + $0xe0] sm:$0xff]
      %v1362 = vld [vmem:[%s308 + $0xe8] sm:$0xff]
      %v1363 = vld [vmem:[%s308 + $0xf0] sm:$0xff]
      %v1364 = vld [vmem:[%s308 + $0xf8] sm:$0xff]
      %v1365 = vld [vmem:[%s308 + $0x100] sm:$0xff]
      %v1366 = vld [vmem:[%s308 + $0x108] sm:$0xff]
      %v1367 = vld [vmem:[%s308 + $0x110] sm:$0xff]
      %v1368 = vld [vmem:[%s308 + $0x118] sm:$0xff]
      %v1369 = vld [vmem:[%s308 + $0x120] sm:$0xff]
      %v1370 = vld [vmem:[%s308 + $0x128] sm:$0xff]
      %v1371 = vld [vmem:[%s308 + $0x130] sm:$0xff]
      %v1372 = vld [vmem:[%s308 + $0x138] sm:$0xff]
      %v1373 = vld [vmem:[%s308 + $0x140] sm:$0xff]
      %v1374 = vld [vmem:[%s308 + $0x148] sm:$0xff]
      %v1375 = vld [vmem:[%s308 + $0x150] sm:$0xff]
      %v1376 = vld [vmem:[%s308 + $0x158] sm:$0xff]
      %v1377 = vld [vmem:[%s308 + $0x160] sm:$0xff]
      %v1378 = vld [vmem:[%s308 + $0x168] sm:$0xff]
      %v1379 = vld [vmem:[%s308 + $0x170] sm:$0xff]
      %v1380 = vld [vmem:[%s308 + $0x178] sm:$0xff]
      %v1382 = vsel %vm309, %v1333, 0
      %v1385 = vsel %vm309, %v1334, 0
      %v1388 = vsel %vm309, %v1335, 0
      %v1391 = vsel %vm309, %v1336, 0
      %v1394 = vsel %vm309, %v1337, 0
      %v1397 = vsel %vm309, %v1338, 0
      %v1400 = vsel %vm309, %v1339, 0
      %v1403 = vsel %vm309, %v1340, 0
      %v1406 = vsel %vm309, %v1341, 0
      %v1409 = vsel %vm309, %v1342, 0
      %v1412 = vsel %vm309, %v1343, 0
      %v1415 = vsel %vm309, %v1344, 0
      %v1418 = vsel %vm309, %v1345, 0
      %v1421 = vsel %vm309, %v1346, 0
      %v1424 = vsel %vm309, %v1347, 0
      %v1427 = vsel %vm309, %v1348, 0
      %v1430 = vsel %vm309, %v1349, 0
      %v1433 = vsel %vm309, %v1350, 0
      %v1436 = vsel %vm309, %v1351, 0
      %v1439 = vsel %vm309, %v1352, 0
      %v1442 = vsel %vm309, %v1353, 0
      %v1445 = vsel %vm309, %v1354, 0
      %v1448 = vsel %vm309, %v1355, 0
      %v1451 = vsel %vm309, %v1356, 0
      %v1454 = vsel %vm309, %v1357, 0
      %v1457 = vsel %vm309, %v1358, 0
      %v1460 = vsel %vm309, %v1359, 0
      %v1463 = vsel %vm309, %v1360, 0
      %v1466 = vsel %vm309, %v1361, 0
      %v1469 = vsel %vm309, %v1362, 0
      %v1472 = vsel %vm309, %v1363, 0
      %v1475 = vsel %vm309, %v1364, 0
      %v1478 = vsel %vm309, %v1365, 0
      %v1481 = vsel %vm309, %v1366, 0
      %v1484 = vsel %vm309, %v1367, 0
      %v1487 = vsel %vm309, %v1368, 0
      %v1490 = vsel %vm309, %v1369, 0
      %v1493 = vsel %vm309, %v1370, 0
      %v1496 = vsel %vm309, %v1371, 0
      %v1499 = vsel %vm309, %v1372, 0
      %v1502 = vsel %vm309, %v1373, 0
      %v1505 = vsel %vm309, %v1374, 0
      %v1508 = vsel %vm309, %v1375, 0
      %v1511 = vsel %vm309, %v1376, 0
      %v1514 = vsel %vm309, %v1377, 0
      %v1517 = vsel %vm309, %v1378, 0
      %v1520 = vsel %vm309, %v1379, 0
      %v1523 = vsel %vm309, %v1380, 0
      %v1526 = vsel %vm538, %v1332, 0
      %1528 = vmatprep.subr.mxu0 0.0
      %1529 = vmatpush1.msra.mxu0 %v1526
      %1530 = vmatprep.subr.mxu0 0.0
      %1531 = vmatpush1.msra.mxu0 0.0
      %1532 = vmatprep.subr.mxu0 0.0
      %1533 = vmatpush1.msra.mxu0 0.0
      %1534 = vmatprep.subr.mxu0 0.0
      %1535 = vmatpush1.msra.mxu0 0.0
      %1536 = vmatprep.subr.mxu0 0.0
      %1537 = vmatpush1.msra.mxu0 0.0
      %1538 = vmatprep.subr.mxu0 0.0
      %1539 = vmatpush1.msra.mxu0 0.0
      %1540 = vmatprep.subr.mxu0 0.0
      %1541 = vmatpush1.msra.mxu0 0.0
      %1542 = vmatprep.subr.mxu0 0.0
      %1543 = vmatpush1.msra.mxu0 0.0
      %1544 = vmatprep.subr.mxu0 0.0
      %1545 = vmatpush1.msra.mxu0 0.0
      %1546 = vmatprep.subr.mxu0 0.0
      %1547 = vmatpush1.msra.mxu0 0.0
      %1548 = vmatprep.subr.mxu0 0.0
      %1549 = vmatpush1.msra.mxu0 0.0
      %1550 = vmatprep.subr.mxu0 0.0
      %1551 = vmatpush1.msra.mxu0 0.0
      %1552 = vmatprep.subr.mxu0 0.0
      %1553 = vmatpush1.msra.mxu0 0.0
      %1554 = vmatprep.subr.mxu0 0.0
      %1555 = vmatpush1.msra.mxu0 0.0
      %1556 = vmatprep.subr.mxu0 0.0
      %1557 = vmatpush1.msra.mxu0 0.0
      %1558 = vmatprep.subr.mxu0 0.0
      %1559 = vmatpush1.msra.mxu0 0.0
      %1560 = vmatprep.subr.mxu0 0.0
      %1561 = vmatpush1.msra.mxu0 0.0
      %1562 = vmatprep.subr.mxu0 0.0
      %1563 = vmatpush1.msra.mxu0 0.0
      %1564 = vmatprep.subr.mxu0 0.0
      %1565 = vmatpush1.msra.mxu0 0.0
      %1566 = vmatprep.subr.mxu0 0.0
      %1567 = vmatpush1.msra.mxu0 0.0
      %1568 = vmatprep.subr.mxu0 0.0
      %1569 = vmatpush1.msra.mxu0 0.0
      %1570 = vmatprep.subr.mxu0 0.0
      %1571 = vmatpush1.msra.mxu0 0.0
      %1572 = vmatprep.subr.mxu0 0.0
      %1573 = vmatpush1.msra.mxu0 0.0
      %1574 = vmatprep.subr.mxu0 0.0
      %1575 = vmatpush1.msra.mxu0 0.0
      %1576 = vmatprep.subr.mxu0 0.0
      %1577 = vmatpush1.msra.mxu0 0.0
      %1578 = vmatprep.subr.mxu0 0.0
      %1579 = vmatpush1.msra.mxu0 0.0
      %1580 = vmatprep.subr.mxu0 0.0
      %1581 = vmatpush1.msra.mxu0 0.0
      %1582 = vmatprep.subr.mxu0 0.0
      %1583 = vmatpush1.msra.mxu0 0.0
      %1584 = vmatprep.subr.mxu0 0.0
      %1585 = vmatpush1.msra.mxu0 0.0
      %1586 = vmatprep.subr.mxu0 0.0
      %1587 = vmatpush1.msra.mxu0 0.0
      %1588 = vmatprep.subr.mxu0 0.0
      %1589 = vmatpush1.msra.mxu0 0.0
      %1590 = vmatprep.subr.mxu0 0.0
      %1591 = vmatpush1.msra.mxu0 0.0
      %1592 = vmatprep.mubr.f32.mxu0 0.0
      %1593 = vmatmul.mubr.f32.gmra.mrb[0].mxu0 %v1382
      %v1594 = vpop.f32.mrb[0].mxu0
      %v1595 = vadd.f32 0.0, %v1594
      %v1596 = vpop.f32.mrb[0].mxu0
      %1597 = vmatprep.mubr.f32.mxu0 0.0
      %1598 = vmatmul.mubr.f32.gmra.mrb[0].mxu0 %v1385
      %v1599 = vpop.f32.mrb[0].mxu0
      %v1600 = vadd.f32 0.0, %v1599
      %v1601 = vpop.f32.mrb[0].mxu0
      %1602 = vmatprep.mubr.f32.mxu0 0.0
      %1603 = vmatmul.mubr.f32.gmra.mrb[0].mxu0 %v1388
      %v1604 = vpop.f32.mrb[0].mxu0
      %v1605 = vadd.f32 0.0, %v1604
      %v1606 = vpop.f32.mrb[0].mxu0
      %1607 = vmatprep.mubr.f32.mxu0 0.0
      %1608 = vmatmul.mubr.f32.gmra.mrb[0].mxu0 %v1391
      %v1609 = vpop.f32.mrb[0].mxu0
      %v1610 = vadd.f32 0.0, %v1609
      %v1611 = vpop.f32.mrb[0].mxu0
      %1612 = vmatprep.mubr.f32.mxu0 0.0
      %1613 = vmatmul.mubr.f32.gmra.mrb[0].mxu0 %v1394
      %v1614 = vpop.f32.mrb[0].mxu0
      %v1615 = vadd.f32 0.0, %v1614
      %v1616 = vpop.f32.mrb[0].mxu0
      %1617 = vmatprep.mubr.f32.mxu0 0.0
      %1618 = vmatmul.mubr.f32.gmra.mrb[0].mxu0 %v1397
      %v1619 = vpop.f32.mrb[0].mxu0
      %v1620 = vadd.f32 0.0, %v1619
      %v1621 = vpop.f32.mrb[0].mxu0
      %1622 = vmatprep.mubr.f32.mxu0 0.0
      %1623 = vmatmul.mubr.f32.gmra.mrb[0].mxu0 %v1400
      %v1624 = vpop.f32.mrb[0].mxu0
      %v1625 = vadd.f32 0.0, %v1624
      %v1626 = vpop.f32.mrb[0].mxu0
      %1627 = vmatprep.mubr.f32.mxu0 0.0
      %1628 = vmatmul.mubr.f32.gmra.mrb[0].mxu0 %v1403
      %v1629 = vpop.f32.mrb[0].mxu0
      %v1630 = vadd.f32 0.0, %v1629
      %v1631 = vpop.f32.mrb[0].mxu0
      %1632 = vmatprep.mubr.f32.mxu0 0.0
      %1633 = vmatmul.mubr.f32.gmra.mrb[0].mxu0 %v1406
      %v1634 = vpop.f32.mrb[0].mxu0
      %v1635 = vadd.f32 0.0, %v1634
      %v1636 = vpop.f32.mrb[0].mxu0
      %1637 = vmatprep.mubr.f32.mxu0 0.0
      %1638 = vmatmul.mubr.f32.gmra.mrb[0].mxu0 %v1409
      %v1639 = vpop.f32.mrb[0].mxu0
      %v1640 = vadd.f32 0.0, %v1639
      %v1641 = vpop.f32.mrb[0].mxu0
      %1642 = vmatprep.mubr.f32.mxu0 0.0
      %1643 = vmatmul.mubr.f32.gmra.mrb[0].mxu0 %v1412
      %v1644 = vpop.f32.mrb[0].mxu0
      %v1645 = vadd.f32 0.0, %v1644
      %v1646 = vpop.f32.mrb[0].mxu0
      %1647 = vmatprep.mubr.f32.mxu0 0.0
      %1648 = vmatmul.mubr.f32.gmra.mrb[0].mxu0 %v1415
      %v1649 = vpop.f32.mrb[0].mxu0
      %v1650 = vadd.f32 0.0, %v1649
      %v1651 = vpop.f32.mrb[0].mxu0
      %1652 = vmatprep.mubr.f32.mxu0 0.0
      %1653 = vmatmul.mubr.f32.gmra.mrb[0].mxu0 %v1418
      %v1654 = vpop.f32.mrb[0].mxu0
      %v1655 = vadd.f32 0.0, %v1654
      %v1656 = vpop.f32.mrb[0].mxu0
      %1657 = vmatprep.mubr.f32.mxu0 0.0
      %1658 = vmatmul.mubr.f32.gmra.mrb[0].mxu0 %v1421
      %v1659 = vpop.f32.mrb[0].mxu0
      %v1660 = vadd.f32 0.0, %v1659
      %v1661 = vpop.f32.mrb[0].mxu0
      %1662 = vmatprep.mubr.f32.mxu0 0.0
      %1663 = vmatmul.mubr.f32.gmra.mrb[0].mxu0 %v1424
      %v1664 = vpop.f32.mrb[0].mxu0
      %v1665 = vadd.f32 0.0, %v1664
      %v1666 = vpop.f32.mrb[0].mxu0
      %1667 = vmatprep.mubr.f32.mxu0 0.0
      %1668 = vmatmul.mubr.f32.gmra.mrb[0].mxu0 %v1427
      %v1669 = vpop.f32.mrb[0].mxu0
      %v1670 = vadd.f32 0.0, %v1669
      %v1671 = vpop.f32.mrb[0].mxu0
      %1672 = vmatprep.mubr.f32.mxu0 0.0
      %1673 = vmatmul.mubr.f32.gmra.mrb[0].mxu0 %v1430
      %v1674 = vpop.f32.mrb[0].mxu0
      %v1675 = vadd.f32 0.0, %v1674
      %v1676 = vpop.f32.mrb[0].mxu0
      %1677 = vmatprep.mubr.f32.mxu0 0.0
      %1678 = vmatmul.mubr.f32.gmra.mrb[0].mxu0 %v1433
      %v1679 = vpop.f32.mrb[0].mxu0
      %v1680 = vadd.f32 0.0, %v1679
      %v1681 = vpop.f32.mrb[0].mxu0
      %1682 = vmatprep.mubr.f32.mxu0 0.0
      %1683 = vmatmul.mubr.f32.gmra.mrb[0].mxu0 %v1436
      %v1684 = vpop.f32.mrb[0].mxu0
      %v1685 = vadd.f32 0.0, %v1684
      %v1686 = vpop.f32.mrb[0].mxu0
      %1687 = vmatprep.mubr.f32.mxu0 0.0
      %1688 = vmatmul.mubr.f32.gmra.mrb[0].mxu0 %v1439
      %v1689 = vpop.f32.mrb[0].mxu0
      %v1690 = vadd.f32 0.0, %v1689
      %v1691 = vpop.f32.mrb[0].mxu0
      %1692 = vmatprep.mubr.f32.mxu0 0.0
      %1693 = vmatmul.mubr.f32.gmra.mrb[0].mxu0 %v1442
      %v1694 = vpop.f32.mrb[0].mxu0
      %v1695 = vadd.f32 0.0, %v1694
      %v1696 = vpop.f32.mrb[0].mxu0
      %1697 = vmatprep.mubr.f32.mxu0 0.0
      %1698 = vmatmul.mubr.f32.gmra.mrb[0].mxu0 %v1445
      %v1699 = vpop.f32.mrb[0].mxu0
      %v1700 = vadd.f32 0.0, %v1699
      %v1701 = vpop.f32.mrb[0].mxu0
      %1702 = vmatprep.mubr.f32.mxu0 0.0
      %1703 = vmatmul.mubr.f32.gmra.mrb[0].mxu0 %v1448
      %v1704 = vpop.f32.mrb[0].mxu0
      %v1705 = vadd.f32 0.0, %v1704
      %v1706 = vpop.f32.mrb[0].mxu0
      %1707 = vmatprep.mubr.f32.mxu0 0.0
      %1708 = vmatmul.mubr.f32.gmra.mrb[0].mxu0 %v1451
      %v1709 = vpop.f32.mrb[0].mxu0
      %v1710 = vadd.f32 0.0, %v1709
      %v1711 = vpop.f32.mrb[0].mxu0
      %1712 = vmatprep.mubr.f32.mxu0 0.0
      %1713 = vmatmul.mubr.f32.gmra.mrb[0].mxu0 %v1454
      %v1714 = vpop.f32.mrb[0].mxu0
      %v1715 = vadd.f32 0.0, %v1714
      %v1716 = vpop.f32.mrb[0].mxu0
      %1717 = vmatprep.mubr.f32.mxu0 0.0
      %1718 = vmatmul.mubr.f32.gmra.mrb[0].mxu0 %v1457
      %v1719 = vpop.f32.mrb[0].mxu0
      %v1720 = vadd.f32 0.0, %v1719
      %v1721 = vpop.f32.mrb[0].mxu0
      %1722 = vmatprep.mubr.f32.mxu0 0.0
      %1723 = vmatmul.mubr.f32.gmra.mrb[0].mxu0 %v1460
      %v1724 = vpop.f32.mrb[0].mxu0
      %v1725 = vadd.f32 0.0, %v1724
      %v1726 = vpop.f32.mrb[0].mxu0
      %1727 = vmatprep.mubr.f32.mxu0 0.0
      %1728 = vmatmul.mubr.f32.gmra.mrb[0].mxu0 %v1463
      %v1729 = vpop.f32.mrb[0].mxu0
      %v1730 = vadd.f32 0.0, %v1729
      %v1731 = vpop.f32.mrb[0].mxu0
      %1732 = vmatprep.mubr.f32.mxu0 0.0
      %1733 = vmatmul.mubr.f32.gmra.mrb[0].mxu0 %v1466
      %v1734 = vpop.f32.mrb[0].mxu0
      %v1735 = vadd.f32 0.0, %v1734
      %v1736 = vpop.f32.mrb[0].mxu0
      %1737 = vmatprep.mubr.f32.mxu0 0.0
      %1738 = vmatmul.mubr.f32.gmra.mrb[0].mxu0 %v1469
      %v1739 = vpop.f32.mrb[0].mxu0
      %v1740 = vadd.f32 0.0, %v1739
      %v1741 = vpop.f32.mrb[0].mxu0
      %1742 = vmatprep.mubr.f32.mxu0 0.0
      %1743 = vmatmul.mubr.f32.gmra.mrb[0].mxu0 %v1472
      %v1744 = vpop.f32.mrb[0].mxu0
      %v1745 = vadd.f32 0.0, %v1744
      %v1746 = vpop.f32.mrb[0].mxu0
      %1747 = vmatprep.mubr.f32.mxu0 0.0
      %1748 = vmatmul.mubr.f32.gmra.mrb[0].mxu0 %v1475
      %v1749 = vpop.f32.mrb[0].mxu0
      %v1750 = vadd.f32 0.0, %v1749
      %v1751 = vpop.f32.mrb[0].mxu0
      %1752 = vmatprep.mubr.f32.mxu0 0.0
      %1753 = vmatmul.mubr.f32.gmra.mrb[0].mxu0 %v1478
      %v1754 = vpop.f32.mrb[0].mxu0
      %v1755 = vadd.f32 0.0, %v1754
      %v1756 = vpop.f32.mrb[0].mxu0
      %1757 = vmatprep.mubr.f32.mxu0 0.0
      %1758 = vmatmul.mubr.f32.gmra.mrb[0].mxu0 %v1481
      %v1759 = vpop.f32.mrb[0].mxu0
      %v1760 = vadd.f32 0.0, %v1759
      %v1761 = vpop.f32.mrb[0].mxu0
      %1762 = vmatprep.mubr.f32.mxu0 0.0
      %1763 = vmatmul.mubr.f32.gmra.mrb[0].mxu0 %v1484
      %v1764 = vpop.f32.mrb[0].mxu0
      %v1765 = vadd.f32 0.0, %v1764
      %v1766 = vpop.f32.mrb[0].mxu0
      %1767 = vmatprep.mubr.f32.mxu0 0.0
      %1768 = vmatmul.mubr.f32.gmra.mrb[0].mxu0 %v1487
      %v1769 = vpop.f32.mrb[0].mxu0
      %v1770 = vadd.f32 0.0, %v1769
      %v1771 = vpop.f32.mrb[0].mxu0
      %1772 = vmatprep.mubr.f32.mxu0 0.0
      %1773 = vmatmul.mubr.f32.gmra.mrb[0].mxu0 %v1490
      %v1774 = vpop.f32.mrb[0].mxu0
      %v1775 = vadd.f32 0.0, %v1774
      %v1776 = vpop.f32.mrb[0].mxu0
      %1777 = vmatprep.mubr.f32.mxu0 0.0
      %1778 = vmatmul.mubr.f32.gmra.mrb[0].mxu0 %v1493
      %v1779 = vpop.f32.mrb[0].mxu0
      %v1780 = vadd.f32 0.0, %v1779
      %v1781 = vpop.f32.mrb[0].mxu0
      %1782 = vmatprep.mubr.f32.mxu0 0.0
      %1783 = vmatmul.mubr.f32.gmra.mrb[0].mxu0 %v1496
      %v1784 = vpop.f32.mrb[0].mxu0
      %v1785 = vadd.f32 0.0, %v1784
      %v1786 = vpop.f32.mrb[0].mxu0
      %1787 = vmatprep.mubr.f32.mxu0 0.0
      %1788 = vmatmul.mubr.f32.gmra.mrb[0].mxu0 %v1499
      %v1789 = vpop.f32.mrb[0].mxu0
      %v1790 = vadd.f32 0.0, %v1789
      %v1791 = vpop.f32.mrb[0].mxu0
      %1792 = vmatprep.mubr.f32.mxu0 0.0
      %1793 = vmatmul.mubr.f32.gmra.mrb[0].mxu0 %v1502
      %v1794 = vpop.f32.mrb[0].mxu0
      %v1795 = vadd.f32 0.0, %v1794
      %v1796 = vpop.f32.mrb[0].mxu0
      %1797 = vmatprep.mubr.f32.mxu0 0.0
      %1798 = vmatmul.mubr.f32.gmra.mrb[0].mxu0 %v1505
      %v1799 = vpop.f32.mrb[0].mxu0
      %v1800 = vadd.f32 0.0, %v1799
      %v1801 = vpop.f32.mrb[0].mxu0
      %1802 = vmatprep.mubr.f32.mxu0 0.0
      %1803 = vmatmul.mubr.f32.gmra.mrb[0].mxu0 %v1508
      %v1804 = vpop.f32.mrb[0].mxu0
      %v1805 = vadd.f32 0.0, %v1804
      %v1806 = vpop.f32.mrb[0].mxu0
      %1807 = vmatprep.mubr.f32.mxu0 0.0
      %1808 = vmatmul.mubr.f32.gmra.mrb[0].mxu0 %v1511
      %v1809 = vpop.f32.mrb[0].mxu0
      %v1810 = vadd.f32 0.0, %v1809
      %v1811 = vpop.f32.mrb[0].mxu0
      %1812 = vmatprep.mubr.f32.mxu0 0.0
      %1813 = vmatmul.mubr.f32.gmra.mrb[0].mxu0 %v1514
      %v1814 = vpop.f32.mrb[0].mxu0
      %v1815 = vadd.f32 0.0, %v1814
      %v1816 = vpop.f32.mrb[0].mxu0
      %1817 = vmatprep.mubr.f32.mxu0 0.0
      %1818 = vmatmul.mubr.f32.gmra.mrb[0].mxu0 %v1517
      %v1819 = vpop.f32.mrb[0].mxu0
      %v1820 = vadd.f32 0.0, %v1819
      %v1821 = vpop.f32.mrb[0].mxu0
      %1822 = vmatprep.mubr.f32.mxu0 0.0
      %1823 = vmatmul.mubr.f32.gmra.mrb[0].mxu0 %v1520
      %v1824 = vpop.f32.mrb[0].mxu0
      %v1825 = vadd.f32 0.0, %v1824
      %v1826 = vpop.f32.mrb[0].mxu0
      %1827 = vmatprep.mubr.f32.mxu0 0.0
      %1828 = vmatmul.mubr.f32.gmra.mrb[0].mxu0 %v1523
      %v1829 = vpop.f32.mrb[0].mxu0
      %v1830 = vadd.f32 0.0, %v1829
      %v1831 = vpop.f32.mrb[0].mxu0
      %1832 = vdwg.mxu0
      %v1865 = vrot.slane %v1595, 7
      %v1866 = vrot.slane %v1600, 7
      %v1867 = vsel %vm879, %v1865, %v1866
      %v1868 = vrot.slane %v1610, 7
      %v1869 = vrot.slane %v1615, 7
      %v1870 = vsel %vm879, %v1868, %v1869
      %v1871 = vrot.slane %v1625, 7
      %v1872 = vrot.slane %v1630, 7
      %v1873 = vsel %vm879, %v1871, %v1872
      %v1874 = vrot.slane %v1640, 7
      %v1875 = vrot.slane %v1645, 7
      %v1876 = vsel %vm879, %v1874, %v1875
      %v1877 = vrot.slane %v1655, 7
      %v1878 = vrot.slane %v1660, 7
      %v1879 = vsel %vm879, %v1877, %v1878
      %v1880 = vrot.slane %v1670, 7
      %v1881 = vrot.slane %v1675, 7
      %v1882 = vsel %vm879, %v1880, %v1881
      %v1883 = vrot.slane %v1685, 7
      %v1884 = vrot.slane %v1690, 7
      %v1885 = vsel %vm879, %v1883, %v1884
      %v1886 = vrot.slane %v1700, 7
      %v1887 = vrot.slane %v1705, 7
      %v1888 = vsel %vm879, %v1886, %v1887
      %v1889 = vrot.slane %v1715, 7
      %v1890 = vrot.slane %v1720, 7
      %v1891 = vsel %vm879, %v1889, %v1890
      %v1892 = vrot.slane %v1730, 7
      %v1893 = vrot.slane %v1735, 7
      %v1894 = vsel %vm879, %v1892, %v1893
      %v1895 = vrot.slane %v1745, 7
      %v1896 = vrot.slane %v1750, 7
      %v1897 = vsel %vm879, %v1895, %v1896
      %v1898 = vrot.slane %v1760, 7
      %v1899 = vrot.slane %v1765, 7
      %v1900 = vsel %vm879, %v1898, %v1899
      %v1901 = vrot.slane %v1775, 7
      %v1902 = vrot.slane %v1780, 7
      %v1903 = vsel %vm879, %v1901, %v1902
      %v1904 = vrot.slane %v1790, 7
      %v1905 = vrot.slane %v1795, 7
      %v1906 = vsel %vm879, %v1904, %v1905
      %v1907 = vrot.slane %v1805, 7
      %v1908 = vrot.slane %v1810, 7
      %v1909 = vsel %vm879, %v1907, %v1908
      %v1910 = vrot.slane %v1820, 7
      %v1911 = vrot.slane %v1825, 7
      %v1912 = vsel %vm879, %v1910, %v1911
      %v1945 = vsel %vm879, 0.0, %v1865
      %v1946 = vsel %vm879, 0.0, %v1868
      %v1947 = vsel %vm879, 0.0, %v1871
      %v1948 = vsel %vm879, 0.0, %v1874
      %v1949 = vsel %vm879, 0.0, %v1877
      %v1950 = vsel %vm879, 0.0, %v1880
      %v1951 = vsel %vm879, 0.0, %v1883
      %v1952 = vsel %vm879, 0.0, %v1886
      %v1953 = vsel %vm879, 0.0, %v1889
      %v1954 = vsel %vm879, 0.0, %v1892
      %v1955 = vsel %vm879, 0.0, %v1895
      %v1956 = vsel %vm879, 0.0, %v1898
      %v1957 = vsel %vm879, 0.0, %v1901
      %v1958 = vsel %vm879, 0.0, %v1904
      %v1959 = vsel %vm879, 0.0, %v1907
      %v1960 = vsel %vm879, 0.0, %v1910
      %1961 = vrot.lane.b32.xlu0 %v1595, 124
      %v1962 = vpop.permute.xlu0 %1961
      %1963 = vrot.lane.b32.xlu0 %v1600, 124
      %v1964 = vpop.permute.xlu0 %1963
      %1965 = vrot.lane.b32.xlu0 %v1610, 124
      %v1966 = vpop.permute.xlu0 %1965
      %1967 = vrot.lane.b32.xlu0 %v1615, 124
      %v1968 = vpop.permute.xlu0 %1967
      %1969 = vrot.lane.b32.xlu0 %v1625, 124
      %v1970 = vpop.permute.xlu0 %1969
      %1971 = vrot.lane.b32.xlu0 %v1630, 124
      %v1972 = vpop.permute.xlu0 %1971
      %1973 = vrot.lane.b32.xlu0 %v1640, 124
      %v1974 = vpop.permute.xlu0 %1973
      %1975 = vrot.lane.b32.xlu0 %v1645, 124
      %v1976 = vpop.permute.xlu0 %1975
      %1977 = vrot.lane.b32.xlu0 %v1655, 124
      %v1978 = vpop.permute.xlu0 %1977
      %1979 = vrot.lane.b32.xlu0 %v1660, 124
      %v1980 = vpop.permute.xlu0 %1979
      %1981 = vrot.lane.b32.xlu0 %v1670, 124
      %v1982 = vpop.permute.xlu0 %1981
      %1983 = vrot.lane.b32.xlu0 %v1675, 124
      %v1984 = vpop.permute.xlu0 %1983
      %1985 = vrot.lane.b32.xlu0 %v1685, 124
      %v1986 = vpop.permute.xlu0 %1985
      %1987 = vrot.lane.b32.xlu0 %v1690, 124
      %v1988 = vpop.permute.xlu0 %1987
      %1989 = vrot.lane.b32.xlu0 %v1700, 124
      %v1990 = vpop.permute.xlu0 %1989
      %1991 = vrot.lane.b32.xlu0 %v1705, 124
      %v1992 = vpop.permute.xlu0 %1991
      %1993 = vrot.lane.b32.xlu0 %v1715, 124
      %v1994 = vpop.permute.xlu0 %1993
      %1995 = vrot.lane.b32.xlu0 %v1720, 124
      %v1996 = vpop.permute.xlu0 %1995
      %1997 = vrot.lane.b32.xlu0 %v1730, 124
      %v1998 = vpop.permute.xlu0 %1997
      %1999 = vrot.lane.b32.xlu0 %v1735, 124
      %v2000 = vpop.permute.xlu0 %1999
      %2001 = vrot.lane.b32.xlu0 %v1745, 124
      %v2002 = vpop.permute.xlu0 %2001
      %2003 = vrot.lane.b32.xlu0 %v1750, 124
      %v2004 = vpop.permute.xlu0 %2003
      %2005 = vrot.lane.b32.xlu0 %v1760, 124
      %v2006 = vpop.permute.xlu0 %2005
      %2007 = vrot.lane.b32.xlu0 %v1765, 124
      %v2008 = vpop.permute.xlu0 %2007
      %2009 = vrot.lane.b32.xlu0 %v1775, 124
      %v2010 = vpop.permute.xlu0 %2009
      %2011 = vrot.lane.b32.xlu0 %v1780, 124
      %v2012 = vpop.permute.xlu0 %2011
      %2013 = vrot.lane.b32.xlu0 %v1790, 124
      %v2014 = vpop.permute.xlu0 %2013
      %2015 = vrot.lane.b32.xlu0 %v1795, 124
      %v2016 = vpop.permute.xlu0 %2015
      %2017 = vrot.lane.b32.xlu0 %v1805, 124
      %v2018 = vpop.permute.xlu0 %2017
      %2019 = vrot.lane.b32.xlu0 %v1810, 124
      %v2020 = vpop.permute.xlu0 %2019
      %2021 = vrot.lane.b32.xlu0 %v1820, 124
      %v2022 = vpop.permute.xlu0 %2021
      %2023 = vrot.lane.b32.xlu0 %v1825, 124
      %v2024 = vpop.permute.xlu0 %2023
      %v2057 = vadd.f32 %v1945, %v1962
      %v2058 = vadd.f32 %v1867, %v1964
      %v2059 = vadd.f32 %v1946, %v1966
      %v2060 = vadd.f32 %v1870, %v1968
      %v2061 = vadd.f32 %v1947, %v1970
      %v2062 = vadd.f32 %v1873, %v1972
      %v2063 = vadd.f32 %v1948, %v1974
      %v2064 = vadd.f32 %v1876, %v1976
      %v2065 = vadd.f32 %v1949, %v1978
      %v2066 = vadd.f32 %v1879, %v1980
      %v2067 = vadd.f32 %v1950, %v1982
      %v2068 = vadd.f32 %v1882, %v1984
      %v2069 = vadd.f32 %v1951, %v1986
      %v2070 = vadd.f32 %v1885, %v1988
      %v2071 = vadd.f32 %v1952, %v1990
      %v2072 = vadd.f32 %v1888, %v1992
      %v2073 = vadd.f32 %v1953, %v1994
      %v2074 = vadd.f32 %v1891, %v1996
      %v2075 = vadd.f32 %v1954, %v1998
      %v2076 = vadd.f32 %v1894, %v2000
      %v2077 = vadd.f32 %v1955, %v2002
      %v2078 = vadd.f32 %v1897, %v2004
      %v2079 = vadd.f32 %v1956, %v2006
      %v2080 = vadd.f32 %v1900, %v2008
      %v2081 = vadd.f32 %v1957, %v2010
      %v2082 = vadd.f32 %v1903, %v2012
      %v2083 = vadd.f32 %v1958, %v2014
      %v2084 = vadd.f32 %v1906, %v2016
      %v2085 = vadd.f32 %v1959, %v2018
      %v2086 = vadd.f32 %v1909, %v2020
      %v2087 = vadd.f32 %v1960, %v2022
      %v2088 = vadd.f32 %v1912, %v2024
      %v2105 = vrot.slane %v1595, 1
      %v2106 = vrot.slane %v1600, 1
      %v2107 = vsel %vm1120, %v2105, %v2106
      %v2108 = vrot.slane %v1605, 1
      %v2109 = vsel %vm1120, %v2106, %v2108
      %v2110 = vrot.slane %v1610, 1
      %v2111 = vrot.slane %v1615, 1
      %v2112 = vsel %vm1120, %v2110, %v2111
      %v2113 = vrot.slane %v1620, 1
      %v2114 = vsel %vm1120, %v2111, %v2113
      %v2115 = vrot.slane %v1625, 1
      %v2116 = vrot.slane %v1630, 1
      %v2117 = vsel %vm1120, %v2115, %v2116
      %v2118 = vrot.slane %v1635, 1
      %v2119 = vsel %vm1120, %v2116, %v2118
      %v2120 = vrot.slane %v1640, 1
      %v2121 = vrot.slane %v1645, 1
      %v2122 = vsel %vm1120, %v2120, %v2121
      %v2123 = vrot.slane %v1650, 1
      %v2124 = vsel %vm1120, %v2121, %v2123
      %v2125 = vrot.slane %v1655, 1
      %v2126 = vrot.slane %v1660, 1
      %v2127 = vsel %vm1120, %v2125, %v2126
      %v2128 = vrot.slane %v1665, 1
      %v2129 = vsel %vm1120, %v2126, %v2128
      %v2130 = vrot.slane %v1670, 1
      %v2131 = vrot.slane %v1675, 1
      %v2132 = vsel %vm1120, %v2130, %v2131
      %v2133 = vrot.slane %v1680, 1
      %v2134 = vsel %vm1120, %v2131, %v2133
      %v2135 = vrot.slane %v1685, 1
      %v2136 = vrot.slane %v1690, 1
      %v2137 = vsel %vm1120, %v2135, %v2136
      %v2138 = vrot.slane %v1695, 1
      %v2139 = vsel %vm1120, %v2136, %v2138
      %v2140 = vrot.slane %v1700, 1
      %v2141 = vrot.slane %v1705, 1
      %v2142 = vsel %vm1120, %v2140, %v2141
      %v2143 = vrot.slane %v1710, 1
      %v2144 = vsel %vm1120, %v2141, %v2143
      %v2145 = vrot.slane %v1715, 1
      %v2146 = vrot.slane %v1720, 1
      %v2147 = vsel %vm1120, %v2145, %v2146
      %v2148 = vrot.slane %v1725, 1
      %v2149 = vsel %vm1120, %v2146, %v2148
      %v2150 = vrot.slane %v1730, 1
      %v2151 = vrot.slane %v1735, 1
      %v2152 = vsel %vm1120, %v2150, %v2151
      %v2153 = vrot.slane %v1740, 1
      %v2154 = vsel %vm1120, %v2151, %v2153
      %v2155 = vrot.slane %v1745, 1
      %v2156 = vrot.slane %v1750, 1
      %v2157 = vsel %vm1120, %v2155, %v2156
      %v2158 = vrot.slane %v1755, 1
      %v2159 = vsel %vm1120, %v2156, %v2158
      %v2160 = vrot.slane %v1760, 1
      %v2161 = vrot.slane %v1765, 1
      %v2162 = vsel %vm1120, %v2160, %v2161
      %v2163 = vrot.slane %v1770, 1
      %v2164 = vsel %vm1120, %v2161, %v2163
      %v2165 = vrot.slane %v1775, 1
      %v2166 = vrot.slane %v1780, 1
      %v2167 = vsel %vm1120, %v2165, %v2166
      %v2168 = vrot.slane %v1785, 1
      %v2169 = vsel %vm1120, %v2166, %v2168
      %v2170 = vrot.slane %v1790, 1
      %v2171 = vrot.slane %v1795, 1
      %v2172 = vsel %vm1120, %v2170, %v2171
      %v2173 = vrot.slane %v1800, 1
      %v2174 = vsel %vm1120, %v2171, %v2173
      %v2175 = vrot.slane %v1805, 1
      %v2176 = vrot.slane %v1810, 1
      %v2177 = vsel %vm1120, %v2175, %v2176
      %v2178 = vrot.slane %v1815, 1
      %v2179 = vsel %vm1120, %v2176, %v2178
      %v2180 = vrot.slane %v1820, 1
      %v2181 = vrot.slane %v1825, 1
      %v2182 = vsel %vm1120, %v2180, %v2181
      %v2183 = vrot.slane %v1830, 1
      %v2184 = vsel %vm1120, %v2181, %v2183
      %2185 = vrot.lane.b32.xlu0 %v2107, 120
      %v2186 = vpop.permute.xlu0 %2185
      %2187 = vrot.lane.b32.xlu0 %v2109, 120
      %v2188 = vpop.permute.xlu0 %2187
      %2189 = vrot.lane.b32.xlu0 %v2112, 120
      %v2190 = vpop.permute.xlu0 %2189
      %2191 = vrot.lane.b32.xlu0 %v2114, 120
      %v2192 = vpop.permute.xlu0 %2191
      %2193 = vrot.lane.b32.xlu0 %v2117, 120
      %v2194 = vpop.permute.xlu0 %2193
      %2195 = vrot.lane.b32.xlu0 %v2119, 120
      %v2196 = vpop.permute.xlu0 %2195
      %2197 = vrot.lane.b32.xlu0 %v2122, 120
      %v2198 = vpop.permute.xlu0 %2197
      %2199 = vrot.lane.b32.xlu0 %v2124, 120
      %v2200 = vpop.permute.xlu0 %2199
      %2201 = vrot.lane.b32.xlu0 %v2127, 120
      %v2202 = vpop.permute.xlu0 %2201
      %2203 = vrot.lane.b32.xlu0 %v2129, 120
      %v2204 = vpop.permute.xlu0 %2203
      %2205 = vrot.lane.b32.xlu0 %v2132, 120
      %v2206 = vpop.permute.xlu0 %2205
      %2207 = vrot.lane.b32.xlu0 %v2134, 120
      %v2208 = vpop.permute.xlu0 %2207
      %2209 = vrot.lane.b32.xlu0 %v2137, 120
      %v2210 = vpop.permute.xlu0 %2209
      %2211 = vrot.lane.b32.xlu0 %v2139, 120
      %v2212 = vpop.permute.xlu0 %2211
      %2213 = vrot.lane.b32.xlu0 %v2142, 120
      %v2214 = vpop.permute.xlu0 %2213
      %2215 = vrot.lane.b32.xlu0 %v2144, 120
      %v2216 = vpop.permute.xlu0 %2215
      %2217 = vrot.lane.b32.xlu0 %v2147, 120
      %v2218 = vpop.permute.xlu0 %2217
      %2219 = vrot.lane.b32.xlu0 %v2149, 120
      %v2220 = vpop.permute.xlu0 %2219
      %2221 = vrot.lane.b32.xlu0 %v2152, 120
      %v2222 = vpop.permute.xlu0 %2221
      %2223 = vrot.lane.b32.xlu0 %v2154, 120
      %v2224 = vpop.permute.xlu0 %2223
      %2225 = vrot.lane.b32.xlu0 %v2157, 120
      %v2226 = vpop.permute.xlu0 %2225
      %2227 = vrot.lane.b32.xlu0 %v2159, 120
      %v2228 = vpop.permute.xlu0 %2227
      %2229 = vrot.lane.b32.xlu0 %v2162, 120
      %v2230 = vpop.permute.xlu0 %2229
      %2231 = vrot.lane.b32.xlu0 %v2164, 120
      %v2232 = vpop.permute.xlu0 %2231
      %2233 = vrot.lane.b32.xlu0 %v2167, 120
      %v2234 = vpop.permute.xlu0 %2233
      %2235 = vrot.lane.b32.xlu0 %v2169, 120
      %v2236 = vpop.permute.xlu0 %2235
      %2237 = vrot.lane.b32.xlu0 %v2172, 120
      %v2238 = vpop.permute.xlu0 %2237
      %2239 = vrot.lane.b32.xlu0 %v2174, 120
      %v2240 = vpop.permute.xlu0 %2239
      %2241 = vrot.lane.b32.xlu0 %v2177, 120
      %v2242 = vpop.permute.xlu0 %2241
      %2243 = vrot.lane.b32.xlu0 %v2179, 120
      %v2244 = vpop.permute.xlu0 %2243
      %2245 = vrot.lane.b32.xlu0 %v2182, 120
      %v2246 = vpop.permute.xlu0 %2245
      %2247 = vrot.lane.b32.xlu0 %v2184, 120
      %v2248 = vpop.permute.xlu0 %2247
      %v2281 = vadd.f32 %v2057, %v2186
      %v2282 = vadd.f32 %v2058, %v2188
      %v2283 = vadd.f32 %v2059, %v2190
      %v2284 = vadd.f32 %v2060, %v2192
      %v2285 = vadd.f32 %v2061, %v2194
      %v2286 = vadd.f32 %v2062, %v2196
      %v2287 = vadd.f32 %v2063, %v2198
      %v2288 = vadd.f32 %v2064, %v2200
      %v2289 = vadd.f32 %v2065, %v2202
      %v2290 = vadd.f32 %v2066, %v2204
      %v2291 = vadd.f32 %v2067, %v2206
      %v2292 = vadd.f32 %v2068, %v2208
      %v2293 = vadd.f32 %v2069, %v2210
      %v2294 = vadd.f32 %v2070, %v2212
      %v2295 = vadd.f32 %v2071, %v2214
      %v2296 = vadd.f32 %v2072, %v2216
      %v2297 = vadd.f32 %v2073, %v2218
      %v2298 = vadd.f32 %v2074, %v2220
      %v2299 = vadd.f32 %v2075, %v2222
      %v2300 = vadd.f32 %v2076, %v2224
      %v2301 = vadd.f32 %v2077, %v2226
      %v2302 = vadd.f32 %v2078, %v2228
      %v2303 = vadd.f32 %v2079, %v2230
      %v2304 = vadd.f32 %v2080, %v2232
      %v2305 = vadd.f32 %v2081, %v2234
      %v2306 = vadd.f32 %v2082, %v2236
      %v2307 = vadd.f32 %v2083, %v2238
      %v2308 = vadd.f32 %v2084, %v2240
      %v2309 = vadd.f32 %v2085, %v2242
      %v2310 = vadd.f32 %v2086, %v2244
      %v2311 = vadd.f32 %v2087, %v2246
      %v2312 = vadd.f32 %v2088, %v2248
      %v2313 = vadd.f32 %v1297, %v2281
      %v2314 = vadd.f32 %v1298, %v2282
      %v2315 = vadd.f32 %v1299, %v2283
      %v2316 = vadd.f32 %v1300, %v2284
      %v2317 = vadd.f32 %v1301, %v2285
      %v2318 = vadd.f32 %v1302, %v2286
      %v2319 = vadd.f32 %v1303, %v2287
      %v2320 = vadd.f32 %v1304, %v2288
      %v2321 = vadd.f32 %v1305, %v2289
      %v2322 = vadd.f32 %v1306, %v2290
      %v2323 = vadd.f32 %v1307, %v2291
      %v2324 = vadd.f32 %v1308, %v2292
      %v2325 = vadd.f32 %v1309, %v2293
      %v2326 = vadd.f32 %v1310, %v2294
      %v2327 = vadd.f32 %v1311, %v2295
      %v2328 = vadd.f32 %v1312, %v2296
      %v2329 = vadd.f32 %v1313, %v2297
      %v2330 = vadd.f32 %v1314, %v2298
      %v2331 = vadd.f32 %v1315, %v2299
      %v2332 = vadd.f32 %v1316, %v2300
      %v2333 = vadd.f32 %v1317, %v2301
      %v2334 = vadd.f32 %v1318, %v2302
      %v2335 = vadd.f32 %v1319, %v2303
      %v2336 = vadd.f32 %v1320, %v2304
      %v2337 = vadd.f32 %v1321, %v2305
      %v2338 = vadd.f32 %v1322, %v2306
      %v2339 = vadd.f32 %v1323, %v2307
      %v2340 = vadd.f32 %v1324, %v2308
      %v2341 = vadd.f32 %v1325, %v2309
      %v2342 = vadd.f32 %v1326, %v2310
      %v2343 = vadd.f32 %v1327, %v2311
      %v2344 = vadd.f32 %v1328, %v2312
      %s2345 = sadd.s32 %s342, 2
      %s2346 = smul.u32 %s2345, 4
      %s2347 = scalar_lea.vmem %s1, %s2346
      %v2348 = vld [vmem:[%s2347] sm:$0xf]
      %s2349 = scalar_lea.vmem [#allocation2], 48
      %v2350 = vld [vmem:[%s2349] sm:$0xff]
      %v2351 = vld [vmem:[%s2349 + $0x8] sm:$0xff]
      %v2352 = vld [vmem:[%s2349 + $0x10] sm:$0xff]
      %v2353 = vld [vmem:[%s2349 + $0x18] sm:$0xff]
      %v2354 = vld [vmem:[%s2349 + $0x20] sm:$0xff]
      %v2355 = vld [vmem:[%s2349 + $0x28] sm:$0xff]
      %v2356 = vld [vmem:[%s2349 + $0x30] sm:$0xff]
      %v2357 = vld [vmem:[%s2349 + $0x38] sm:$0xff]
      %v2358 = vld [vmem:[%s2349 + $0x40] sm:$0xff]
      %v2359 = vld [vmem:[%s2349 + $0x48] sm:$0xff]
      %v2360 = vld [vmem:[%s2349 + $0x50] sm:$0xff]
      %v2361 = vld [vmem:[%s2349 + $0x58] sm:$0xff]
      %v2362 = vld [vmem:[%s2349 + $0x60] sm:$0xff]
      %v2363 = vld [vmem:[%s2349 + $0x68] sm:$0xff]
      %v2364 = vld [vmem:[%s2349 + $0x70] sm:$0xff]
      %v2365 = vld [vmem:[%s2349 + $0x78] sm:$0xff]
      %v2366 = vld [vmem:[%s2349 + $0x80] sm:$0xff]
      %v2367 = vld [vmem:[%s2349 + $0x88] sm:$0xff]
      %v2368 = vld [vmem:[%s2349 + $0x90] sm:$0xff]
      %v2369 = vld [vmem:[%s2349 + $0x98] sm:$0xff]
      %v2370 = vld [vmem:[%s2349 + $0xa0] sm:$0xff]
      %v2371 = vld [vmem:[%s2349 + $0xa8] sm:$0xff]
      %v2372 = vld [vmem:[%s2349 + $0xb0] sm:$0xff]
      %v2373 = vld [vmem:[%s2349 + $0xb8] sm:$0xff]
      %v2374 = vld [vmem:[%s2349 + $0xc0] sm:$0xff]
      %v2375 = vld [vmem:[%s2349 + $0xc8] sm:$0xff]
      %v2376 = vld [vmem:[%s2349 + $0xd0] sm:$0xff]
      %v2377 = vld [vmem:[%s2349 + $0xd8] sm:$0xff]
      %v2378 = vld [vmem:[%s2349 + $0xe0] sm:$0xff]
      %v2379 = vld [vmem:[%s2349 + $0xe8] sm:$0xff]
      %v2380 = vld [vmem:[%s2349 + $0xf0] sm:$0xff]
      %v2381 = vld [vmem:[%s2349 + $0xf8] sm:$0xff]
      %v2382 = vld [vmem:[%s2349 + $0x100] sm:$0xff]
      %v2383 = vld [vmem:[%s2349 + $0x108] sm:$0xff]
      %v2384 = vld [vmem:[%s2349 + $0x110] sm:$0xff]
      %v2385 = vld [vmem:[%s2349 + $0x118] sm:$0xff]
      %v2386 = vld [vmem:[%s2349 + $0x120] sm:$0xff]
      %v2387 = vld [vmem:[%s2349 + $0x128] sm:$0xff]
      %v2388 = vld [vmem:[%s2349 + $0x130] sm:$0xff]
      %v2389 = vld [vmem:[%s2349 + $0x138] sm:$0xff]
      %v2390 = vld [vmem:[%s2349 + $0x140] sm:$0xff]
      %v2391 = vld [vmem:[%s2349 + $0x148] sm:$0xff]
      %v2392 = vld [vmem:[%s2349 + $0x150] sm:$0xff]
      %v2393 = vld [vmem:[%s2349 + $0x158] sm:$0xff]
      %v2394 = vld [vmem:[%s2349 + $0x160] sm:$0xff]
      %v2395 = vld [vmem:[%s2349 + $0x168] sm:$0xff]
      %v2396 = vld [vmem:[%s2349 + $0x170] sm:$0xff]
      %v2397 = vld [vmem:[%s2349 + $0x178] sm:$0xff]
      %v2399 = vsel %vm309, %v2350, 0
      %v2402 = vsel %vm309, %v2351, 0
      %v2405 = vsel %vm309, %v2352, 0
      %v2408 = vsel %vm309, %v2353, 0
      %v2411 = vsel %vm309, %v2354, 0
      %v2414 = vsel %vm309, %v2355, 0
      %v2417 = vsel %vm309, %v2356, 0
      %v2420 = vsel %vm309, %v2357, 0
      %v2423 = vsel %vm309, %v2358, 0
      %v2426 = vsel %vm309, %v2359, 0
      %v2429 = vsel %vm309, %v2360, 0
      %v2432 = vsel %vm309, %v2361, 0
      %v2435 = vsel %vm309, %v2362, 0
      %v2438 = vsel %vm309, %v2363, 0
      %v2441 = vsel %vm309, %v2364, 0
      %v2444 = vsel %vm309, %v2365, 0
      %v2447 = vsel %vm309, %v2366, 0
      %v2450 = vsel %vm309, %v2367, 0
      %v2453 = vsel %vm309, %v2368, 0
      %v2456 = vsel %vm309, %v2369, 0
      %v2459 = vsel %vm309, %v2370, 0
      %v2462 = vsel %vm309, %v2371, 0
      %v2465 = vsel %vm309, %v2372, 0
      %v2468 = vsel %vm309, %v2373, 0
      %v2471 = vsel %vm309, %v2374, 0
      %v2474 = vsel %vm309, %v2375, 0
      %v2477 = vsel %vm309, %v2376, 0
      %v2480 = vsel %vm309, %v2377, 0
      %v2483 = vsel %vm309, %v2378, 0
      %v2486 = vsel %vm309, %v2379, 0
      %v2489 = vsel %vm309, %v2380, 0
      %v2492 = vsel %vm309, %v2381, 0
      %v2495 = vsel %vm309, %v2382, 0
      %v2498 = vsel %vm309, %v2383, 0
      %v2501 = vsel %vm309, %v2384, 0
      %v2504 = vsel %vm309, %v2385, 0
      %v2507 = vsel %vm309, %v2386, 0
      %v2510 = vsel %vm309, %v2387, 0
      %v2513 = vsel %vm309, %v2388, 0
      %v2516 = vsel %vm309, %v2389, 0
      %v2519 = vsel %vm309, %v2390, 0
      %v2522 = vsel %vm309, %v2391, 0
      %v2525 = vsel %vm309, %v2392, 0
      %v2528 = vsel %vm309, %v2393, 0
      %v2531 = vsel %vm309, %v2394, 0
      %v2534 = vsel %vm309, %v2395, 0
      %v2537 = vsel %vm309, %v2396, 0
      %v2540 = vsel %vm309, %v2397, 0
      %v2543 = vsel %vm538, %v2348, 0
      %2545 = vmatprep.subr.mxu0 0.0
      %2546 = vmatpush1.msra.mxu0 %v2543
      %2547 = vmatprep.subr.mxu0 0.0
      %2548 = vmatpush1.msra.mxu0 0.0
      %2549 = vmatprep.subr.mxu0 0.0
      %2550 = vmatpush1.msra.mxu0 0.0
      %2551 = vmatprep.subr.mxu0 0.0
      %2552 = vmatpush1.msra.mxu0 0.0
      %2553 = vmatprep.subr.mxu0 0.0
      %2554 = vmatpush1.msra.mxu0 0.0
      %2555 = vmatprep.subr.mxu0 0.0
      %2556 = vmatpush1.msra.mxu0 0.0
      %2557 = vmatprep.subr.mxu0 0.0
      %2558 = vmatpush1.msra.mxu0 0.0
      %2559 = vmatprep.subr.mxu0 0.0
      %2560 = vmatpush1.msra.mxu0 0.0
      %2561 = vmatprep.subr.mxu0 0.0
      %2562 = vmatpush1.msra.mxu0 0.0
      %2563 = vmatprep.subr.mxu0 0.0
      %2564 = vmatpush1.msra.mxu0 0.0
      %2565 = vmatprep.subr.mxu0 0.0
      %2566 = vmatpush1.msra.mxu0 0.0
      %2567 = vmatprep.subr.mxu0 0.0
      %2568 = vmatpush1.msra.mxu0 0.0
      %2569 = vmatprep.subr.mxu0 0.0
      %2570 = vmatpush1.msra.mxu0 0.0
      %2571 = vmatprep.subr.mxu0 0.0
      %2572 = vmatpush1.msra.mxu0 0.0
      %2573 = vmatprep.subr.mxu0 0.0
      %2574 = vmatpush1.msra.mxu0 0.0
      %2575 = vmatprep.subr.mxu0 0.0
      %2576 = vmatpush1.msra.mxu0 0.0
      %2577 = vmatprep.subr.mxu0 0.0
      %2578 = vmatpush1.msra.mxu0 0.0
      %2579 = vmatprep.subr.mxu0 0.0
      %2580 = vmatpush1.msra.mxu0 0.0
      %2581 = vmatprep.subr.mxu0 0.0
      %2582 = vmatpush1.msra.mxu0 0.0
      %2583 = vmatprep.subr.mxu0 0.0
      %2584 = vmatpush1.msra.mxu0 0.0
      %2585 = vmatprep.subr.mxu0 0.0
      %2586 = vmatpush1.msra.mxu0 0.0
      %2587 = vmatprep.subr.mxu0 0.0
      %2588 = vmatpush1.msra.mxu0 0.0
      %2589 = vmatprep.subr.mxu0 0.0
      %2590 = vmatpush1.msra.mxu0 0.0
      %2591 = vmatprep.subr.mxu0 0.0
      %2592 = vmatpush1.msra.mxu0 0.0
      %2593 = vmatprep.subr.mxu0 0.0
      %2594 = vmatpush1.msra.mxu0 0.0
      %2595 = vmatprep.subr.mxu0 0.0
      %2596 = vmatpush1.msra.mxu0 0.0
      %2597 = vmatprep.subr.mxu0 0.0
      %2598 = vmatpush1.msra.mxu0 0.0
      %2599 = vmatprep.subr.mxu0 0.0
      %2600 = vmatpush1.msra.mxu0 0.0
      %2601 = vmatprep.subr.mxu0 0.0
      %2602 = vmatpush1.msra.mxu0 0.0
      %2603 = vmatprep.subr.mxu0 0.0
      %2604 = vmatpush1.msra.mxu0 0.0
      %2605 = vmatprep.subr.mxu0 0.0
      %2606 = vmatpush1.msra.mxu0 0.0
      %2607 = vmatprep.subr.mxu0 0.0
      %2608 = vmatpush1.msra.mxu0 0.0
      %2609 = vmatprep.mubr.f32.mxu0 0.0
      %2610 = vmatmul.mubr.f32.gmra.mrb[0].mxu0 %v2399
      %v2611 = vpop.f32.mrb[0].mxu0
      %v2612 = vadd.f32 0.0, %v2611
      %v2613 = vpop.f32.mrb[0].mxu0
      %2614 = vmatprep.mubr.f32.mxu0 0.0
      %2615 = vmatmul.mubr.f32.gmra.mrb[0].mxu0 %v2402
      %v2616 = vpop.f32.mrb[0].mxu0
      %v2617 = vadd.f32 0.0, %v2616
      %v2618 = vpop.f32.mrb[0].mxu0
      %2619 = vmatprep.mubr.f32.mxu0 0.0
      %2620 = vmatmul.mubr.f32.gmra.mrb[0].mxu0 %v2405
      %v2621 = vpop.f32.mrb[0].mxu0
      %v2622 = vadd.f32 0.0, %v2621
      %v2623 = vpop.f32.mrb[0].mxu0
      %2624 = vmatprep.mubr.f32.mxu0 0.0
      %2625 = vmatmul.mubr.f32.gmra.mrb[0].mxu0 %v2408
      %v2626 = vpop.f32.mrb[0].mxu0
      %v2627 = vadd.f32 0.0, %v2626
      %v2628 = vpop.f32.mrb[0].mxu0
      %2629 = vmatprep.mubr.f32.mxu0 0.0
      %2630 = vmatmul.mubr.f32.gmra.mrb[0].mxu0 %v2411
      %v2631 = vpop.f32.mrb[0].mxu0
      %v2632 = vadd.f32 0.0, %v2631
      %v2633 = vpop.f32.mrb[0].mxu0
      %2634 = vmatprep.mubr.f32.mxu0 0.0
      %2635 = vmatmul.mubr.f32.gmra.mrb[0].mxu0 %v2414
      %v2636 = vpop.f32.mrb[0].mxu0
      %v2637 = vadd.f32 0.0, %v2636
      %v2638 = vpop.f32.mrb[0].mxu0
      %2639 = vmatprep.mubr.f32.mxu0 0.0
      %2640 = vmatmul.mubr.f32.gmra.mrb[0].mxu0 %v2417
      %v2641 = vpop.f32.mrb[0].mxu0
      %v2642 = vadd.f32 0.0, %v2641
      %v2643 = vpop.f32.mrb[0].mxu0
      %2644 = vmatprep.mubr.f32.mxu0 0.0
      %2645 = vmatmul.mubr.f32.gmra.mrb[0].mxu0 %v2420
      %v2646 = vpop.f32.mrb[0].mxu0
      %v2647 = vadd.f32 0.0, %v2646
      %v2648 = vpop.f32.mrb[0].mxu0
      %2649 = vmatprep.mubr.f32.mxu0 0.0
      %2650 = vmatmul.mubr.f32.gmra.mrb[0].mxu0 %v2423
      %v2651 = vpop.f32.mrb[0].mxu0
      %v2652 = vadd.f32 0.0, %v2651
      %v2653 = vpop.f32.mrb[0].mxu0
      %2654 = vmatprep.mubr.f32.mxu0 0.0
      %2655 = vmatmul.mubr.f32.gmra.mrb[0].mxu0 %v2426
      %v2656 = vpop.f32.mrb[0].mxu0
      %v2657 = vadd.f32 0.0, %v2656
      %v2658 = vpop.f32.mrb[0].mxu0
      %2659 = vmatprep.mubr.f32.mxu0 0.0
      %2660 = vmatmul.mubr.f32.gmra.mrb[0].mxu0 %v2429
      %v2661 = vpop.f32.mrb[0].mxu0
      %v2662 = vadd.f32 0.0, %v2661
      %v2663 = vpop.f32.mrb[0].mxu0
      %2664 = vmatprep.mubr.f32.mxu0 0.0
      %2665 = vmatmul.mubr.f32.gmra.mrb[0].mxu0 %v2432
      %v2666 = vpop.f32.mrb[0].mxu0
      %v2667 = vadd.f32 0.0, %v2666
      %v2668 = vpop.f32.mrb[0].mxu0
      %2669 = vmatprep.mubr.f32.mxu0 0.0
      %2670 = vmatmul.mubr.f32.gmra.mrb[0].mxu0 %v2435
      %v2671 = vpop.f32.mrb[0].mxu0
      %v2672 = vadd.f32 0.0, %v2671
      %v2673 = vpop.f32.mrb[0].mxu0
      %2674 = vmatprep.mubr.f32.mxu0 0.0
      %2675 = vmatmul.mubr.f32.gmra.mrb[0].mxu0 %v2438
      %v2676 = vpop.f32.mrb[0].mxu0
      %v2677 = vadd.f32 0.0, %v2676
      %v2678 = vpop.f32.mrb[0].mxu0
      %2679 = vmatprep.mubr.f32.mxu0 0.0
      %2680 = vmatmul.mubr.f32.gmra.mrb[0].mxu0 %v2441
      %v2681 = vpop.f32.mrb[0].mxu0
      %v2682 = vadd.f32 0.0, %v2681
      %v2683 = vpop.f32.mrb[0].mxu0
      %2684 = vmatprep.mubr.f32.mxu0 0.0
      %2685 = vmatmul.mubr.f32.gmra.mrb[0].mxu0 %v2444
      %v2686 = vpop.f32.mrb[0].mxu0
      %v2687 = vadd.f32 0.0, %v2686
      %v2688 = vpop.f32.mrb[0].mxu0
      %2689 = vmatprep.mubr.f32.mxu0 0.0
      %2690 = vmatmul.mubr.f32.gmra.mrb[0].mxu0 %v2447
      %v2691 = vpop.f32.mrb[0].mxu0
      %v2692 = vadd.f32 0.0, %v2691
      %v2693 = vpop.f32.mrb[0].mxu0
      %2694 = vmatprep.mubr.f32.mxu0 0.0
      %2695 = vmatmul.mubr.f32.gmra.mrb[0].mxu0 %v2450
      %v2696 = vpop.f32.mrb[0].mxu0
      %v2697 = vadd.f32 0.0, %v2696
      %v2698 = vpop.f32.mrb[0].mxu0
      %2699 = vmatprep.mubr.f32.mxu0 0.0
      %2700 = vmatmul.mubr.f32.gmra.mrb[0].mxu0 %v2453
      %v2701 = vpop.f32.mrb[0].mxu0
      %v2702 = vadd.f32 0.0, %v2701
      %v2703 = vpop.f32.mrb[0].mxu0
      %2704 = vmatprep.mubr.f32.mxu0 0.0
      %2705 = vmatmul.mubr.f32.gmra.mrb[0].mxu0 %v2456
      %v2706 = vpop.f32.mrb[0].mxu0
      %v2707 = vadd.f32 0.0, %v2706
      %v2708 = vpop.f32.mrb[0].mxu0
      %2709 = vmatprep.mubr.f32.mxu0 0.0
      %2710 = vmatmul.mubr.f32.gmra.mrb[0].mxu0 %v2459
      %v2711 = vpop.f32.mrb[0].mxu0
      %v2712 = vadd.f32 0.0, %v2711
      %v2713 = vpop.f32.mrb[0].mxu0
      %2714 = vmatprep.mubr.f32.mxu0 0.0
      %2715 = vmatmul.mubr.f32.gmra.mrb[0].mxu0 %v2462
      %v2716 = vpop.f32.mrb[0].mxu0
      %v2717 = vadd.f32 0.0, %v2716
      %v2718 = vpop.f32.mrb[0].mxu0
      %2719 = vmatprep.mubr.f32.mxu0 0.0
      %2720 = vmatmul.mubr.f32.gmra.mrb[0].mxu0 %v2465
      %v2721 = vpop.f32.mrb[0].mxu0
      %v2722 = vadd.f32 0.0, %v2721
      %v2723 = vpop.f32.mrb[0].mxu0
      %2724 = vmatprep.mubr.f32.mxu0 0.0
      %2725 = vmatmul.mubr.f32.gmra.mrb[0].mxu0 %v2468
      %v2726 = vpop.f32.mrb[0].mxu0
      %v2727 = vadd.f32 0.0, %v2726
      %v2728 = vpop.f32.mrb[0].mxu0
      %2729 = vmatprep.mubr.f32.mxu0 0.0
      %2730 = vmatmul.mubr.f32.gmra.mrb[0].mxu0 %v2471
      %v2731 = vpop.f32.mrb[0].mxu0
      %v2732 = vadd.f32 0.0, %v2731
      %v2733 = vpop.f32.mrb[0].mxu0
      %2734 = vmatprep.mubr.f32.mxu0 0.0
      %2735 = vmatmul.mubr.f32.gmra.mrb[0].mxu0 %v2474
      %v2736 = vpop.f32.mrb[0].mxu0
      %v2737 = vadd.f32 0.0, %v2736
      %v2738 = vpop.f32.mrb[0].mxu0
      %2739 = vmatprep.mubr.f32.mxu0 0.0
      %2740 = vmatmul.mubr.f32.gmra.mrb[0].mxu0 %v2477
      %v2741 = vpop.f32.mrb[0].mxu0
      %v2742 = vadd.f32 0.0, %v2741
      %v2743 = vpop.f32.mrb[0].mxu0
      %2744 = vmatprep.mubr.f32.mxu0 0.0
      %2745 = vmatmul.mubr.f32.gmra.mrb[0].mxu0 %v2480
      %v2746 = vpop.f32.mrb[0].mxu0
      %v2747 = vadd.f32 0.0, %v2746
      %v2748 = vpop.f32.mrb[0].mxu0
      %2749 = vmatprep.mubr.f32.mxu0 0.0
      %2750 = vmatmul.mubr.f32.gmra.mrb[0].mxu0 %v2483
      %v2751 = vpop.f32.mrb[0].mxu0
      %v2752 = vadd.f32 0.0, %v2751
      %v2753 = vpop.f32.mrb[0].mxu0
      %2754 = vmatprep.mubr.f32.mxu0 0.0
      %2755 = vmatmul.mubr.f32.gmra.mrb[0].mxu0 %v2486
      %v2756 = vpop.f32.mrb[0].mxu0
      %v2757 = vadd.f32 0.0, %v2756
      %v2758 = vpop.f32.mrb[0].mxu0
      %2759 = vmatprep.mubr.f32.mxu0 0.0
      %2760 = vmatmul.mubr.f32.gmra.mrb[0].mxu0 %v2489
      %v2761 = vpop.f32.mrb[0].mxu0
      %v2762 = vadd.f32 0.0, %v2761
      %v2763 = vpop.f32.mrb[0].mxu0
      %2764 = vmatprep.mubr.f32.mxu0 0.0
      %2765 = vmatmul.mubr.f32.gmra.mrb[0].mxu0 %v2492
      %v2766 = vpop.f32.mrb[0].mxu0
      %v2767 = vadd.f32 0.0, %v2766
      %v2768 = vpop.f32.mrb[0].mxu0
      %2769 = vmatprep.mubr.f32.mxu0 0.0
      %2770 = vmatmul.mubr.f32.gmra.mrb[0].mxu0 %v2495
      %v2771 = vpop.f32.mrb[0].mxu0
      %v2772 = vadd.f32 0.0, %v2771
      %v2773 = vpop.f32.mrb[0].mxu0
      %2774 = vmatprep.mubr.f32.mxu0 0.0
      %2775 = vmatmul.mubr.f32.gmra.mrb[0].mxu0 %v2498
      %v2776 = vpop.f32.mrb[0].mxu0
      %v2777 = vadd.f32 0.0, %v2776
      %v2778 = vpop.f32.mrb[0].mxu0
      %2779 = vmatprep.mubr.f32.mxu0 0.0
      %2780 = vmatmul.mubr.f32.gmra.mrb[0].mxu0 %v2501
      %v2781 = vpop.f32.mrb[0].mxu0
      %v2782 = vadd.f32 0.0, %v2781
      %v2783 = vpop.f32.mrb[0].mxu0
      %2784 = vmatprep.mubr.f32.mxu0 0.0
      %2785 = vmatmul.mubr.f32.gmra.mrb[0].mxu0 %v2504
      %v2786 = vpop.f32.mrb[0].mxu0
      %v2787 = vadd.f32 0.0, %v2786
      %v2788 = vpop.f32.mrb[0].mxu0
      %2789 = vmatprep.mubr.f32.mxu0 0.0
      %2790 = vmatmul.mubr.f32.gmra.mrb[0].mxu0 %v2507
      %v2791 = vpop.f32.mrb[0].mxu0
      %v2792 = vadd.f32 0.0, %v2791
      %v2793 = vpop.f32.mrb[0].mxu0
      %2794 = vmatprep.mubr.f32.mxu0 0.0
      %2795 = vmatmul.mubr.f32.gmra.mrb[0].mxu0 %v2510
      %v2796 = vpop.f32.mrb[0].mxu0
      %v2797 = vadd.f32 0.0, %v2796
      %v2798 = vpop.f32.mrb[0].mxu0
      %2799 = vmatprep.mubr.f32.mxu0 0.0
      %2800 = vmatmul.mubr.f32.gmra.mrb[0].mxu0 %v2513
      %v2801 = vpop.f32.mrb[0].mxu0
      %v2802 = vadd.f32 0.0, %v2801
      %v2803 = vpop.f32.mrb[0].mxu0
      %2804 = vmatprep.mubr.f32.mxu0 0.0
      %2805 = vmatmul.mubr.f32.gmra.mrb[0].mxu0 %v2516
      %v2806 = vpop.f32.mrb[0].mxu0
      %v2807 = vadd.f32 0.0, %v2806
      %v2808 = vpop.f32.mrb[0].mxu0
      %2809 = vmatprep.mubr.f32.mxu0 0.0
      %2810 = vmatmul.mubr.f32.gmra.mrb[0].mxu0 %v2519
      %v2811 = vpop.f32.mrb[0].mxu0
      %v2812 = vadd.f32 0.0, %v2811
      %v2813 = vpop.f32.mrb[0].mxu0
      %2814 = vmatprep.mubr.f32.mxu0 0.0
      %2815 = vmatmul.mubr.f32.gmra.mrb[0].mxu0 %v2522
      %v2816 = vpop.f32.mrb[0].mxu0
      %v2817 = vadd.f32 0.0, %v2816
      %v2818 = vpop.f32.mrb[0].mxu0
      %2819 = vmatprep.mubr.f32.mxu0 0.0
      %2820 = vmatmul.mubr.f32.gmra.mrb[0].mxu0 %v2525
      %v2821 = vpop.f32.mrb[0].mxu0
      %v2822 = vadd.f32 0.0, %v2821
      %v2823 = vpop.f32.mrb[0].mxu0
      %2824 = vmatprep.mubr.f32.mxu0 0.0
      %2825 = vmatmul.mubr.f32.gmra.mrb[0].mxu0 %v2528
      %v2826 = vpop.f32.mrb[0].mxu0
      %v2827 = vadd.f32 0.0, %v2826
      %v2828 = vpop.f32.mrb[0].mxu0
      %2829 = vmatprep.mubr.f32.mxu0 0.0
      %2830 = vmatmul.mubr.f32.gmra.mrb[0].mxu0 %v2531
      %v2831 = vpop.f32.mrb[0].mxu0
      %v2832 = vadd.f32 0.0, %v2831
      %v2833 = vpop.f32.mrb[0].mxu0
      %2834 = vmatprep.mubr.f32.mxu0 0.0
      %2835 = vmatmul.mubr.f32.gmra.mrb[0].mxu0 %v2534
      %v2836 = vpop.f32.mrb[0].mxu0
      %v2837 = vadd.f32 0.0, %v2836
      %v2838 = vpop.f32.mrb[0].mxu0
      %2839 = vmatprep.mubr.f32.mxu0 0.0
      %2840 = vmatmul.mubr.f32.gmra.mrb[0].mxu0 %v2537
      %v2841 = vpop.f32.mrb[0].mxu0
      %v2842 = vadd.f32 0.0, %v2841
      %v2843 = vpop.f32.mrb[0].mxu0
      %2844 = vmatprep.mubr.f32.mxu0 0.0
      %2845 = vmatmul.mubr.f32.gmra.mrb[0].mxu0 %v2540
      %v2846 = vpop.f32.mrb[0].mxu0
      %v2847 = vadd.f32 0.0, %v2846
      %v2848 = vpop.f32.mrb[0].mxu0
      %2849 = vdwg.mxu0
      %v2882 = vrot.slane %v2612, 7
      %v2883 = vrot.slane %v2617, 7
      %v2884 = vsel %vm879, %v2882, %v2883
      %v2885 = vrot.slane %v2627, 7
      %v2886 = vrot.slane %v2632, 7
      %v2887 = vsel %vm879, %v2885, %v2886
      %v2888 = vrot.slane %v2642, 7
      %v2889 = vrot.slane %v2647, 7
      %v2890 = vsel %vm879, %v2888, %v2889
      %v2891 = vrot.slane %v2657, 7
      %v2892 = vrot.slane %v2662, 7
      %v2893 = vsel %vm879, %v2891, %v2892
      %v2894 = vrot.slane %v2672, 7
      %v2895 = vrot.slane %v2677, 7
      %v2896 = vsel %vm879, %v2894, %v2895
      %v2897 = vrot.slane %v2687, 7
      %v2898 = vrot.slane %v2692, 7
      %v2899 = vsel %vm879, %v2897, %v2898
      %v2900 = vrot.slane %v2702, 7
      %v2901 = vrot.slane %v2707, 7
      %v2902 = vsel %vm879, %v2900, %v2901
      %v2903 = vrot.slane %v2717, 7
      %v2904 = vrot.slane %v2722, 7
      %v2905 = vsel %vm879, %v2903, %v2904
      %v2906 = vrot.slane %v2732, 7
      %v2907 = vrot.slane %v2737, 7
      %v2908 = vsel %vm879, %v2906, %v2907
      %v2909 = vrot.slane %v2747, 7
      %v2910 = vrot.slane %v2752, 7
      %v2911 = vsel %vm879, %v2909, %v2910
      %v2912 = vrot.slane %v2762, 7
      %v2913 = vrot.slane %v2767, 7
      %v2914 = vsel %vm879, %v2912, %v2913
      %v2915 = vrot.slane %v2777, 7
      %v2916 = vrot.slane %v2782, 7
      %v2917 = vsel %vm879, %v2915, %v2916
      %v2918 = vrot.slane %v2792, 7
      %v2919 = vrot.slane %v2797, 7
      %v2920 = vsel %vm879, %v2918, %v2919
      %v2921 = vrot.slane %v2807, 7
      %v2922 = vrot.slane %v2812, 7
      %v2923 = vsel %vm879, %v2921, %v2922
      %v2924 = vrot.slane %v2822, 7
      %v2925 = vrot.slane %v2827, 7
      %v2926 = vsel %vm879, %v2924, %v2925
      %v2927 = vrot.slane %v2837, 7
      %v2928 = vrot.slane %v2842, 7
      %v2929 = vsel %vm879, %v2927, %v2928
      %v2962 = vsel %vm879, 0.0, %v2882
      %v2963 = vsel %vm879, 0.0, %v2885
      %v2964 = vsel %vm879, 0.0, %v2888
      %v2965 = vsel %vm879, 0.0, %v2891
      %v2966 = vsel %vm879, 0.0, %v2894
      %v2967 = vsel %vm879, 0.0, %v2897
      %v2968 = vsel %vm879, 0.0, %v2900
      %v2969 = vsel %vm879, 0.0, %v2903
      %v2970 = vsel %vm879, 0.0, %v2906
      %v2971 = vsel %vm879, 0.0, %v2909
      %v2972 = vsel %vm879, 0.0, %v2912
      %v2973 = vsel %vm879, 0.0, %v2915
      %v2974 = vsel %vm879, 0.0, %v2918
      %v2975 = vsel %vm879, 0.0, %v2921
      %v2976 = vsel %vm879, 0.0, %v2924
      %v2977 = vsel %vm879, 0.0, %v2927
      %2978 = vrot.lane.b32.xlu0 %v2612, 124
      %v2979 = vpop.permute.xlu0 %2978
      %2980 = vrot.lane.b32.xlu0 %v2617, 124
      %v2981 = vpop.permute.xlu0 %2980
      %2982 = vrot.lane.b32.xlu0 %v2627, 124
      %v2983 = vpop.permute.xlu0 %2982
      %2984 = vrot.lane.b32.xlu0 %v2632, 124
      %v2985 = vpop.permute.xlu0 %2984
      %2986 = vrot.lane.b32.xlu0 %v2642, 124
      %v2987 = vpop.permute.xlu0 %2986
      %2988 = vrot.lane.b32.xlu0 %v2647, 124
      %v2989 = vpop.permute.xlu0 %2988
      %2990 = vrot.lane.b32.xlu0 %v2657, 124
      %v2991 = vpop.permute.xlu0 %2990
      %2992 = vrot.lane.b32.xlu0 %v2662, 124
      %v2993 = vpop.permute.xlu0 %2992
      %2994 = vrot.lane.b32.xlu0 %v2672, 124
      %v2995 = vpop.permute.xlu0 %2994
      %2996 = vrot.lane.b32.xlu0 %v2677, 124
      %v2997 = vpop.permute.xlu0 %2996
      %2998 = vrot.lane.b32.xlu0 %v2687, 124
      %v2999 = vpop.permute.xlu0 %2998
      %3000 = vrot.lane.b32.xlu0 %v2692, 124
      %v3001 = vpop.permute.xlu0 %3000
      %3002 = vrot.lane.b32.xlu0 %v2702, 124
      %v3003 = vpop.permute.xlu0 %3002
      %3004 = vrot.lane.b32.xlu0 %v2707, 124
      %v3005 = vpop.permute.xlu0 %3004
      %3006 = vrot.lane.b32.xlu0 %v2717, 124
      %v3007 = vpop.permute.xlu0 %3006
      %3008 = vrot.lane.b32.xlu0 %v2722, 124
      %v3009 = vpop.permute.xlu0 %3008
      %3010 = vrot.lane.b32.xlu0 %v2732, 124
      %v3011 = vpop.permute.xlu0 %3010
      %3012 = vrot.lane.b32.xlu0 %v2737, 124
      %v3013 = vpop.permute.xlu0 %3012
      %3014 = vrot.lane.b32.xlu0 %v2747, 124
      %v3015 = vpop.permute.xlu0 %3014
      %3016 = vrot.lane.b32.xlu0 %v2752, 124
      %v3017 = vpop.permute.xlu0 %3016
      %3018 = vrot.lane.b32.xlu0 %v2762, 124
      %v3019 = vpop.permute.xlu0 %3018
      %3020 = vrot.lane.b32.xlu0 %v2767, 124
      %v3021 = vpop.permute.xlu0 %3020
      %3022 = vrot.lane.b32.xlu0 %v2777, 124
      %v3023 = vpop.permute.xlu0 %3022
      %3024 = vrot.lane.b32.xlu0 %v2782, 124
      %v3025 = vpop.permute.xlu0 %3024
      %3026 = vrot.lane.b32.xlu0 %v2792, 124
      %v3027 = vpop.permute.xlu0 %3026
      %3028 = vrot.lane.b32.xlu0 %v2797, 124
      %v3029 = vpop.permute.xlu0 %3028
      %3030 = vrot.lane.b32.xlu0 %v2807, 124
      %v3031 = vpop.permute.xlu0 %3030
      %3032 = vrot.lane.b32.xlu0 %v2812, 124
      %v3033 = vpop.permute.xlu0 %3032
      %3034 = vrot.lane.b32.xlu0 %v2822, 124
      %v3035 = vpop.permute.xlu0 %3034
      %3036 = vrot.lane.b32.xlu0 %v2827, 124
      %v3037 = vpop.permute.xlu0 %3036
      %3038 = vrot.lane.b32.xlu0 %v2837, 124
      %v3039 = vpop.permute.xlu0 %3038
      %3040 = vrot.lane.b32.xlu0 %v2842, 124
      %v3041 = vpop.permute.xlu0 %3040
      %v3074 = vadd.f32 %v2962, %v2979
      %v3075 = vadd.f32 %v2884, %v2981
      %v3076 = vadd.f32 %v2963, %v2983
      %v3077 = vadd.f32 %v2887, %v2985
      %v3078 = vadd.f32 %v2964, %v2987
      %v3079 = vadd.f32 %v2890, %v2989
      %v3080 = vadd.f32 %v2965, %v2991
      %v3081 = vadd.f32 %v2893, %v2993
      %v3082 = vadd.f32 %v2966, %v2995
      %v3083 = vadd.f32 %v2896, %v2997
      %v3084 = vadd.f32 %v2967, %v2999
      %v3085 = vadd.f32 %v2899, %v3001
      %v3086 = vadd.f32 %v2968, %v3003
      %v3087 = vadd.f32 %v2902, %v3005
      %v3088 = vadd.f32 %v2969, %v3007
      %v3089 = vadd.f32 %v2905, %v3009
      %v3090 = vadd.f32 %v2970, %v3011
      %v3091 = vadd.f32 %v2908, %v3013
      %v3092 = vadd.f32 %v2971, %v3015
      %v3093 = vadd.f32 %v2911, %v3017
      %v3094 = vadd.f32 %v2972, %v3019
      %v3095 = vadd.f32 %v2914, %v3021
      %v3096 = vadd.f32 %v2973, %v3023
      %v3097 = vadd.f32 %v2917, %v3025
      %v3098 = vadd.f32 %v2974, %v3027
      %v3099 = vadd.f32 %v2920, %v3029
      %v3100 = vadd.f32 %v2975, %v3031
      %v3101 = vadd.f32 %v2923, %v3033
      %v3102 = vadd.f32 %v2976, %v3035
      %v3103 = vadd.f32 %v2926, %v3037
      %v3104 = vadd.f32 %v2977, %v3039
      %v3105 = vadd.f32 %v2929, %v3041
      %v3122 = vrot.slane %v2612, 1
      %v3123 = vrot.slane %v2617, 1
      %v3124 = vsel %vm1120, %v3122, %v3123
      %v3125 = vrot.slane %v2622, 1
      %v3126 = vsel %vm1120, %v3123, %v3125
      %v3127 = vrot.slane %v2627, 1
      %v3128 = vrot.slane %v2632, 1
      %v3129 = vsel %vm1120, %v3127, %v3128
      %v3130 = vrot.slane %v2637, 1
      %v3131 = vsel %vm1120, %v3128, %v3130
      %v3132 = vrot.slane %v2642, 1
      %v3133 = vrot.slane %v2647, 1
      %v3134 = vsel %vm1120, %v3132, %v3133
      %v3135 = vrot.slane %v2652, 1
      %v3136 = vsel %vm1120, %v3133, %v3135
      %v3137 = vrot.slane %v2657, 1
      %v3138 = vrot.slane %v2662, 1
      %v3139 = vsel %vm1120, %v3137, %v3138
      %v3140 = vrot.slane %v2667, 1
      %v3141 = vsel %vm1120, %v3138, %v3140
      %v3142 = vrot.slane %v2672, 1
      %v3143 = vrot.slane %v2677, 1
      %v3144 = vsel %vm1120, %v3142, %v3143
      %v3145 = vrot.slane %v2682, 1
      %v3146 = vsel %vm1120, %v3143, %v3145
      %v3147 = vrot.slane %v2687, 1
      %v3148 = vrot.slane %v2692, 1
      %v3149 = vsel %vm1120, %v3147, %v3148
      %v3150 = vrot.slane %v2697, 1
      %v3151 = vsel %vm1120, %v3148, %v3150
      %v3152 = vrot.slane %v2702, 1
      %v3153 = vrot.slane %v2707, 1
      %v3154 = vsel %vm1120, %v3152, %v3153
      %v3155 = vrot.slane %v2712, 1
      %v3156 = vsel %vm1120, %v3153, %v3155
      %v3157 = vrot.slane %v2717, 1
      %v3158 = vrot.slane %v2722, 1
      %v3159 = vsel %vm1120, %v3157, %v3158
      %v3160 = vrot.slane %v2727, 1
      %v3161 = vsel %vm1120, %v3158, %v3160
      %v3162 = vrot.slane %v2732, 1
      %v3163 = vrot.slane %v2737, 1
      %v3164 = vsel %vm1120, %v3162, %v3163
      %v3165 = vrot.slane %v2742, 1
      %v3166 = vsel %vm1120, %v3163, %v3165
      %v3167 = vrot.slane %v2747, 1
      %v3168 = vrot.slane %v2752, 1
      %v3169 = vsel %vm1120, %v3167, %v3168
      %v3170 = vrot.slane %v2757, 1
      %v3171 = vsel %vm1120, %v3168, %v3170
      %v3172 = vrot.slane %v2762, 1
      %v3173 = vrot.slane %v2767, 1
      %v3174 = vsel %vm1120, %v3172, %v3173
      %v3175 = vrot.slane %v2772, 1
      %v3176 = vsel %vm1120, %v3173, %v3175
      %v3177 = vrot.slane %v2777, 1
      %v3178 = vrot.slane %v2782, 1
      %v3179 = vsel %vm1120, %v3177, %v3178
      %v3180 = vrot.slane %v2787, 1
      %v3181 = vsel %vm1120, %v3178, %v3180
      %v3182 = vrot.slane %v2792, 1
      %v3183 = vrot.slane %v2797, 1
      %v3184 = vsel %vm1120, %v3182, %v3183
      %v3185 = vrot.slane %v2802, 1
      %v3186 = vsel %vm1120, %v3183, %v3185
      %v3187 = vrot.slane %v2807, 1
      %v3188 = vrot.slane %v2812, 1
      %v3189 = vsel %vm1120, %v3187, %v3188
      %v3190 = vrot.slane %v2817, 1
      %v3191 = vsel %vm1120, %v3188, %v3190
      %v3192 = vrot.slane %v2822, 1
      %v3193 = vrot.slane %v2827, 1
      %v3194 = vsel %vm1120, %v3192, %v3193
      %v3195 = vrot.slane %v2832, 1
      %v3196 = vsel %vm1120, %v3193, %v3195
      %v3197 = vrot.slane %v2837, 1
      %v3198 = vrot.slane %v2842, 1
      %v3199 = vsel %vm1120, %v3197, %v3198
      %v3200 = vrot.slane %v2847, 1
      %v3201 = vsel %vm1120, %v3198, %v3200
      %3202 = vrot.lane.b32.xlu0 %v3124, 120
      %v3203 = vpop.permute.xlu0 %3202
      %3204 = vrot.lane.b32.xlu0 %v3126, 120
      %v3205 = vpop.permute.xlu0 %3204
      %3206 = vrot.lane.b32.xlu0 %v3129, 120
      %v3207 = vpop.permute.xlu0 %3206
      %3208 = vrot.lane.b32.xlu0 %v3131, 120
      %v3209 = vpop.permute.xlu0 %3208
      %3210 = vrot.lane.b32.xlu0 %v3134, 120
      %v3211 = vpop.permute.xlu0 %3210
      %3212 = vrot.lane.b32.xlu0 %v3136, 120
      %v3213 = vpop.permute.xlu0 %3212
      %3214 = vrot.lane.b32.xlu0 %v3139, 120
      %v3215 = vpop.permute.xlu0 %3214
      %3216 = vrot.lane.b32.xlu0 %v3141, 120
      %v3217 = vpop.permute.xlu0 %3216
      %3218 = vrot.lane.b32.xlu0 %v3144, 120
      %v3219 = vpop.permute.xlu0 %3218
      %3220 = vrot.lane.b32.xlu0 %v3146, 120
      %v3221 = vpop.permute.xlu0 %3220
      %3222 = vrot.lane.b32.xlu0 %v3149, 120
      %v3223 = vpop.permute.xlu0 %3222
      %3224 = vrot.lane.b32.xlu0 %v3151, 120
      %v3225 = vpop.permute.xlu0 %3224
      %3226 = vrot.lane.b32.xlu0 %v3154, 120
      %v3227 = vpop.permute.xlu0 %3226
      %3228 = vrot.lane.b32.xlu0 %v3156, 120
      %v3229 = vpop.permute.xlu0 %3228
      %3230 = vrot.lane.b32.xlu0 %v3159, 120
      %v3231 = vpop.permute.xlu0 %3230
      %3232 = vrot.lane.b32.xlu0 %v3161, 120
      %v3233 = vpop.permute.xlu0 %3232
      %3234 = vrot.lane.b32.xlu0 %v3164, 120
      %v3235 = vpop.permute.xlu0 %3234
      %3236 = vrot.lane.b32.xlu0 %v3166, 120
      %v3237 = vpop.permute.xlu0 %3236
      %3238 = vrot.lane.b32.xlu0 %v3169, 120
      %v3239 = vpop.permute.xlu0 %3238
      %3240 = vrot.lane.b32.xlu0 %v3171, 120
      %v3241 = vpop.permute.xlu0 %3240
      %3242 = vrot.lane.b32.xlu0 %v3174, 120
      %v3243 = vpop.permute.xlu0 %3242
      %3244 = vrot.lane.b32.xlu0 %v3176, 120
      %v3245 = vpop.permute.xlu0 %3244
      %3246 = vrot.lane.b32.xlu0 %v3179, 120
      %v3247 = vpop.permute.xlu0 %3246
      %3248 = vrot.lane.b32.xlu0 %v3181, 120
      %v3249 = vpop.permute.xlu0 %3248
      %3250 = vrot.lane.b32.xlu0 %v3184, 120
      %v3251 = vpop.permute.xlu0 %3250
      %3252 = vrot.lane.b32.xlu0 %v3186, 120
      %v3253 = vpop.permute.xlu0 %3252
      %3254 = vrot.lane.b32.xlu0 %v3189, 120
      %v3255 = vpop.permute.xlu0 %3254
      %3256 = vrot.lane.b32.xlu0 %v3191, 120
      %v3257 = vpop.permute.xlu0 %3256
      %3258 = vrot.lane.b32.xlu0 %v3194, 120
      %v3259 = vpop.permute.xlu0 %3258
      %3260 = vrot.lane.b32.xlu0 %v3196, 120
      %v3261 = vpop.permute.xlu0 %3260
      %3262 = vrot.lane.b32.xlu0 %v3199, 120
      %v3263 = vpop.permute.xlu0 %3262
      %3264 = vrot.lane.b32.xlu0 %v3201, 120
      %v3265 = vpop.permute.xlu0 %3264
      %v3298 = vadd.f32 %v3074, %v3203
      %v3299 = vadd.f32 %v3075, %v3205
      %v3300 = vadd.f32 %v3076, %v3207
      %v3301 = vadd.f32 %v3077, %v3209
      %v3302 = vadd.f32 %v3078, %v3211
      %v3303 = vadd.f32 %v3079, %v3213
      %v3304 = vadd.f32 %v3080, %v3215
      %v3305 = vadd.f32 %v3081, %v3217
      %v3306 = vadd.f32 %v3082, %v3219
      %v3307 = vadd.f32 %v3083, %v3221
      %v3308 = vadd.f32 %v3084, %v3223
      %v3309 = vadd.f32 %v3085, %v3225
      %v3310 = vadd.f32 %v3086, %v3227
      %v3311 = vadd.f32 %v3087, %v3229
      %v3312 = vadd.f32 %v3088, %v3231
      %v3313 = vadd.f32 %v3089, %v3233
      %v3314 = vadd.f32 %v3090, %v3235
      %v3315 = vadd.f32 %v3091, %v3237
      %v3316 = vadd.f32 %v3092, %v3239
      %v3317 = vadd.f32 %v3093, %v3241
      %v3318 = vadd.f32 %v3094, %v3243
      %v3319 = vadd.f32 %v3095, %v3245
      %v3320 = vadd.f32 %v3096, %v3247
      %v3321 = vadd.f32 %v3097, %v3249
      %v3322 = vadd.f32 %v3098, %v3251
      %v3323 = vadd.f32 %v3099, %v3253
      %v3324 = vadd.f32 %v3100, %v3255
      %v3325 = vadd.f32 %v3101, %v3257
      %v3326 = vadd.f32 %v3102, %v3259
      %v3327 = vadd.f32 %v3103, %v3261
      %v3328 = vadd.f32 %v3104, %v3263
      %v3329 = vadd.f32 %v3105, %v3265
      %v3330 = vadd.f32 %v2313, %v3298
      %v3331 = vadd.f32 %v2314, %v3299
      %v3332 = vadd.f32 %v2315, %v3300
      %v3333 = vadd.f32 %v2316, %v3301
      %v3334 = vadd.f32 %v2317, %v3302
      %v3335 = vadd.f32 %v2318, %v3303
      %v3336 = vadd.f32 %v2319, %v3304
      %v3337 = vadd.f32 %v2320, %v3305
      %v3338 = vadd.f32 %v2321, %v3306
      %v3339 = vadd.f32 %v2322, %v3307
      %v3340 = vadd.f32 %v2323, %v3308
      %v3341 = vadd.f32 %v2324, %v3309
      %v3342 = vadd.f32 %v2325, %v3310
      %v3343 = vadd.f32 %v2326, %v3311
      %v3344 = vadd.f32 %v2327, %v3312
      %v3345 = vadd.f32 %v2328, %v3313
      %v3346 = vadd.f32 %v2329, %v3314
      %v3347 = vadd.f32 %v2330, %v3315
      %v3348 = vadd.f32 %v2331, %v3316
      %v3349 = vadd.f32 %v2332, %v3317
      %v3350 = vadd.f32 %v2333, %v3318
      %v3351 = vadd.f32 %v2334, %v3319
      %v3352 = vadd.f32 %v2335, %v3320
      %v3353 = vadd.f32 %v2336, %v3321
      %v3354 = vadd.f32 %v2337, %v3322
      %v3355 = vadd.f32 %v2338, %v3323
      %v3356 = vadd.f32 %v2339, %v3324
      %v3357 = vadd.f32 %v2340, %v3325
      %v3358 = vadd.f32 %v2341, %v3326
      %v3359 = vadd.f32 %v2342, %v3327
      %v3360 = vadd.f32 %v2343, %v3328
      %v3361 = vadd.f32 %v2344, %v3329
      %v3362 = vsel %vm309, %v3330, 0.0
      %v3363 = vsel %vm309, %v3331, 0.0
      %v3364 = vadd.f32 %v3362, %v3363
      %v3365 = vsel %vm309, %v3332, 0.0
      %v3366 = vadd.f32 %v3364, %v3365
      %v3367 = vsel %vm309, %v3333, 0.0
      %v3368 = vadd.f32 %v3366, %v3367
      %v3369 = vsel %vm309, %v3334, 0.0
      %v3370 = vadd.f32 %v3368, %v3369
      %v3371 = vsel %vm309, %v3335, 0.0
      %v3372 = vadd.f32 %v3370, %v3371
      %v3373 = vsel %vm309, %v3336, 0.0
      %v3374 = vadd.f32 %v3372, %v3373
      %v3375 = vsel %vm309, %v3337, 0.0
      %v3376 = vadd.f32 %v3374, %v3375
      %v3377 = vsel %vm309, %v3338, 0.0
      %v3378 = vadd.f32 %v3376, %v3377
      %v3379 = vsel %vm309, %v3339, 0.0
      %v3380 = vadd.f32 %v3378, %v3379
      %v3381 = vsel %vm309, %v3340, 0.0
      %v3382 = vadd.f32 %v3380, %v3381
      %v3383 = vsel %vm309, %v3341, 0.0
      %v3384 = vadd.f32 %v3382, %v3383
      %v3385 = vsel %vm309, %v3342, 0.0
      %v3386 = vadd.f32 %v3384, %v3385
      %v3387 = vsel %vm309, %v3343, 0.0
      %v3388 = vadd.f32 %v3386, %v3387
      %v3389 = vsel %vm309, %v3344, 0.0
      %v3390 = vadd.f32 %v3388, %v3389
      %v3391 = vsel %vm309, %v3345, 0.0
      %v3392 = vadd.f32 %v3390, %v3391
      %v3393 = vsel %vm309, %v3346, 0.0
      %v3394 = vadd.f32 %v3392, %v3393
      %v3395 = vsel %vm309, %v3347, 0.0
      %v3396 = vadd.f32 %v3394, %v3395
      %v3397 = vsel %vm309, %v3348, 0.0
      %v3398 = vadd.f32 %v3396, %v3397
      %v3399 = vsel %vm309, %v3349, 0.0
      %v3400 = vadd.f32 %v3398, %v3399
      %v3401 = vsel %vm309, %v3350, 0.0
      %v3402 = vadd.f32 %v3400, %v3401
      %v3403 = vsel %vm309, %v3351, 0.0
      %v3404 = vadd.f32 %v3402, %v3403
      %v3405 = vsel %vm309, %v3352, 0.0
      %v3406 = vadd.f32 %v3404, %v3405
      %v3407 = vsel %vm309, %v3353, 0.0
      %v3408 = vadd.f32 %v3406, %v3407
      %v3409 = vsel %vm309, %v3354, 0.0
      %v3410 = vadd.f32 %v3408, %v3409
      %v3411 = vsel %vm309, %v3355, 0.0
      %v3412 = vadd.f32 %v3410, %v3411
      %v3413 = vsel %vm309, %v3356, 0.0
      %v3414 = vadd.f32 %v3412, %v3413
      %v3415 = vsel %vm309, %v3357, 0.0
      %v3416 = vadd.f32 %v3414, %v3415
      %v3417 = vsel %vm309, %v3358, 0.0
      %v3418 = vadd.f32 %v3416, %v3417
      %v3419 = vsel %vm309, %v3359, 0.0
      %v3420 = vadd.f32 %v3418, %v3419
      %v3421 = vsel %vm309, %v3360, 0.0
      %v3422 = vadd.f32 %v3420, %v3421
      %v3423 = vsel %vm309, %v3361, 0.0
      %v3424 = vadd.f32 %v3422, %v3423
      %v3425 = vrot.slane %v3424, 4
      %v3426 = vadd.f32 %v3424, %v3425
      %v3427 = vrot.slane %v3426, 2
      %v3428 = vadd.f32 %v3426, %v3427
      %v3429 = vrot.slane %v3428, 1
      %v3430 = vadd.f32 %v3428, %v3429
      %v3431 = vrcp.pop 256.0
      %v3432 = vmul.f32 %v3430, %v3431
      %v3433 = vsub.f32 %v3330, %v3432
      %v3434 = vsub.f32 %v3331, %v3432
      %v3435 = vsub.f32 %v3332, %v3432
      %v3436 = vsub.f32 %v3333, %v3432
      %v3437 = vsub.f32 %v3334, %v3432
      %v3438 = vsub.f32 %v3335, %v3432
      %v3439 = vsub.f32 %v3336, %v3432
      %v3440 = vsub.f32 %v3337, %v3432
      %v3441 = vsub.f32 %v3338, %v3432
      %v3442 = vsub.f32 %v3339, %v3432
      %v3443 = vsub.f32 %v3340, %v3432
      %v3444 = vsub.f32 %v3341, %v3432
      %v3445 = vsub.f32 %v3342, %v3432
      %v3446 = vsub.f32 %v3343, %v3432
      %v3447 = vsub.f32 %v3344, %v3432
      %v3448 = vsub.f32 %v3345, %v3432
      %v3449 = vsub.f32 %v3346, %v3432
      %v3450 = vsub.f32 %v3347, %v3432
      %v3451 = vsub.f32 %v3348, %v3432
      %v3452 = vsub.f32 %v3349, %v3432
      %v3453 = vsub.f32 %v3350, %v3432
      %v3454 = vsub.f32 %v3351, %v3432
      %v3455 = vsub.f32 %v3352, %v3432
      %v3456 = vsub.f32 %v3353, %v3432
      %v3457 = vsub.f32 %v3354, %v3432
      %v3458 = vsub.f32 %v3355, %v3432
      %v3459 = vsub.f32 %v3356, %v3432
      %v3460 = vsub.f32 %v3357, %v3432
      %v3461 = vsub.f32 %v3358, %v3432
      %v3462 = vsub.f32 %v3359, %v3432
      %v3463 = vsub.f32 %v3360, %v3432
      %v3464 = vsub.f32 %v3361, %v3432
      %v3465 = vmul.f32 %v3433, %v3433
      %v3466 = vmul.f32 %v3434, %v3434
      %v3467 = vmul.f32 %v3435, %v3435
      %v3468 = vmul.f32 %v3436, %v3436
      %v3469 = vmul.f32 %v3437, %v3437
      %v3470 = vmul.f32 %v3438, %v3438
      %v3471 = vmul.f32 %v3439, %v3439
      %v3472 = vmul.f32 %v3440, %v3440
      %v3473 = vmul.f32 %v3441, %v3441
      %v3474 = vmul.f32 %v3442, %v3442
      %v3475 = vmul.f32 %v3443, %v3443
      %v3476 = vmul.f32 %v3444, %v3444
      %v3477 = vmul.f32 %v3445, %v3445
      %v3478 = vmul.f32 %v3446, %v3446
      %v3479 = vmul.f32 %v3447, %v3447
      %v3480 = vmul.f32 %v3448, %v3448
      %v3481 = vmul.f32 %v3449, %v3449
      %v3482 = vmul.f32 %v3450, %v3450
      %v3483 = vmul.f32 %v3451, %v3451
      %v3484 = vmul.f32 %v3452, %v3452
      %v3485 = vmul.f32 %v3453, %v3453
      %v3486 = vmul.f32 %v3454, %v3454
      %v3487 = vmul.f32 %v3455, %v3455
      %v3488 = vmul.f32 %v3456, %v3456
      %v3489 = vmul.f32 %v3457, %v3457
      %v3490 = vmul.f32 %v3458, %v3458
      %v3491 = vmul.f32 %v3459, %v3459
      %v3492 = vmul.f32 %v3460, %v3460
      %v3493 = vmul.f32 %v3461, %v3461
      %v3494 = vmul.f32 %v3462, %v3462
      %v3495 = vmul.f32 %v3463, %v3463
      %v3496 = vmul.f32 %v3464, %v3464
      %v3497 = vsel %vm309, %v3465, 0.0
      %v3498 = vsel %vm309, %v3466, 0.0
      %v3499 = vadd.f32 %v3497, %v3498
      %v3500 = vsel %vm309, %v3467, 0.0
      %v3501 = vadd.f32 %v3499, %v3500
      %v3502 = vsel %vm309, %v3468, 0.0
      %v3503 = vadd.f32 %v3501, %v3502
      %v3504 = vsel %vm309, %v3469, 0.0
      %v3505 = vadd.f32 %v3503, %v3504
      %v3506 = vsel %vm309, %v3470, 0.0
      %v3507 = vadd.f32 %v3505, %v3506
      %v3508 = vsel %vm309, %v3471, 0.0
      %v3509 = vadd.f32 %v3507, %v3508
      %v3510 = vsel %vm309, %v3472, 0.0
      %v3511 = vadd.f32 %v3509, %v3510
      %v3512 = vsel %vm309, %v3473, 0.0
      %v3513 = vadd.f32 %v3511, %v3512
      %v3514 = vsel %vm309, %v3474, 0.0
      %v3515 = vadd.f32 %v3513, %v3514
      %v3516 = vsel %vm309, %v3475, 0.0
      %v3517 = vadd.f32 %v3515, %v3516
      %v3518 = vsel %vm309, %v3476, 0.0
      %v3519 = vadd.f32 %v3517, %v3518
      %v3520 = vsel %vm309, %v3477, 0.0
      %v3521 = vadd.f32 %v3519, %v3520
      %v3522 = vsel %vm309, %v3478, 0.0
      %v3523 = vadd.f32 %v3521, %v3522
      %v3524 = vsel %vm309, %v3479, 0.0
      %v3525 = vadd.f32 %v3523, %v3524
      %v3526 = vsel %vm309, %v3480, 0.0
      %v3527 = vadd.f32 %v3525, %v3526
      %v3528 = vsel %vm309, %v3481, 0.0
      %v3529 = vadd.f32 %v3527, %v3528
      %v3530 = vsel %vm309, %v3482, 0.0
      %v3531 = vadd.f32 %v3529, %v3530
      %v3532 = vsel %vm309, %v3483, 0.0
      %v3533 = vadd.f32 %v3531, %v3532
      %v3534 = vsel %vm309, %v3484, 0.0
      %v3535 = vadd.f32 %v3533, %v3534
      %v3536 = vsel %vm309, %v3485, 0.0
      %v3537 = vadd.f32 %v3535, %v3536
      %v3538 = vsel %vm309, %v3486, 0.0
      %v3539 = vadd.f32 %v3537, %v3538
      %v3540 = vsel %vm309, %v3487, 0.0
      %v3541 = vadd.f32 %v3539, %v3540
      %v3542 = vsel %vm309, %v3488, 0.0
      %v3543 = vadd.f32 %v3541, %v3542
      %v3544 = vsel %vm309, %v3489, 0.0
      %v3545 = vadd.f32 %v3543, %v3544
      %v3546 = vsel %vm309, %v3490, 0.0
      %v3547 = vadd.f32 %v3545, %v3546
      %v3548 = vsel %vm309, %v3491, 0.0
      %v3549 = vadd.f32 %v3547, %v3548
      %v3550 = vsel %vm309, %v3492, 0.0
      %v3551 = vadd.f32 %v3549, %v3550
      %v3552 = vsel %vm309, %v3493, 0.0
      %v3553 = vadd.f32 %v3551, %v3552
      %v3554 = vsel %vm309, %v3494, 0.0
      %v3555 = vadd.f32 %v3553, %v3554
      %v3556 = vsel %vm309, %v3495, 0.0
      %v3557 = vadd.f32 %v3555, %v3556
      %v3558 = vsel %vm309, %v3496, 0.0
      %v3559 = vadd.f32 %v3557, %v3558
      %v3560 = vrot.slane %v3559, 4
      %v3561 = vadd.f32 %v3559, %v3560
      %v3562 = vrot.slane %v3561, 2
      %v3563 = vadd.f32 %v3561, %v3562
      %v3564 = vrot.slane %v3563, 1
      %v3565 = vadd.f32 %v3563, %v3564
      %v3566 = vmul.f32 %v3565, %v3431
      %v3567 = vadd.f32 %v3566, 1e-05
      %v3568 = vrsqrt.pop %v3567
      %v3569 = vmul.f32 %v3433, %v3568
      %v3570 = vmul.f32 %v3434, %v3568
      %v3571 = vmul.f32 %v3435, %v3568
      %v3572 = vmul.f32 %v3436, %v3568
      %v3573 = vmul.f32 %v3437, %v3568
      %v3574 = vmul.f32 %v3438, %v3568
      %v3575 = vmul.f32 %v3439, %v3568
      %v3576 = vmul.f32 %v3440, %v3568
      %v3577 = vmul.f32 %v3441, %v3568
      %v3578 = vmul.f32 %v3442, %v3568
      %v3579 = vmul.f32 %v3443, %v3568
      %v3580 = vmul.f32 %v3444, %v3568
      %v3581 = vmul.f32 %v3445, %v3568
      %v3582 = vmul.f32 %v3446, %v3568
      %v3583 = vmul.f32 %v3447, %v3568
      %v3584 = vmul.f32 %v3448, %v3568
      %v3585 = vmul.f32 %v3449, %v3568
      %v3586 = vmul.f32 %v3450, %v3568
      %v3587 = vmul.f32 %v3451, %v3568
      %v3588 = vmul.f32 %v3452, %v3568
      %v3589 = vmul.f32 %v3453, %v3568
      %v3590 = vmul.f32 %v3454, %v3568
      %v3591 = vmul.f32 %v3455, %v3568
      %v3592 = vmul.f32 %v3456, %v3568
      %v3593 = vmul.f32 %v3457, %v3568
      %v3594 = vmul.f32 %v3458, %v3568
      %v3595 = vmul.f32 %v3459, %v3568
      %v3596 = vmul.f32 %v3460, %v3568
      %v3597 = vmul.f32 %v3461, %v3568
      %v3598 = vmul.f32 %v3462, %v3568
      %v3599 = vmul.f32 %v3463, %v3568
      %v3600 = vmul.f32 %v3464, %v3568
      %v3601 = vmax.f32 %v3569, 0.0
      %v3602 = vmax.f32 %v3570, 0.0
      %v3603 = vmax.f32 %v3571, 0.0
      %v3604 = vmax.f32 %v3572, 0.0
      %v3605 = vmax.f32 %v3573, 0.0
      %v3606 = vmax.f32 %v3574, 0.0
      %v3607 = vmax.f32 %v3575, 0.0
      %v3608 = vmax.f32 %v3576, 0.0
      %v3609 = vmax.f32 %v3577, 0.0
      %v3610 = vmax.f32 %v3578, 0.0
      %v3611 = vmax.f32 %v3579, 0.0
      %v3612 = vmax.f32 %v3580, 0.0
      %v3613 = vmax.f32 %v3581, 0.0
      %v3614 = vmax.f32 %v3582, 0.0
      %v3615 = vmax.f32 %v3583, 0.0
      %v3616 = vmax.f32 %v3584, 0.0
      %v3617 = vmax.f32 %v3585, 0.0
      %v3618 = vmax.f32 %v3586, 0.0
      %v3619 = vmax.f32 %v3587, 0.0
      %v3620 = vmax.f32 %v3588, 0.0
      %v3621 = vmax.f32 %v3589, 0.0
      %v3622 = vmax.f32 %v3590, 0.0
      %v3623 = vmax.f32 %v3591, 0.0
      %v3624 = vmax.f32 %v3592, 0.0
      %v3625 = vmax.f32 %v3593, 0.0
      %v3626 = vmax.f32 %v3594, 0.0
      %v3627 = vmax.f32 %v3595, 0.0
      %v3628 = vmax.f32 %v3596, 0.0
      %v3629 = vmax.f32 %v3597, 0.0
      %v3630 = vmax.f32 %v3598, 0.0
      %v3631 = vmax.f32 %v3599, 0.0
      %v3632 = vmax.f32 %v3600, 0.0
      %3633 = vst.msk [vmem:[%s308] sm:$0xff] %vm309, %v3601
      %3634 = vst.msk [vmem:[%s308 + $0x8] sm:$0xff] %vm309, %v3602
      %3635 = vst.msk [vmem:[%s308 + $0x18] sm:$0xff] %vm309, %v3603
      %3636 = vst.msk [vmem:[%s308 + $0x20] sm:$0xff] %vm309, %v3604
      %3637 = vst.msk [vmem:[%s308 + $0x30] sm:$0xff] %vm309, %v3605
      %3638 = vst.msk [vmem:[%s308 + $0x38] sm:$0xff] %vm309, %v3606
      %3639 = vst.msk [vmem:[%s308 + $0x48] sm:$0xff] %vm309, %v3607
      %3640 = vst.msk [vmem:[%s308 + $0x50] sm:$0xff] %vm309, %v3608
      %3641 = vst.msk [vmem:[%s308 + $0x60] sm:$0xff] %vm309, %v3609
      %3642 = vst.msk [vmem:[%s308 + $0x68] sm:$0xff] %vm309, %v3610
      %3643 = vst.msk [vmem:[%s308 + $0x78] sm:$0xff] %vm309, %v3611
      %3644 = vst.msk [vmem:[%s308 + $0x80] sm:$0xff] %vm309, %v3612
      %3645 = vst.msk [vmem:[%s308 + $0x90] sm:$0xff] %vm309, %v3613
      %3646 = vst.msk [vmem:[%s308 + $0x98] sm:$0xff] %vm309, %v3614
      %3647 = vst.msk [vmem:[%s308 + $0xa8] sm:$0xff] %vm309, %v3615
      %3648 = vst.msk [vmem:[%s308 + $0xb0] sm:$0xff] %vm309, %v3616
      %3649 = vst.msk [vmem:[%s308 + $0xc0] sm:$0xff] %vm309, %v3617
      %3650 = vst.msk [vmem:[%s308 + $0xc8] sm:$0xff] %vm309, %v3618
      %3651 = vst.msk [vmem:[%s308 + $0xd8] sm:$0xff] %vm309, %v3619
      %3652 = vst.msk [vmem:[%s308 + $0xe0] sm:$0xff] %vm309, %v3620
      %3653 = vst.msk [vmem:[%s308 + $0xf0] sm:$0xff] %vm309, %v3621
      %3654 = vst.msk [vmem:[%s308 + $0xf8] sm:$0xff] %vm309, %v3622
      %3655 = vst.msk [vmem:[%s308 + $0x108] sm:$0xff] %vm309, %v3623
      %3656 = vst.msk [vmem:[%s308 + $0x110] sm:$0xff] %vm309, %v3624
      %3657 = vst.msk [vmem:[%s308 + $0x120] sm:$0xff] %vm309, %v3625
      %3658 = vst.msk [vmem:[%s308 + $0x128] sm:$0xff] %vm309, %v3626
      %3659 = vst.msk [vmem:[%s308 + $0x138] sm:$0xff] %vm309, %v3627
      %3660 = vst.msk [vmem:[%s308 + $0x140] sm:$0xff] %vm309, %v3628
      %3661 = vst.msk [vmem:[%s308 + $0x150] sm:$0xff] %vm309, %v3629
      %3662 = vst.msk [vmem:[%s308 + $0x158] sm:$0xff] %vm309, %v3630
      %3663 = vst.msk [vmem:[%s308 + $0x168] sm:$0xff] %vm309, %v3631
      %3664 = vst.msk [vmem:[%s308 + $0x170] sm:$0xff] %vm309, %v3632
      %s3665 = scalar_lea.vmem %s2, %s343
      %v3666 = vld [vmem:[%s3665] sm:$0xf]
      %v3667 = vld [vmem:[#allocation2] sm:$0xff]
      %v3668 = vld [vmem:[#allocation2 + $0x8] sm:$0xff]
      %v3669 = vld [vmem:[#allocation2 + $0x10] sm:$0xff]
      %v3670 = vld [vmem:[#allocation2 + $0x18] sm:$0xff]
      %v3671 = vld [vmem:[#allocation2 + $0x20] sm:$0xff]
      %v3672 = vld [vmem:[#allocation2 + $0x28] sm:$0xff]
      %v3673 = vld [vmem:[#allocation2 + $0x30] sm:$0xff]
      %v3674 = vld [vmem:[#allocation2 + $0x38] sm:$0xff]
      %v3675 = vld [vmem:[#allocation2 + $0x40] sm:$0xff]
      %v3676 = vld [vmem:[#allocation2 + $0x48] sm:$0xff]
      %v3677 = vld [vmem:[#allocation2 + $0x50] sm:$0xff]
      %v3678 = vld [vmem:[#allocation2 + $0x58] sm:$0xff]
      %v3679 = vld [vmem:[#allocation2 + $0x60] sm:$0xff]
      %v3680 = vld [vmem:[#allocation2 + $0x68] sm:$0xff]
      %v3681 = vld [vmem:[#allocation2 + $0x70] sm:$0xff]
      %v3682 = vld [vmem:[#allocation2 + $0x78] sm:$0xff]
      %v3683 = vld [vmem:[#allocation2 + $0x80] sm:$0xff]
      %v3684 = vld [vmem:[#allocation2 + $0x88] sm:$0xff]
      %v3685 = vld [vmem:[#allocation2 + $0x90] sm:$0xff]
      %v3686 = vld [vmem:[#allocation2 + $0x98] sm:$0xff]
      %v3687 = vld [vmem:[#allocation2 + $0xa0] sm:$0xff]
      %v3688 = vld [vmem:[#allocation2 + $0xa8] sm:$0xff]
      %v3689 = vld [vmem:[#allocation2 + $0xb0] sm:$0xff]
      %v3690 = vld [vmem:[#allocation2 + $0xb8] sm:$0xff]
      %v3691 = vld [vmem:[#allocation2 + $0xc0] sm:$0xff]
      %v3692 = vld [vmem:[#allocation2 + $0xc8] sm:$0xff]
      %v3693 = vld [vmem:[#allocation2 + $0xd0] sm:$0xff]
      %v3694 = vld [vmem:[#allocation2 + $0xd8] sm:$0xff]
      %v3695 = vld [vmem:[#allocation2 + $0xe0] sm:$0xff]
      %v3696 = vld [vmem:[#allocation2 + $0xe8] sm:$0xff]
      %v3697 = vld [vmem:[#allocation2 + $0xf0] sm:$0xff]
      %v3698 = vld [vmem:[#allocation2 + $0xf8] sm:$0xff]
      %v3699 = vld [vmem:[#allocation2 + $0x100] sm:$0xff]
      %v3700 = vld [vmem:[#allocation2 + $0x108] sm:$0xff]
      %v3701 = vld [vmem:[#allocation2 + $0x110] sm:$0xff]
      %v3702 = vld [vmem:[#allocation2 + $0x118] sm:$0xff]
      %v3703 = vld [vmem:[#allocation2 + $0x120] sm:$0xff]
      %v3704 = vld [vmem:[#allocation2 + $0x128] sm:$0xff]
      %v3705 = vld [vmem:[#allocation2 + $0x130] sm:$0xff]
      %v3706 = vld [vmem:[#allocation2 + $0x138] sm:$0xff]
      %v3707 = vld [vmem:[#allocation2 + $0x140] sm:$0xff]
      %v3708 = vld [vmem:[#allocation2 + $0x148] sm:$0xff]
      %v3709 = vld [vmem:[#allocation2 + $0x150] sm:$0xff]
      %v3710 = vld [vmem:[#allocation2 + $0x158] sm:$0xff]
      %v3711 = vld [vmem:[#allocation2 + $0x160] sm:$0xff]
      %v3712 = vld [vmem:[#allocation2 + $0x168] sm:$0xff]
      %v3713 = vld [vmem:[#allocation2 + $0x170] sm:$0xff]
      %v3714 = vld [vmem:[#allocation2 + $0x178] sm:$0xff]
      %v3716 = vsel %vm309, %v3667, 0
      %v3719 = vsel %vm309, %v3668, 0
      %v3722 = vsel %vm309, %v3669, 0
      %v3725 = vsel %vm309, %v3670, 0
      %v3728 = vsel %vm309, %v3671, 0
      %v3731 = vsel %vm309, %v3672, 0
      %v3734 = vsel %vm309, %v3673, 0
      %v3737 = vsel %vm309, %v3674, 0
      %v3740 = vsel %vm309, %v3675, 0
      %v3743 = vsel %vm309, %v3676, 0
      %v3746 = vsel %vm309, %v3677, 0
      %v3749 = vsel %vm309, %v3678, 0
      %v3752 = vsel %vm309, %v3679, 0
      %v3755 = vsel %vm309, %v3680, 0
      %v3758 = vsel %vm309, %v3681, 0
      %v3761 = vsel %vm309, %v3682, 0
      %v3764 = vsel %vm309, %v3683, 0
      %v3767 = vsel %vm309, %v3684, 0
      %v3770 = vsel %vm309, %v3685, 0
      %v3773 = vsel %vm309, %v3686, 0
      %v3776 = vsel %vm309, %v3687, 0
      %v3779 = vsel %vm309, %v3688, 0
      %v3782 = vsel %vm309, %v3689, 0
      %v3785 = vsel %vm309, %v3690, 0
      %v3788 = vsel %vm309, %v3691, 0
      %v3791 = vsel %vm309, %v3692, 0
      %v3794 = vsel %vm309, %v3693, 0
      %v3797 = vsel %vm309, %v3694, 0
      %v3800 = vsel %vm309, %v3695, 0
      %v3803 = vsel %vm309, %v3696, 0
      %v3806 = vsel %vm309, %v3697, 0
      %v3809 = vsel %vm309, %v3698, 0
      %v3812 = vsel %vm309, %v3699, 0
      %v3815 = vsel %vm309, %v3700, 0
      %v3818 = vsel %vm309, %v3701, 0
      %v3821 = vsel %vm309, %v3702, 0
      %v3824 = vsel %vm309, %v3703, 0
      %v3827 = vsel %vm309, %v3704, 0
      %v3830 = vsel %vm309, %v3705, 0
      %v3833 = vsel %vm309, %v3706, 0
      %v3836 = vsel %vm309, %v3707, 0
      %v3839 = vsel %vm309, %v3708, 0
      %v3842 = vsel %vm309, %v3709, 0
      %v3845 = vsel %vm309, %v3710, 0
      %v3848 = vsel %vm309, %v3711, 0
      %v3851 = vsel %vm309, %v3712, 0
      %v3854 = vsel %vm309, %v3713, 0
      %v3857 = vsel %vm309, %v3714, 0
      %v3860 = vsel %vm538, %v3666, 0
      %3862 = vmatprep.subr.mxu0 0.0
      %3863 = vmatpush1.msra.mxu0 %v3860
      %3864 = vmatprep.subr.mxu0 0.0
      %3865 = vmatpush1.msra.mxu0 0.0
      %3866 = vmatprep.subr.mxu0 0.0
      %3867 = vmatpush1.msra.mxu0 0.0
      %3868 = vmatprep.subr.mxu0 0.0
      %3869 = vmatpush1.msra.mxu0 0.0
      %3870 = vmatprep.subr.mxu0 0.0
      %3871 = vmatpush1.msra.mxu0 0.0
      %3872 = vmatprep.subr.mxu0 0.0
      %3873 = vmatpush1.msra.mxu0 0.0
      %3874 = vmatprep.subr.mxu0 0.0
      %3875 = vmatpush1.msra.mxu0 0.0
      %3876 = vmatprep.subr.mxu0 0.0
      %3877 = vmatpush1.msra.mxu0 0.0
      %3878 = vmatprep.subr.mxu0 0.0
      %3879 = vmatpush1.msra.mxu0 0.0
      %3880 = vmatprep.subr.mxu0 0.0
      %3881 = vmatpush1.msra.mxu0 0.0
      %3882 = vmatprep.subr.mxu0 0.0
      %3883 = vmatpush1.msra.mxu0 0.0
      %3884 = vmatprep.subr.mxu0 0.0
      %3885 = vmatpush1.msra.mxu0 0.0
      %3886 = vmatprep.subr.mxu0 0.0
      %3887 = vmatpush1.msra.mxu0 0.0
      %3888 = vmatprep.subr.mxu0 0.0
      %3889 = vmatpush1.msra.mxu0 0.0
      %3890 = vmatprep.subr.mxu0 0.0
      %3891 = vmatpush1.msra.mxu0 0.0
      %3892 = vmatprep.subr.mxu0 0.0
      %3893 = vmatpush1.msra.mxu0 0.0
      %3894 = vmatprep.subr.mxu0 0.0
      %3895 = vmatpush1.msra.mxu0 0.0
      %3896 = vmatprep.subr.mxu0 0.0
      %3897 = vmatpush1.msra.mxu0 0.0
      %3898 = vmatprep.subr.mxu0 0.0
      %3899 = vmatpush1.msra.mxu0 0.0
      %3900 = vmatprep.subr.mxu0 0.0
      %3901 = vmatpush1.msra.mxu0 0.0
      %3902 = vmatprep.subr.mxu0 0.0
      %3903 = vmatpush1.msra.mxu0 0.0
      %3904 = vmatprep.subr.mxu0 0.0
      %3905 = vmatpush1.msra.mxu0 0.0
      %3906 = vmatprep.subr.mxu0 0.0
      %3907 = vmatpush1.msra.mxu0 0.0
      %3908 = vmatprep.subr.mxu0 0.0
      %3909 = vmatpush1.msra.mxu0 0.0
      %3910 = vmatprep.subr.mxu0 0.0
      %3911 = vmatpush1.msra.mxu0 0.0
      %3912 = vmatprep.subr.mxu0 0.0
      %3913 = vmatpush1.msra.mxu0 0.0
      %3914 = vmatprep.subr.mxu0 0.0
      %3915 = vmatpush1.msra.mxu0 0.0
      %3916 = vmatprep.subr.mxu0 0.0
      %3917 = vmatpush1.msra.mxu0 0.0
      %3918 = vmatprep.subr.mxu0 0.0
      %3919 = vmatpush1.msra.mxu0 0.0
      %3920 = vmatprep.subr.mxu0 0.0
      %3921 = vmatpush1.msra.mxu0 0.0
      %3922 = vmatprep.subr.mxu0 0.0
      %3923 = vmatpush1.msra.mxu0 0.0
      %3924 = vmatprep.subr.mxu0 0.0
      %3925 = vmatpush1.msra.mxu0 0.0
      %3926 = vmatprep.mubr.f32.mxu0 0.0
      %3927 = vmatmul.mubr.f32.gmra.mrb[0].mxu0 %v3716
      %v3928 = vpop.f32.mrb[0].mxu0
      %v3929 = vadd.f32 0.0, %v3928
      %v3930 = vpop.f32.mrb[0].mxu0
      %3931 = vmatprep.mubr.f32.mxu0 0.0
      %3932 = vmatmul.mubr.f32.gmra.mrb[0].mxu0 %v3719
      %v3933 = vpop.f32.mrb[0].mxu0
      %v3934 = vadd.f32 0.0, %v3933
      %v3935 = vpop.f32.mrb[0].mxu0
      %3936 = vmatprep.mubr.f32.mxu0 0.0
      %3937 = vmatmul.mubr.f32.gmra.mrb[0].mxu0 %v3722
      %v3938 = vpop.f32.mrb[0].mxu0
      %v3939 = vadd.f32 0.0, %v3938
      %v3940 = vpop.f32.mrb[0].mxu0
      %3941 = vmatprep.mubr.f32.mxu0 0.0
      %3942 = vmatmul.mubr.f32.gmra.mrb[0].mxu0 %v3725
      %v3943 = vpop.f32.mrb[0].mxu0
      %v3944 = vadd.f32 0.0, %v3943
      %v3945 = vpop.f32.mrb[0].mxu0
      %3946 = vmatprep.mubr.f32.mxu0 0.0
      %3947 = vmatmul.mubr.f32.gmra.mrb[0].mxu0 %v3728
      %v3948 = vpop.f32.mrb[0].mxu0
      %v3949 = vadd.f32 0.0, %v3948
      %v3950 = vpop.f32.mrb[0].mxu0
      %3951 = vmatprep.mubr.f32.mxu0 0.0
      %3952 = vmatmul.mubr.f32.gmra.mrb[0].mxu0 %v3731
      %v3953 = vpop.f32.mrb[0].mxu0
      %v3954 = vadd.f32 0.0, %v3953
      %v3955 = vpop.f32.mrb[0].mxu0
      %3956 = vmatprep.mubr.f32.mxu0 0.0
      %3957 = vmatmul.mubr.f32.gmra.mrb[0].mxu0 %v3734
      %v3958 = vpop.f32.mrb[0].mxu0
      %v3959 = vadd.f32 0.0, %v3958
      %v3960 = vpop.f32.mrb[0].mxu0
      %3961 = vmatprep.mubr.f32.mxu0 0.0
      %3962 = vmatmul.mubr.f32.gmra.mrb[0].mxu0 %v3737
      %v3963 = vpop.f32.mrb[0].mxu0
      %v3964 = vadd.f32 0.0, %v3963
      %v3965 = vpop.f32.mrb[0].mxu0
      %3966 = vmatprep.mubr.f32.mxu0 0.0
      %3967 = vmatmul.mubr.f32.gmra.mrb[0].mxu0 %v3740
      %v3968 = vpop.f32.mrb[0].mxu0
      %v3969 = vadd.f32 0.0, %v3968
      %v3970 = vpop.f32.mrb[0].mxu0
      %3971 = vmatprep.mubr.f32.mxu0 0.0
      %3972 = vmatmul.mubr.f32.gmra.mrb[0].mxu0 %v3743
      %v3973 = vpop.f32.mrb[0].mxu0
      %v3974 = vadd.f32 0.0, %v3973
      %v3975 = vpop.f32.mrb[0].mxu0
      %3976 = vmatprep.mubr.f32.mxu0 0.0
      %3977 = vmatmul.mubr.f32.gmra.mrb[0].mxu0 %v3746
      %v3978 = vpop.f32.mrb[0].mxu0
      %v3979 = vadd.f32 0.0, %v3978
      %v3980 = vpop.f32.mrb[0].mxu0
      %3981 = vmatprep.mubr.f32.mxu0 0.0
      %3982 = vmatmul.mubr.f32.gmra.mrb[0].mxu0 %v3749
      %v3983 = vpop.f32.mrb[0].mxu0
      %v3984 = vadd.f32 0.0, %v3983
      %v3985 = vpop.f32.mrb[0].mxu0
      %3986 = vmatprep.mubr.f32.mxu0 0.0
      %3987 = vmatmul.mubr.f32.gmra.mrb[0].mxu0 %v3752
      %v3988 = vpop.f32.mrb[0].mxu0
      %v3989 = vadd.f32 0.0, %v3988
      %v3990 = vpop.f32.mrb[0].mxu0
      %3991 = vmatprep.mubr.f32.mxu0 0.0
      %3992 = vmatmul.mubr.f32.gmra.mrb[0].mxu0 %v3755
      %v3993 = vpop.f32.mrb[0].mxu0
      %v3994 = vadd.f32 0.0, %v3993
      %v3995 = vpop.f32.mrb[0].mxu0
      %3996 = vmatprep.mubr.f32.mxu0 0.0
      %3997 = vmatmul.mubr.f32.gmra.mrb[0].mxu0 %v3758
      %v3998 = vpop.f32.mrb[0].mxu0
      %v3999 = vadd.f32 0.0, %v3998
      %v4000 = vpop.f32.mrb[0].mxu0
      %4001 = vmatprep.mubr.f32.mxu0 0.0
      %4002 = vmatmul.mubr.f32.gmra.mrb[0].mxu0 %v3761
      %v4003 = vpop.f32.mrb[0].mxu0
      %v4004 = vadd.f32 0.0, %v4003
      %v4005 = vpop.f32.mrb[0].mxu0
      %4006 = vmatprep.mubr.f32.mxu0 0.0
      %4007 = vmatmul.mubr.f32.gmra.mrb[0].mxu0 %v3764
      %v4008 = vpop.f32.mrb[0].mxu0
      %v4009 = vadd.f32 0.0, %v4008
      %v4010 = vpop.f32.mrb[0].mxu0
      %4011 = vmatprep.mubr.f32.mxu0 0.0
      %4012 = vmatmul.mubr.f32.gmra.mrb[0].mxu0 %v3767
      %v4013 = vpop.f32.mrb[0].mxu0
      %v4014 = vadd.f32 0.0, %v4013
      %v4015 = vpop.f32.mrb[0].mxu0
      %4016 = vmatprep.mubr.f32.mxu0 0.0
      %4017 = vmatmul.mubr.f32.gmra.mrb[0].mxu0 %v3770
      %v4018 = vpop.f32.mrb[0].mxu0
      %v4019 = vadd.f32 0.0, %v4018
      %v4020 = vpop.f32.mrb[0].mxu0
      %4021 = vmatprep.mubr.f32.mxu0 0.0
      %4022 = vmatmul.mubr.f32.gmra.mrb[0].mxu0 %v3773
      %v4023 = vpop.f32.mrb[0].mxu0
      %v4024 = vadd.f32 0.0, %v4023
      %v4025 = vpop.f32.mrb[0].mxu0
      %4026 = vmatprep.mubr.f32.mxu0 0.0
      %4027 = vmatmul.mubr.f32.gmra.mrb[0].mxu0 %v3776
      %v4028 = vpop.f32.mrb[0].mxu0
      %v4029 = vadd.f32 0.0, %v4028
      %v4030 = vpop.f32.mrb[0].mxu0
      %4031 = vmatprep.mubr.f32.mxu0 0.0
      %4032 = vmatmul.mubr.f32.gmra.mrb[0].mxu0 %v3779
      %v4033 = vpop.f32.mrb[0].mxu0
      %v4034 = vadd.f32 0.0, %v4033
      %v4035 = vpop.f32.mrb[0].mxu0
      %4036 = vmatprep.mubr.f32.mxu0 0.0
      %4037 = vmatmul.mubr.f32.gmra.mrb[0].mxu0 %v3782
      %v4038 = vpop.f32.mrb[0].mxu0
      %v4039 = vadd.f32 0.0, %v4038
      %v4040 = vpop.f32.mrb[0].mxu0
      %4041 = vmatprep.mubr.f32.mxu0 0.0
      %4042 = vmatmul.mubr.f32.gmra.mrb[0].mxu0 %v3785
      %v4043 = vpop.f32.mrb[0].mxu0
      %v4044 = vadd.f32 0.0, %v4043
      %v4045 = vpop.f32.mrb[0].mxu0
      %4046 = vmatprep.mubr.f32.mxu0 0.0
      %4047 = vmatmul.mubr.f32.gmra.mrb[0].mxu0 %v3788
      %v4048 = vpop.f32.mrb[0].mxu0
      %v4049 = vadd.f32 0.0, %v4048
      %v4050 = vpop.f32.mrb[0].mxu0
      %4051 = vmatprep.mubr.f32.mxu0 0.0
      %4052 = vmatmul.mubr.f32.gmra.mrb[0].mxu0 %v3791
      %v4053 = vpop.f32.mrb[0].mxu0
      %v4054 = vadd.f32 0.0, %v4053
      %v4055 = vpop.f32.mrb[0].mxu0
      %4056 = vmatprep.mubr.f32.mxu0 0.0
      %4057 = vmatmul.mubr.f32.gmra.mrb[0].mxu0 %v3794
      %v4058 = vpop.f32.mrb[0].mxu0
      %v4059 = vadd.f32 0.0, %v4058
      %v4060 = vpop.f32.mrb[0].mxu0
      %4061 = vmatprep.mubr.f32.mxu0 0.0
      %4062 = vmatmul.mubr.f32.gmra.mrb[0].mxu0 %v3797
      %v4063 = vpop.f32.mrb[0].mxu0
      %v4064 = vadd.f32 0.0, %v4063
      %v4065 = vpop.f32.mrb[0].mxu0
      %4066 = vmatprep.mubr.f32.mxu0 0.0
      %4067 = vmatmul.mubr.f32.gmra.mrb[0].mxu0 %v3800
      %v4068 = vpop.f32.mrb[0].mxu0
      %v4069 = vadd.f32 0.0, %v4068
      %v4070 = vpop.f32.mrb[0].mxu0
      %4071 = vmatprep.mubr.f32.mxu0 0.0
      %4072 = vmatmul.mubr.f32.gmra.mrb[0].mxu0 %v3803
      %v4073 = vpop.f32.mrb[0].mxu0
      %v4074 = vadd.f32 0.0, %v4073
      %v4075 = vpop.f32.mrb[0].mxu0
      %4076 = vmatprep.mubr.f32.mxu0 0.0
      %4077 = vmatmul.mubr.f32.gmra.mrb[0].mxu0 %v3806
      %v4078 = vpop.f32.mrb[0].mxu0
      %v4079 = vadd.f32 0.0, %v4078
      %v4080 = vpop.f32.mrb[0].mxu0
      %4081 = vmatprep.mubr.f32.mxu0 0.0
      %4082 = vmatmul.mubr.f32.gmra.mrb[0].mxu0 %v3809
      %v4083 = vpop.f32.mrb[0].mxu0
      %v4084 = vadd.f32 0.0, %v4083
      %v4085 = vpop.f32.mrb[0].mxu0
      %4086 = vmatprep.mubr.f32.mxu0 0.0
      %4087 = vmatmul.mubr.f32.gmra.mrb[0].mxu0 %v3812
      %v4088 = vpop.f32.mrb[0].mxu0
      %v4089 = vadd.f32 0.0, %v4088
      %v4090 = vpop.f32.mrb[0].mxu0
      %4091 = vmatprep.mubr.f32.mxu0 0.0
      %4092 = vmatmul.mubr.f32.gmra.mrb[0].mxu0 %v3815
      %v4093 = vpop.f32.mrb[0].mxu0
      %v4094 = vadd.f32 0.0, %v4093
      %v4095 = vpop.f32.mrb[0].mxu0
      %4096 = vmatprep.mubr.f32.mxu0 0.0
      %4097 = vmatmul.mubr.f32.gmra.mrb[0].mxu0 %v3818
      %v4098 = vpop.f32.mrb[0].mxu0
      %v4099 = vadd.f32 0.0, %v4098
      %v4100 = vpop.f32.mrb[0].mxu0
      %4101 = vmatprep.mubr.f32.mxu0 0.0
      %4102 = vmatmul.mubr.f32.gmra.mrb[0].mxu0 %v3821
      %v4103 = vpop.f32.mrb[0].mxu0
      %v4104 = vadd.f32 0.0, %v4103
      %v4105 = vpop.f32.mrb[0].mxu0
      %4106 = vmatprep.mubr.f32.mxu0 0.0
      %4107 = vmatmul.mubr.f32.gmra.mrb[0].mxu0 %v3824
      %v4108 = vpop.f32.mrb[0].mxu0
      %v4109 = vadd.f32 0.0, %v4108
      %v4110 = vpop.f32.mrb[0].mxu0
      %4111 = vmatprep.mubr.f32.mxu0 0.0
      %4112 = vmatmul.mubr.f32.gmra.mrb[0].mxu0 %v3827
      %v4113 = vpop.f32.mrb[0].mxu0
      %v4114 = vadd.f32 0.0, %v4113
      %v4115 = vpop.f32.mrb[0].mxu0
      %4116 = vmatprep.mubr.f32.mxu0 0.0
      %4117 = vmatmul.mubr.f32.gmra.mrb[0].mxu0 %v3830
      %v4118 = vpop.f32.mrb[0].mxu0
      %v4119 = vadd.f32 0.0, %v4118
      %v4120 = vpop.f32.mrb[0].mxu0
      %4121 = vmatprep.mubr.f32.mxu0 0.0
      %4122 = vmatmul.mubr.f32.gmra.mrb[0].mxu0 %v3833
      %v4123 = vpop.f32.mrb[0].mxu0
      %v4124 = vadd.f32 0.0, %v4123
      %v4125 = vpop.f32.mrb[0].mxu0
      %4126 = vmatprep.mubr.f32.mxu0 0.0
      %4127 = vmatmul.mubr.f32.gmra.mrb[0].mxu0 %v3836
      %v4128 = vpop.f32.mrb[0].mxu0
      %v4129 = vadd.f32 0.0, %v4128
      %v4130 = vpop.f32.mrb[0].mxu0
      %4131 = vmatprep.mubr.f32.mxu0 0.0
      %4132 = vmatmul.mubr.f32.gmra.mrb[0].mxu0 %v3839
      %v4133 = vpop.f32.mrb[0].mxu0
      %v4134 = vadd.f32 0.0, %v4133
      %v4135 = vpop.f32.mrb[0].mxu0
      %4136 = vmatprep.mubr.f32.mxu0 0.0
      %4137 = vmatmul.mubr.f32.gmra.mrb[0].mxu0 %v3842
      %v4138 = vpop.f32.mrb[0].mxu0
      %v4139 = vadd.f32 0.0, %v4138
      %v4140 = vpop.f32.mrb[0].mxu0
      %4141 = vmatprep.mubr.f32.mxu0 0.0
      %4142 = vmatmul.mubr.f32.gmra.mrb[0].mxu0 %v3845
      %v4143 = vpop.f32.mrb[0].mxu0
      %v4144 = vadd.f32 0.0, %v4143
      %v4145 = vpop.f32.mrb[0].mxu0
      %4146 = vmatprep.mubr.f32.mxu0 0.0
      %4147 = vmatmul.mubr.f32.gmra.mrb[0].mxu0 %v3848
      %v4148 = vpop.f32.mrb[0].mxu0
      %v4149 = vadd.f32 0.0, %v4148
      %v4150 = vpop.f32.mrb[0].mxu0
      %4151 = vmatprep.mubr.f32.mxu0 0.0
      %4152 = vmatmul.mubr.f32.gmra.mrb[0].mxu0 %v3851
      %v4153 = vpop.f32.mrb[0].mxu0
      %v4154 = vadd.f32 0.0, %v4153
      %v4155 = vpop.f32.mrb[0].mxu0
      %4156 = vmatprep.mubr.f32.mxu0 0.0
      %4157 = vmatmul.mubr.f32.gmra.mrb[0].mxu0 %v3854
      %v4158 = vpop.f32.mrb[0].mxu0
      %v4159 = vadd.f32 0.0, %v4158
      %v4160 = vpop.f32.mrb[0].mxu0
      %4161 = vmatprep.mubr.f32.mxu0 0.0
      %4162 = vmatmul.mubr.f32.gmra.mrb[0].mxu0 %v3857
      %v4163 = vpop.f32.mrb[0].mxu0
      %v4164 = vadd.f32 0.0, %v4163
      %v4165 = vpop.f32.mrb[0].mxu0
      %4166 = vdwg.mxu0
      %v4199 = vrot.slane %v3929, 7
      %v4200 = vrot.slane %v3934, 7
      %v4201 = vsel %vm879, %v4199, %v4200
      %v4202 = vrot.slane %v3944, 7
      %v4203 = vrot.slane %v3949, 7
      %v4204 = vsel %vm879, %v4202, %v4203
      %v4205 = vrot.slane %v3959, 7
      %v4206 = vrot.slane %v3964, 7
      %v4207 = vsel %vm879, %v4205, %v4206
      %v4208 = vrot.slane %v3974, 7
      %v4209 = vrot.slane %v3979, 7
      %v4210 = vsel %vm879, %v4208, %v4209
      %v4211 = vrot.slane %v3989, 7
      %v4212 = vrot.slane %v3994, 7
      %v4213 = vsel %vm879, %v4211, %v4212
      %v4214 = vrot.slane %v4004, 7
      %v4215 = vrot.slane %v4009, 7
      %v4216 = vsel %vm879, %v4214, %v4215
      %v4217 = vrot.slane %v4019, 7
      %v4218 = vrot.slane %v4024, 7
      %v4219 = vsel %vm879, %v4217, %v4218
      %v4220 = vrot.slane %v4034, 7
      %v4221 = vrot.slane %v4039, 7
      %v4222 = vsel %vm879, %v4220, %v4221
      %v4223 = vrot.slane %v4049, 7
      %v4224 = vrot.slane %v4054, 7
      %v4225 = vsel %vm879, %v4223, %v4224
      %v4226 = vrot.slane %v4064, 7
      %v4227 = vrot.slane %v4069, 7
      %v4228 = vsel %vm879, %v4226, %v4227
      %v4229 = vrot.slane %v4079, 7
      %v4230 = vrot.slane %v4084, 7
      %v4231 = vsel %vm879, %v4229, %v4230
      %v4232 = vrot.slane %v4094, 7
      %v4233 = vrot.slane %v4099, 7
      %v4234 = vsel %vm879, %v4232, %v4233
      %v4235 = vrot.slane %v4109, 7
      %v4236 = vrot.slane %v4114, 7
      %v4237 = vsel %vm879, %v4235, %v4236
      %v4238 = vrot.slane %v4124, 7
      %v4239 = vrot.slane %v4129, 7
      %v4240 = vsel %vm879, %v4238, %v4239
      %v4241 = vrot.slane %v4139, 7
      %v4242 = vrot.slane %v4144, 7
      %v4243 = vsel %vm879, %v4241, %v4242
      %v4244 = vrot.slane %v4154, 7
      %v4245 = vrot.slane %v4159, 7
      %v4246 = vsel %vm879, %v4244, %v4245
      %v4279 = vsel %vm879, 0.0, %v4199
      %v4280 = vsel %vm879, 0.0, %v4202
      %v4281 = vsel %vm879, 0.0, %v4205
      %v4282 = vsel %vm879, 0.0, %v4208
      %v4283 = vsel %vm879, 0.0, %v4211
      %v4284 = vsel %vm879, 0.0, %v4214
      %v4285 = vsel %vm879, 0.0, %v4217
      %v4286 = vsel %vm879, 0.0, %v4220
      %v4287 = vsel %vm879, 0.0, %v4223
      %v4288 = vsel %vm879, 0.0, %v4226
      %v4289 = vsel %vm879, 0.0, %v4229
      %v4290 = vsel %vm879, 0.0, %v4232
      %v4291 = vsel %vm879, 0.0, %v4235
      %v4292 = vsel %vm879, 0.0, %v4238
      %v4293 = vsel %vm879, 0.0, %v4241
      %v4294 = vsel %vm879, 0.0, %v4244
      %4295 = vrot.lane.b32.xlu0 %v3929, 124
      %v4296 = vpop.permute.xlu0 %4295
      %4297 = vrot.lane.b32.xlu0 %v3934, 124
      %v4298 = vpop.permute.xlu0 %4297
      %4299 = vrot.lane.b32.xlu0 %v3944, 124
      %v4300 = vpop.permute.xlu0 %4299
      %4301 = vrot.lane.b32.xlu0 %v3949, 124
      %v4302 = vpop.permute.xlu0 %4301
      %4303 = vrot.lane.b32.xlu0 %v3959, 124
      %v4304 = vpop.permute.xlu0 %4303
      %4305 = vrot.lane.b32.xlu0 %v3964, 124
      %v4306 = vpop.permute.xlu0 %4305
      %4307 = vrot.lane.b32.xlu0 %v3974, 124
      %v4308 = vpop.permute.xlu0 %4307
      %4309 = vrot.lane.b32.xlu0 %v3979, 124
      %v4310 = vpop.permute.xlu0 %4309
      %4311 = vrot.lane.b32.xlu0 %v3989, 124
      %v4312 = vpop.permute.xlu0 %4311
      %4313 = vrot.lane.b32.xlu0 %v3994, 124
      %v4314 = vpop.permute.xlu0 %4313
      %4315 = vrot.lane.b32.xlu0 %v4004, 124
      %v4316 = vpop.permute.xlu0 %4315
      %4317 = vrot.lane.b32.xlu0 %v4009, 124
      %v4318 = vpop.permute.xlu0 %4317
      %4319 = vrot.lane.b32.xlu0 %v4019, 124
      %v4320 = vpop.permute.xlu0 %4319
      %4321 = vrot.lane.b32.xlu0 %v4024, 124
      %v4322 = vpop.permute.xlu0 %4321
      %4323 = vrot.lane.b32.xlu0 %v4034, 124
      %v4324 = vpop.permute.xlu0 %4323
      %4325 = vrot.lane.b32.xlu0 %v4039, 124
      %v4326 = vpop.permute.xlu0 %4325
      %4327 = vrot.lane.b32.xlu0 %v4049, 124
      %v4328 = vpop.permute.xlu0 %4327
      %4329 = vrot.lane.b32.xlu0 %v4054, 124
      %v4330 = vpop.permute.xlu0 %4329
      %4331 = vrot.lane.b32.xlu0 %v4064, 124
      %v4332 = vpop.permute.xlu0 %4331
      %4333 = vrot.lane.b32.xlu0 %v4069, 124
      %v4334 = vpop.permute.xlu0 %4333
      %4335 = vrot.lane.b32.xlu0 %v4079, 124
      %v4336 = vpop.permute.xlu0 %4335
      %4337 = vrot.lane.b32.xlu0 %v4084, 124
      %v4338 = vpop.permute.xlu0 %4337
      %4339 = vrot.lane.b32.xlu0 %v4094, 124
      %v4340 = vpop.permute.xlu0 %4339
      %4341 = vrot.lane.b32.xlu0 %v4099, 124
      %v4342 = vpop.permute.xlu0 %4341
      %4343 = vrot.lane.b32.xlu0 %v4109, 124
      %v4344 = vpop.permute.xlu0 %4343
      %4345 = vrot.lane.b32.xlu0 %v4114, 124
      %v4346 = vpop.permute.xlu0 %4345
      %4347 = vrot.lane.b32.xlu0 %v4124, 124
      %v4348 = vpop.permute.xlu0 %4347
      %4349 = vrot.lane.b32.xlu0 %v4129, 124
      %v4350 = vpop.permute.xlu0 %4349
      %4351 = vrot.lane.b32.xlu0 %v4139, 124
      %v4352 = vpop.permute.xlu0 %4351
      %4353 = vrot.lane.b32.xlu0 %v4144, 124
      %v4354 = vpop.permute.xlu0 %4353
      %4355 = vrot.lane.b32.xlu0 %v4154, 124
      %v4356 = vpop.permute.xlu0 %4355
      %4357 = vrot.lane.b32.xlu0 %v4159, 124
      %v4358 = vpop.permute.xlu0 %4357
      %v4391 = vadd.f32 %v4279, %v4296
      %v4392 = vadd.f32 %v4201, %v4298
      %v4393 = vadd.f32 %v4280, %v4300
      %v4394 = vadd.f32 %v4204, %v4302
      %v4395 = vadd.f32 %v4281, %v4304
      %v4396 = vadd.f32 %v4207, %v4306
      %v4397 = vadd.f32 %v4282, %v4308
      %v4398 = vadd.f32 %v4210, %v4310
      %v4399 = vadd.f32 %v4283, %v4312
      %v4400 = vadd.f32 %v4213, %v4314
      %v4401 = vadd.f32 %v4284, %v4316
      %v4402 = vadd.f32 %v4216, %v4318
      %v4403 = vadd.f32 %v4285, %v4320
      %v4404 = vadd.f32 %v4219, %v4322
      %v4405 = vadd.f32 %v4286, %v4324
      %v4406 = vadd.f32 %v4222, %v4326
      %v4407 = vadd.f32 %v4287, %v4328
      %v4408 = vadd.f32 %v4225, %v4330
      %v4409 = vadd.f32 %v4288, %v4332
      %v4410 = vadd.f32 %v4228, %v4334
      %v4411 = vadd.f32 %v4289, %v4336
      %v4412 = vadd.f32 %v4231, %v4338
      %v4413 = vadd.f32 %v4290, %v4340
      %v4414 = vadd.f32 %v4234, %v4342
      %v4415 = vadd.f32 %v4291, %v4344
      %v4416 = vadd.f32 %v4237, %v4346
      %v4417 = vadd.f32 %v4292, %v4348
      %v4418 = vadd.f32 %v4240, %v4350
      %v4419 = vadd.f32 %v4293, %v4352
      %v4420 = vadd.f32 %v4243, %v4354
      %v4421 = vadd.f32 %v4294, %v4356
      %v4422 = vadd.f32 %v4246, %v4358
      %v4439 = vrot.slane %v3929, 1
      %v4440 = vrot.slane %v3934, 1
      %v4441 = vsel %vm1120, %v4439, %v4440
      %v4442 = vrot.slane %v3939, 1
      %v4443 = vsel %vm1120, %v4440, %v4442
      %v4444 = vrot.slane %v3944, 1
      %v4445 = vrot.slane %v3949, 1
      %v4446 = vsel %vm1120, %v4444, %v4445
      %v4447 = vrot.slane %v3954, 1
      %v4448 = vsel %vm1120, %v4445, %v4447
      %v4449 = vrot.slane %v3959, 1
      %v4450 = vrot.slane %v3964, 1
      %v4451 = vsel %vm1120, %v4449, %v4450
      %v4452 = vrot.slane %v3969, 1
      %v4453 = vsel %vm1120, %v4450, %v4452
      %v4454 = vrot.slane %v3974, 1
      %v4455 = vrot.slane %v3979, 1
      %v4456 = vsel %vm1120, %v4454, %v4455
      %v4457 = vrot.slane %v3984, 1
      %v4458 = vsel %vm1120, %v4455, %v4457
      %v4459 = vrot.slane %v3989, 1
      %v4460 = vrot.slane %v3994, 1
      %v4461 = vsel %vm1120, %v4459, %v4460
      %v4462 = vrot.slane %v3999, 1
      %v4463 = vsel %vm1120, %v4460, %v4462
      %v4464 = vrot.slane %v4004, 1
      %v4465 = vrot.slane %v4009, 1
      %v4466 = vsel %vm1120, %v4464, %v4465
      %v4467 = vrot.slane %v4014, 1
      %v4468 = vsel %vm1120, %v4465, %v4467
      %v4469 = vrot.slane %v4019, 1
      %v4470 = vrot.slane %v4024, 1
      %v4471 = vsel %vm1120, %v4469, %v4470
      %v4472 = vrot.slane %v4029, 1
      %v4473 = vsel %vm1120, %v4470, %v4472
      %v4474 = vrot.slane %v4034, 1
      %v4475 = vrot.slane %v4039, 1
      %v4476 = vsel %vm1120, %v4474, %v4475
      %v4477 = vrot.slane %v4044, 1
      %v4478 = vsel %vm1120, %v4475, %v4477
      %v4479 = vrot.slane %v4049, 1
      %v4480 = vrot.slane %v4054, 1
      %v4481 = vsel %vm1120, %v4479, %v4480
      %v4482 = vrot.slane %v4059, 1
      %v4483 = vsel %vm1120, %v4480, %v4482
      %v4484 = vrot.slane %v4064, 1
      %v4485 = vrot.slane %v4069, 1
      %v4486 = vsel %vm1120, %v4484, %v4485
      %v4487 = vrot.slane %v4074, 1
      %v4488 = vsel %vm1120, %v4485, %v4487
      %v4489 = vrot.slane %v4079, 1
      %v4490 = vrot.slane %v4084, 1
      %v4491 = vsel %vm1120, %v4489, %v4490
      %v4492 = vrot.slane %v4089, 1
      %v4493 = vsel %vm1120, %v4490, %v4492
      %v4494 = vrot.slane %v4094, 1
      %v4495 = vrot.slane %v4099, 1
      %v4496 = vsel %vm1120, %v4494, %v4495
      %v4497 = vrot.slane %v4104, 1
      %v4498 = vsel %vm1120, %v4495, %v4497
      %v4499 = vrot.slane %v4109, 1
      %v4500 = vrot.slane %v4114, 1
      %v4501 = vsel %vm1120, %v4499, %v4500
      %v4502 = vrot.slane %v4119, 1
      %v4503 = vsel %vm1120, %v4500, %v4502
      %v4504 = vrot.slane %v4124, 1
      %v4505 = vrot.slane %v4129, 1
      %v4506 = vsel %vm1120, %v4504, %v4505
      %v4507 = vrot.slane %v4134, 1
      %v4508 = vsel %vm1120, %v4505, %v4507
      %v4509 = vrot.slane %v4139, 1
      %v4510 = vrot.slane %v4144, 1
      %v4511 = vsel %vm1120, %v4509, %v4510
      %v4512 = vrot.slane %v4149, 1
      %v4513 = vsel %vm1120, %v4510, %v4512
      %v4514 = vrot.slane %v4154, 1
      %v4515 = vrot.slane %v4159, 1
      %v4516 = vsel %vm1120, %v4514, %v4515
      %v4517 = vrot.slane %v4164, 1
      %v4518 = vsel %vm1120, %v4515, %v4517
      %4519 = vrot.lane.b32.xlu0 %v4441, 120
      %v4520 = vpop.permute.xlu0 %4519
      %4521 = vrot.lane.b32.xlu0 %v4443, 120
      %v4522 = vpop.permute.xlu0 %4521
      %4523 = vrot.lane.b32.xlu0 %v4446, 120
      %v4524 = vpop.permute.xlu0 %4523
      %4525 = vrot.lane.b32.xlu0 %v4448, 120
      %v4526 = vpop.permute.xlu0 %4525
      %4527 = vrot.lane.b32.xlu0 %v4451, 120
      %v4528 = vpop.permute.xlu0 %4527
      %4529 = vrot.lane.b32.xlu0 %v4453, 120
      %v4530 = vpop.permute.xlu0 %4529
      %4531 = vrot.lane.b32.xlu0 %v4456, 120
      %v4532 = vpop.permute.xlu0 %4531
      %4533 = vrot.lane.b32.xlu0 %v4458, 120
      %v4534 = vpop.permute.xlu0 %4533
      %4535 = vrot.lane.b32.xlu0 %v4461, 120
      %v4536 = vpop.permute.xlu0 %4535
      %4537 = vrot.lane.b32.xlu0 %v4463, 120
      %v4538 = vpop.permute.xlu0 %4537
      %4539 = vrot.lane.b32.xlu0 %v4466, 120
      %v4540 = vpop.permute.xlu0 %4539
      %4541 = vrot.lane.b32.xlu0 %v4468, 120
      %v4542 = vpop.permute.xlu0 %4541
      %4543 = vrot.lane.b32.xlu0 %v4471, 120
      %v4544 = vpop.permute.xlu0 %4543
      %4545 = vrot.lane.b32.xlu0 %v4473, 120
      %v4546 = vpop.permute.xlu0 %4545
      %4547 = vrot.lane.b32.xlu0 %v4476, 120
      %v4548 = vpop.permute.xlu0 %4547
      %4549 = vrot.lane.b32.xlu0 %v4478, 120
      %v4550 = vpop.permute.xlu0 %4549
      %4551 = vrot.lane.b32.xlu0 %v4481, 120
      %v4552 = vpop.permute.xlu0 %4551
      %4553 = vrot.lane.b32.xlu0 %v4483, 120
      %v4554 = vpop.permute.xlu0 %4553
      %4555 = vrot.lane.b32.xlu0 %v4486, 120
      %v4556 = vpop.permute.xlu0 %4555
      %4557 = vrot.lane.b32.xlu0 %v4488, 120
      %v4558 = vpop.permute.xlu0 %4557
      %4559 = vrot.lane.b32.xlu0 %v4491, 120
      %v4560 = vpop.permute.xlu0 %4559
      %4561 = vrot.lane.b32.xlu0 %v4493, 120
      %v4562 = vpop.permute.xlu0 %4561
      %4563 = vrot.lane.b32.xlu0 %v4496, 120
      %v4564 = vpop.permute.xlu0 %4563
      %4565 = vrot.lane.b32.xlu0 %v4498, 120
      %v4566 = vpop.permute.xlu0 %4565
      %4567 = vrot.lane.b32.xlu0 %v4501, 120
      %v4568 = vpop.permute.xlu0 %4567
      %4569 = vrot.lane.b32.xlu0 %v4503, 120
      %v4570 = vpop.permute.xlu0 %4569
      %4571 = vrot.lane.b32.xlu0 %v4506, 120
      %v4572 = vpop.permute.xlu0 %4571
      %4573 = vrot.lane.b32.xlu0 %v4508, 120
      %v4574 = vpop.permute.xlu0 %4573
      %4575 = vrot.lane.b32.xlu0 %v4511, 120
      %v4576 = vpop.permute.xlu0 %4575
      %4577 = vrot.lane.b32.xlu0 %v4513, 120
      %v4578 = vpop.permute.xlu0 %4577
      %4579 = vrot.lane.b32.xlu0 %v4516, 120
      %v4580 = vpop.permute.xlu0 %4579
      %4581 = vrot.lane.b32.xlu0 %v4518, 120
      %v4582 = vpop.permute.xlu0 %4581
      %v4615 = vadd.f32 %v4391, %v4520
      %v4616 = vadd.f32 %v4392, %v4522
      %v4617 = vadd.f32 %v4393, %v4524
      %v4618 = vadd.f32 %v4394, %v4526
      %v4619 = vadd.f32 %v4395, %v4528
      %v4620 = vadd.f32 %v4396, %v4530
      %v4621 = vadd.f32 %v4397, %v4532
      %v4622 = vadd.f32 %v4398, %v4534
      %v4623 = vadd.f32 %v4399, %v4536
      %v4624 = vadd.f32 %v4400, %v4538
      %v4625 = vadd.f32 %v4401, %v4540
      %v4626 = vadd.f32 %v4402, %v4542
      %v4627 = vadd.f32 %v4403, %v4544
      %v4628 = vadd.f32 %v4404, %v4546
      %v4629 = vadd.f32 %v4405, %v4548
      %v4630 = vadd.f32 %v4406, %v4550
      %v4631 = vadd.f32 %v4407, %v4552
      %v4632 = vadd.f32 %v4408, %v4554
      %v4633 = vadd.f32 %v4409, %v4556
      %v4634 = vadd.f32 %v4410, %v4558
      %v4635 = vadd.f32 %v4411, %v4560
      %v4636 = vadd.f32 %v4412, %v4562
      %v4637 = vadd.f32 %v4413, %v4564
      %v4638 = vadd.f32 %v4414, %v4566
      %v4639 = vadd.f32 %v4415, %v4568
      %v4640 = vadd.f32 %v4416, %v4570
      %v4641 = vadd.f32 %v4417, %v4572
      %v4642 = vadd.f32 %v4418, %v4574
      %v4643 = vadd.f32 %v4419, %v4576
      %v4644 = vadd.f32 %v4420, %v4578
      %v4645 = vadd.f32 %v4421, %v4580
      %v4646 = vadd.f32 %v4422, %v4582
      %s4647 = scalar_lea.vmem %s2, %s1330
      %v4648 = vld [vmem:[%s4647] sm:$0xf]
      %v4649 = vld [vmem:[%s308] sm:$0xff]
      %v4650 = vld [vmem:[%s308 + $0x8] sm:$0xff]
      %v4651 = vld [vmem:[%s308 + $0x10] sm:$0xff]
      %v4652 = vld [vmem:[%s308 + $0x18] sm:$0xff]
      %v4653 = vld [vmem:[%s308 + $0x20] sm:$0xff]
      %v4654 = vld [vmem:[%s308 + $0x28] sm:$0xff]
      %v4655 = vld [vmem:[%s308 + $0x30] sm:$0xff]
      %v4656 = vld [vmem:[%s308 + $0x38] sm:$0xff]
      %v4657 = vld [vmem:[%s308 + $0x40] sm:$0xff]
      %v4658 = vld [vmem:[%s308 + $0x48] sm:$0xff]
      %v4659 = vld [vmem:[%s308 + $0x50] sm:$0xff]
      %v4660 = vld [vmem:[%s308 + $0x58] sm:$0xff]
      %v4661 = vld [vmem:[%s308 + $0x60] sm:$0xff]
      %v4662 = vld [vmem:[%s308 + $0x68] sm:$0xff]
      %v4663 = vld [vmem:[%s308 + $0x70] sm:$0xff]
      %v4664 = vld [vmem:[%s308 + $0x78] sm:$0xff]
      %v4665 = vld [vmem:[%s308 + $0x80] sm:$0xff]
      %v4666 = vld [vmem:[%s308 + $0x88] sm:$0xff]
      %v4667 = vld [vmem:[%s308 + $0x90] sm:$0xff]
      %v4668 = vld [vmem:[%s308 + $0x98] sm:$0xff]
      %v4669 = vld [vmem:[%s308 + $0xa0] sm:$0xff]
      %v4670 = vld [vmem:[%s308 + $0xa8] sm:$0xff]
      %v4671 = vld [vmem:[%s308 + $0xb0] sm:$0xff]
      %v4672 = vld [vmem:[%s308 + $0xb8] sm:$0xff]
      %v4673 = vld [vmem:[%s308 + $0xc0] sm:$0xff]
      %v4674 = vld [vmem:[%s308 + $0xc8] sm:$0xff]
      %v4675 = vld [vmem:[%s308 + $0xd0] sm:$0xff]
      %v4676 = vld [vmem:[%s308 + $0xd8] sm:$0xff]
      %v4677 = vld [vmem:[%s308 + $0xe0] sm:$0xff]
      %v4678 = vld [vmem:[%s308 + $0xe8] sm:$0xff]
      %v4679 = vld [vmem:[%s308 + $0xf0] sm:$0xff]
      %v4680 = vld [vmem:[%s308 + $0xf8] sm:$0xff]
      %v4681 = vld [vmem:[%s308 + $0x100] sm:$0xff]
      %v4682 = vld [vmem:[%s308 + $0x108] sm:$0xff]
      %v4683 = vld [vmem:[%s308 + $0x110] sm:$0xff]
      %v4684 = vld [vmem:[%s308 + $0x118] sm:$0xff]
      %v4685 = vld [vmem:[%s308 + $0x120] sm:$0xff]
      %v4686 = vld [vmem:[%s308 + $0x128] sm:$0xff]
      %v4687 = vld [vmem:[%s308 + $0x130] sm:$0xff]
      %v4688 = vld [vmem:[%s308 + $0x138] sm:$0xff]
      %v4689 = vld [vmem:[%s308 + $0x140] sm:$0xff]
      %v4690 = vld [vmem:[%s308 + $0x148] sm:$0xff]
      %v4691 = vld [vmem:[%s308 + $0x150] sm:$0xff]
      %v4692 = vld [vmem:[%s308 + $0x158] sm:$0xff]
      %v4693 = vld [vmem:[%s308 + $0x160] sm:$0xff]
      %v4694 = vld [vmem:[%s308 + $0x168] sm:$0xff]
      %v4695 = vld [vmem:[%s308 + $0x170] sm:$0xff]
      %v4696 = vld [vmem:[%s308 + $0x178] sm:$0xff]
      %v4698 = vsel %vm309, %v4649, 0
      %v4701 = vsel %vm309, %v4650, 0
      %v4704 = vsel %vm309, %v4651, 0
      %v4707 = vsel %vm309, %v4652, 0
      %v4710 = vsel %vm309, %v4653, 0
      %v4713 = vsel %vm309, %v4654, 0
      %v4716 = vsel %vm309, %v4655, 0
      %v4719 = vsel %vm309, %v4656, 0
      %v4722 = vsel %vm309, %v4657, 0
      %v4725 = vsel %vm309, %v4658, 0
      %v4728 = vsel %vm309, %v4659, 0
      %v4731 = vsel %vm309, %v4660, 0
      %v4734 = vsel %vm309, %v4661, 0
      %v4737 = vsel %vm309, %v4662, 0
      %v4740 = vsel %vm309, %v4663, 0
      %v4743 = vsel %vm309, %v4664, 0
      %v4746 = vsel %vm309, %v4665, 0
      %v4749 = vsel %vm309, %v4666, 0
      %v4752 = vsel %vm309, %v4667, 0
      %v4755 = vsel %vm309, %v4668, 0
      %v4758 = vsel %vm309, %v4669, 0
      %v4761 = vsel %vm309, %v4670, 0
      %v4764 = vsel %vm309, %v4671, 0
      %v4767 = vsel %vm309, %v4672, 0
      %v4770 = vsel %vm309, %v4673, 0
      %v4773 = vsel %vm309, %v4674, 0
      %v4776 = vsel %vm309, %v4675, 0
      %v4779 = vsel %vm309, %v4676, 0
      %v4782 = vsel %vm309, %v4677, 0
      %v4785 = vsel %vm309, %v4678, 0
      %v4788 = vsel %vm309, %v4679, 0
      %v4791 = vsel %vm309, %v4680, 0
      %v4794 = vsel %vm309, %v4681, 0
      %v4797 = vsel %vm309, %v4682, 0
      %v4800 = vsel %vm309, %v4683, 0
      %v4803 = vsel %vm309, %v4684, 0
      %v4806 = vsel %vm309, %v4685, 0
      %v4809 = vsel %vm309, %v4686, 0
      %v4812 = vsel %vm309, %v4687, 0
      %v4815 = vsel %vm309, %v4688, 0
      %v4818 = vsel %vm309, %v4689, 0
      %v4821 = vsel %vm309, %v4690, 0
      %v4824 = vsel %vm309, %v4691, 0
      %v4827 = vsel %vm309, %v4692, 0
      %v4830 = vsel %vm309, %v4693, 0
      %v4833 = vsel %vm309, %v4694, 0
      %v4836 = vsel %vm309, %v4695, 0
      %v4839 = vsel %vm309, %v4696, 0
      %v4842 = vsel %vm538, %v4648, 0
      %4844 = vmatprep.subr.mxu0 0.0
      %4845 = vmatpush1.msra.mxu0 %v4842
      %4846 = vmatprep.subr.mxu0 0.0
      %4847 = vmatpush1.msra.mxu0 0.0
      %4848 = vmatprep.subr.mxu0 0.0
      %4849 = vmatpush1.msra.mxu0 0.0
      %4850 = vmatprep.subr.mxu0 0.0
      %4851 = vmatpush1.msra.mxu0 0.0
      %4852 = vmatprep.subr.mxu0 0.0
      %4853 = vmatpush1.msra.mxu0 0.0
      %4854 = vmatprep.subr.mxu0 0.0
      %4855 = vmatpush1.msra.mxu0 0.0
      %4856 = vmatprep.subr.mxu0 0.0
      %4857 = vmatpush1.msra.mxu0 0.0
      %4858 = vmatprep.subr.mxu0 0.0
      %4859 = vmatpush1.msra.mxu0 0.0
      %4860 = vmatprep.subr.mxu0 0.0
      %4861 = vmatpush1.msra.mxu0 0.0
      %4862 = vmatprep.subr.mxu0 0.0
      %4863 = vmatpush1.msra.mxu0 0.0
      %4864 = vmatprep.subr.mxu0 0.0
      %4865 = vmatpush1.msra.mxu0 0.0
      %4866 = vmatprep.subr.mxu0 0.0
      %4867 = vmatpush1.msra.mxu0 0.0
      %4868 = vmatprep.subr.mxu0 0.0
      %4869 = vmatpush1.msra.mxu0 0.0
      %4870 = vmatprep.subr.mxu0 0.0
      %4871 = vmatpush1.msra.mxu0 0.0
      %4872 = vmatprep.subr.mxu0 0.0
      %4873 = vmatpush1.msra.mxu0 0.0
      %4874 = vmatprep.subr.mxu0 0.0
      %4875 = vmatpush1.msra.mxu0 0.0
      %4876 = vmatprep.subr.mxu0 0.0
      %4877 = vmatpush1.msra.mxu0 0.0
      %4878 = vmatprep.subr.mxu0 0.0
      %4879 = vmatpush1.msra.mxu0 0.0
      %4880 = vmatprep.subr.mxu0 0.0
      %4881 = vmatpush1.msra.mxu0 0.0
      %4882 = vmatprep.subr.mxu0 0.0
      %4883 = vmatpush1.msra.mxu0 0.0
      %4884 = vmatprep.subr.mxu0 0.0
      %4885 = vmatpush1.msra.mxu0 0.0
      %4886 = vmatprep.subr.mxu0 0.0
      %4887 = vmatpush1.msra.mxu0 0.0
      %4888 = vmatprep.subr.mxu0 0.0
      %4889 = vmatpush1.msra.mxu0 0.0
      %4890 = vmatprep.subr.mxu0 0.0
      %4891 = vmatpush1.msra.mxu0 0.0
      %4892 = vmatprep.subr.mxu0 0.0
      %4893 = vmatpush1.msra.mxu0 0.0
      %4894 = vmatprep.subr.mxu0 0.0
      %4895 = vmatpush1.msra.mxu0 0.0
      %4896 = vmatprep.subr.mxu0 0.0
      %4897 = vmatpush1.msra.mxu0 0.0
      %4898 = vmatprep.subr.mxu0 0.0
      %4899 = vmatpush1.msra.mxu0 0.0
      %4900 = vmatprep.subr.mxu0 0.0
      %4901 = vmatpush1.msra.mxu0 0.0
      %4902 = vmatprep.subr.mxu0 0.0
      %4903 = vmatpush1.msra.mxu0 0.0
      %4904 = vmatprep.subr.mxu0 0.0
      %4905 = vmatpush1.msra.mxu0 0.0
      %4906 = vmatprep.subr.mxu0 0.0
      %4907 = vmatpush1.msra.mxu0 0.0
      %4908 = vmatprep.mubr.f32.mxu0 0.0
      %4909 = vmatmul.mubr.f32.gmra.mrb[0].mxu0 %v4698
      %v4910 = vpop.f32.mrb[0].mxu0
      %v4911 = vadd.f32 0.0, %v4910
      %v4912 = vpop.f32.mrb[0].mxu0
      %4913 = vmatprep.mubr.f32.mxu0 0.0
      %4914 = vmatmul.mubr.f32.gmra.mrb[0].mxu0 %v4701
      %v4915 = vpop.f32.mrb[0].mxu0
      %v4916 = vadd.f32 0.0, %v4915
      %v4917 = vpop.f32.mrb[0].mxu0
      %4918 = vmatprep.mubr.f32.mxu0 0.0
      %4919 = vmatmul.mubr.f32.gmra.mrb[0].mxu0 %v4704
      %v4920 = vpop.f32.mrb[0].mxu0
      %v4921 = vadd.f32 0.0, %v4920
      %v4922 = vpop.f32.mrb[0].mxu0
      %4923 = vmatprep.mubr.f32.mxu0 0.0
      %4924 = vmatmul.mubr.f32.gmra.mrb[0].mxu0 %v4707
      %v4925 = vpop.f32.mrb[0].mxu0
      %v4926 = vadd.f32 0.0, %v4925
      %v4927 = vpop.f32.mrb[0].mxu0
      %4928 = vmatprep.mubr.f32.mxu0 0.0
      %4929 = vmatmul.mubr.f32.gmra.mrb[0].mxu0 %v4710
      %v4930 = vpop.f32.mrb[0].mxu0
      %v4931 = vadd.f32 0.0, %v4930
      %v4932 = vpop.f32.mrb[0].mxu0
      %4933 = vmatprep.mubr.f32.mxu0 0.0
      %4934 = vmatmul.mubr.f32.gmra.mrb[0].mxu0 %v4713
      %v4935 = vpop.f32.mrb[0].mxu0
      %v4936 = vadd.f32 0.0, %v4935
      %v4937 = vpop.f32.mrb[0].mxu0
      %4938 = vmatprep.mubr.f32.mxu0 0.0
      %4939 = vmatmul.mubr.f32.gmra.mrb[0].mxu0 %v4716
      %v4940 = vpop.f32.mrb[0].mxu0
      %v4941 = vadd.f32 0.0, %v4940
      %v4942 = vpop.f32.mrb[0].mxu0
      %4943 = vmatprep.mubr.f32.mxu0 0.0
      %4944 = vmatmul.mubr.f32.gmra.mrb[0].mxu0 %v4719
      %v4945 = vpop.f32.mrb[0].mxu0
      %v4946 = vadd.f32 0.0, %v4945
      %v4947 = vpop.f32.mrb[0].mxu0
      %4948 = vmatprep.mubr.f32.mxu0 0.0
      %4949 = vmatmul.mubr.f32.gmra.mrb[0].mxu0 %v4722
      %v4950 = vpop.f32.mrb[0].mxu0
      %v4951 = vadd.f32 0.0, %v4950
      %v4952 = vpop.f32.mrb[0].mxu0
      %4953 = vmatprep.mubr.f32.mxu0 0.0
      %4954 = vmatmul.mubr.f32.gmra.mrb[0].mxu0 %v4725
      %v4955 = vpop.f32.mrb[0].mxu0
      %v4956 = vadd.f32 0.0, %v4955
      %v4957 = vpop.f32.mrb[0].mxu0
      %4958 = vmatprep.mubr.f32.mxu0 0.0
      %4959 = vmatmul.mubr.f32.gmra.mrb[0].mxu0 %v4728
      %v4960 = vpop.f32.mrb[0].mxu0
      %v4961 = vadd.f32 0.0, %v4960
      %v4962 = vpop.f32.mrb[0].mxu0
      %4963 = vmatprep.mubr.f32.mxu0 0.0
      %4964 = vmatmul.mubr.f32.gmra.mrb[0].mxu0 %v4731
      %v4965 = vpop.f32.mrb[0].mxu0
      %v4966 = vadd.f32 0.0, %v4965
      %v4967 = vpop.f32.mrb[0].mxu0
      %4968 = vmatprep.mubr.f32.mxu0 0.0
      %4969 = vmatmul.mubr.f32.gmra.mrb[0].mxu0 %v4734
      %v4970 = vpop.f32.mrb[0].mxu0
      %v4971 = vadd.f32 0.0, %v4970
      %v4972 = vpop.f32.mrb[0].mxu0
      %4973 = vmatprep.mubr.f32.mxu0 0.0
      %4974 = vmatmul.mubr.f32.gmra.mrb[0].mxu0 %v4737
      %v4975 = vpop.f32.mrb[0].mxu0
      %v4976 = vadd.f32 0.0, %v4975
      %v4977 = vpop.f32.mrb[0].mxu0
      %4978 = vmatprep.mubr.f32.mxu0 0.0
      %4979 = vmatmul.mubr.f32.gmra.mrb[0].mxu0 %v4740
      %v4980 = vpop.f32.mrb[0].mxu0
      %v4981 = vadd.f32 0.0, %v4980
      %v4982 = vpop.f32.mrb[0].mxu0
      %4983 = vmatprep.mubr.f32.mxu0 0.0
      %4984 = vmatmul.mubr.f32.gmra.mrb[0].mxu0 %v4743
      %v4985 = vpop.f32.mrb[0].mxu0
      %v4986 = vadd.f32 0.0, %v4985
      %v4987 = vpop.f32.mrb[0].mxu0
      %4988 = vmatprep.mubr.f32.mxu0 0.0
      %4989 = vmatmul.mubr.f32.gmra.mrb[0].mxu0 %v4746
      %v4990 = vpop.f32.mrb[0].mxu0
      %v4991 = vadd.f32 0.0, %v4990
      %v4992 = vpop.f32.mrb[0].mxu0
      %4993 = vmatprep.mubr.f32.mxu0 0.0
      %4994 = vmatmul.mubr.f32.gmra.mrb[0].mxu0 %v4749
      %v4995 = vpop.f32.mrb[0].mxu0
      %v4996 = vadd.f32 0.0, %v4995
      %v4997 = vpop.f32.mrb[0].mxu0
      %4998 = vmatprep.mubr.f32.mxu0 0.0
      %4999 = vmatmul.mubr.f32.gmra.mrb[0].mxu0 %v4752
      %v5000 = vpop.f32.mrb[0].mxu0
      %v5001 = vadd.f32 0.0, %v5000
      %v5002 = vpop.f32.mrb[0].mxu0
      %5003 = vmatprep.mubr.f32.mxu0 0.0
      %5004 = vmatmul.mubr.f32.gmra.mrb[0].mxu0 %v4755
      %v5005 = vpop.f32.mrb[0].mxu0
      %v5006 = vadd.f32 0.0, %v5005
      %v5007 = vpop.f32.mrb[0].mxu0
      %5008 = vmatprep.mubr.f32.mxu0 0.0
      %5009 = vmatmul.mubr.f32.gmra.mrb[0].mxu0 %v4758
      %v5010 = vpop.f32.mrb[0].mxu0
      %v5011 = vadd.f32 0.0, %v5010
      %v5012 = vpop.f32.mrb[0].mxu0
      %5013 = vmatprep.mubr.f32.mxu0 0.0
      %5014 = vmatmul.mubr.f32.gmra.mrb[0].mxu0 %v4761
      %v5015 = vpop.f32.mrb[0].mxu0
      %v5016 = vadd.f32 0.0, %v5015
      %v5017 = vpop.f32.mrb[0].mxu0
      %5018 = vmatprep.mubr.f32.mxu0 0.0
      %5019 = vmatmul.mubr.f32.gmra.mrb[0].mxu0 %v4764
      %v5020 = vpop.f32.mrb[0].mxu0
      %v5021 = vadd.f32 0.0, %v5020
      %v5022 = vpop.f32.mrb[0].mxu0
      %5023 = vmatprep.mubr.f32.mxu0 0.0
      %5024 = vmatmul.mubr.f32.gmra.mrb[0].mxu0 %v4767
      %v5025 = vpop.f32.mrb[0].mxu0
      %v5026 = vadd.f32 0.0, %v5025
      %v5027 = vpop.f32.mrb[0].mxu0
      %5028 = vmatprep.mubr.f32.mxu0 0.0
      %5029 = vmatmul.mubr.f32.gmra.mrb[0].mxu0 %v4770
      %v5030 = vpop.f32.mrb[0].mxu0
      %v5031 = vadd.f32 0.0, %v5030
      %v5032 = vpop.f32.mrb[0].mxu0
      %5033 = vmatprep.mubr.f32.mxu0 0.0
      %5034 = vmatmul.mubr.f32.gmra.mrb[0].mxu0 %v4773
      %v5035 = vpop.f32.mrb[0].mxu0
      %v5036 = vadd.f32 0.0, %v5035
      %v5037 = vpop.f32.mrb[0].mxu0
      %5038 = vmatprep.mubr.f32.mxu0 0.0
      %5039 = vmatmul.mubr.f32.gmra.mrb[0].mxu0 %v4776
      %v5040 = vpop.f32.mrb[0].mxu0
      %v5041 = vadd.f32 0.0, %v5040
      %v5042 = vpop.f32.mrb[0].mxu0
      %5043 = vmatprep.mubr.f32.mxu0 0.0
      %5044 = vmatmul.mubr.f32.gmra.mrb[0].mxu0 %v4779
      %v5045 = vpop.f32.mrb[0].mxu0
      %v5046 = vadd.f32 0.0, %v5045
      %v5047 = vpop.f32.mrb[0].mxu0
      %5048 = vmatprep.mubr.f32.mxu0 0.0
      %5049 = vmatmul.mubr.f32.gmra.mrb[0].mxu0 %v4782
      %v5050 = vpop.f32.mrb[0].mxu0
      %v5051 = vadd.f32 0.0, %v5050
      %v5052 = vpop.f32.mrb[0].mxu0
      %5053 = vmatprep.mubr.f32.mxu0 0.0
      %5054 = vmatmul.mubr.f32.gmra.mrb[0].mxu0 %v4785
      %v5055 = vpop.f32.mrb[0].mxu0
      %v5056 = vadd.f32 0.0, %v5055
      %v5057 = vpop.f32.mrb[0].mxu0
      %5058 = vmatprep.mubr.f32.mxu0 0.0
      %5059 = vmatmul.mubr.f32.gmra.mrb[0].mxu0 %v4788
      %v5060 = vpop.f32.mrb[0].mxu0
      %v5061 = vadd.f32 0.0, %v5060
      %v5062 = vpop.f32.mrb[0].mxu0
      %5063 = vmatprep.mubr.f32.mxu0 0.0
      %5064 = vmatmul.mubr.f32.gmra.mrb[0].mxu0 %v4791
      %v5065 = vpop.f32.mrb[0].mxu0
      %v5066 = vadd.f32 0.0, %v5065
      %v5067 = vpop.f32.mrb[0].mxu0
      %5068 = vmatprep.mubr.f32.mxu0 0.0
      %5069 = vmatmul.mubr.f32.gmra.mrb[0].mxu0 %v4794
      %v5070 = vpop.f32.mrb[0].mxu0
      %v5071 = vadd.f32 0.0, %v5070
      %v5072 = vpop.f32.mrb[0].mxu0
      %5073 = vmatprep.mubr.f32.mxu0 0.0
      %5074 = vmatmul.mubr.f32.gmra.mrb[0].mxu0 %v4797
      %v5075 = vpop.f32.mrb[0].mxu0
      %v5076 = vadd.f32 0.0, %v5075
      %v5077 = vpop.f32.mrb[0].mxu0
      %5078 = vmatprep.mubr.f32.mxu0 0.0
      %5079 = vmatmul.mubr.f32.gmra.mrb[0].mxu0 %v4800
      %v5080 = vpop.f32.mrb[0].mxu0
      %v5081 = vadd.f32 0.0, %v5080
      %v5082 = vpop.f32.mrb[0].mxu0
      %5083 = vmatprep.mubr.f32.mxu0 0.0
      %5084 = vmatmul.mubr.f32.gmra.mrb[0].mxu0 %v4803
      %v5085 = vpop.f32.mrb[0].mxu0
      %v5086 = vadd.f32 0.0, %v5085
      %v5087 = vpop.f32.mrb[0].mxu0
      %5088 = vmatprep.mubr.f32.mxu0 0.0
      %5089 = vmatmul.mubr.f32.gmra.mrb[0].mxu0 %v4806
      %v5090 = vpop.f32.mrb[0].mxu0
      %v5091 = vadd.f32 0.0, %v5090
      %v5092 = vpop.f32.mrb[0].mxu0
      %5093 = vmatprep.mubr.f32.mxu0 0.0
      %5094 = vmatmul.mubr.f32.gmra.mrb[0].mxu0 %v4809
      %v5095 = vpop.f32.mrb[0].mxu0
      %v5096 = vadd.f32 0.0, %v5095
      %v5097 = vpop.f32.mrb[0].mxu0
      %5098 = vmatprep.mubr.f32.mxu0 0.0
      %5099 = vmatmul.mubr.f32.gmra.mrb[0].mxu0 %v4812
      %v5100 = vpop.f32.mrb[0].mxu0
      %v5101 = vadd.f32 0.0, %v5100
      %v5102 = vpop.f32.mrb[0].mxu0
      %5103 = vmatprep.mubr.f32.mxu0 0.0
      %5104 = vmatmul.mubr.f32.gmra.mrb[0].mxu0 %v4815
      %v5105 = vpop.f32.mrb[0].mxu0
      %v5106 = vadd.f32 0.0, %v5105
      %v5107 = vpop.f32.mrb[0].mxu0
      %5108 = vmatprep.mubr.f32.mxu0 0.0
      %5109 = vmatmul.mubr.f32.gmra.mrb[0].mxu0 %v4818
      %v5110 = vpop.f32.mrb[0].mxu0
      %v5111 = vadd.f32 0.0, %v5110
      %v5112 = vpop.f32.mrb[0].mxu0
      %5113 = vmatprep.mubr.f32.mxu0 0.0
      %5114 = vmatmul.mubr.f32.gmra.mrb[0].mxu0 %v4821
      %v5115 = vpop.f32.mrb[0].mxu0
      %v5116 = vadd.f32 0.0, %v5115
      %v5117 = vpop.f32.mrb[0].mxu0
      %5118 = vmatprep.mubr.f32.mxu0 0.0
      %5119 = vmatmul.mubr.f32.gmra.mrb[0].mxu0 %v4824
      %v5120 = vpop.f32.mrb[0].mxu0
      %v5121 = vadd.f32 0.0, %v5120
      %v5122 = vpop.f32.mrb[0].mxu0
      %5123 = vmatprep.mubr.f32.mxu0 0.0
      %5124 = vmatmul.mubr.f32.gmra.mrb[0].mxu0 %v4827
      %v5125 = vpop.f32.mrb[0].mxu0
      %v5126 = vadd.f32 0.0, %v5125
      %v5127 = vpop.f32.mrb[0].mxu0
      %5128 = vmatprep.mubr.f32.mxu0 0.0
      %5129 = vmatmul.mubr.f32.gmra.mrb[0].mxu0 %v4830
      %v5130 = vpop.f32.mrb[0].mxu0
      %v5131 = vadd.f32 0.0, %v5130
      %v5132 = vpop.f32.mrb[0].mxu0
      %5133 = vmatprep.mubr.f32.mxu0 0.0
      %5134 = vmatmul.mubr.f32.gmra.mrb[0].mxu0 %v4833
      %v5135 = vpop.f32.mrb[0].mxu0
      %v5136 = vadd.f32 0.0, %v5135
      %v5137 = vpop.f32.mrb[0].mxu0
      %5138 = vmatprep.mubr.f32.mxu0 0.0
      %5139 = vmatmul.mubr.f32.gmra.mrb[0].mxu0 %v4836
      %v5140 = vpop.f32.mrb[0].mxu0
      %v5141 = vadd.f32 0.0, %v5140
      %v5142 = vpop.f32.mrb[0].mxu0
      %5143 = vmatprep.mubr.f32.mxu0 0.0
      %5144 = vmatmul.mubr.f32.gmra.mrb[0].mxu0 %v4839
      %v5145 = vpop.f32.mrb[0].mxu0
      %v5146 = vadd.f32 0.0, %v5145
      %v5147 = vpop.f32.mrb[0].mxu0
      %5148 = vdwg.mxu0
      %v5181 = vrot.slane %v4911, 7
      %v5182 = vrot.slane %v4916, 7
      %v5183 = vsel %vm879, %v5181, %v5182
      %v5184 = vrot.slane %v4926, 7
      %v5185 = vrot.slane %v4931, 7
      %v5186 = vsel %vm879, %v5184, %v5185
      %v5187 = vrot.slane %v4941, 7
      %v5188 = vrot.slane %v4946, 7
      %v5189 = vsel %vm879, %v5187, %v5188
      %v5190 = vrot.slane %v4956, 7
      %v5191 = vrot.slane %v4961, 7
      %v5192 = vsel %vm879, %v5190, %v5191
      %v5193 = vrot.slane %v4971, 7
      %v5194 = vrot.slane %v4976, 7
      %v5195 = vsel %vm879, %v5193, %v5194
      %v5196 = vrot.slane %v4986, 7
      %v5197 = vrot.slane %v4991, 7
      %v5198 = vsel %vm879, %v5196, %v5197
      %v5199 = vrot.slane %v5001, 7
      %v5200 = vrot.slane %v5006, 7
      %v5201 = vsel %vm879, %v5199, %v5200
      %v5202 = vrot.slane %v5016, 7
      %v5203 = vrot.slane %v5021, 7
      %v5204 = vsel %vm879, %v5202, %v5203
      %v5205 = vrot.slane %v5031, 7
      %v5206 = vrot.slane %v5036, 7
      %v5207 = vsel %vm879, %v5205, %v5206
      %v5208 = vrot.slane %v5046, 7
      %v5209 = vrot.slane %v5051, 7
      %v5210 = vsel %vm879, %v5208, %v5209
      %v5211 = vrot.slane %v5061, 7
      %v5212 = vrot.slane %v5066, 7
      %v5213 = vsel %vm879, %v5211, %v5212
      %v5214 = vrot.slane %v5076, 7
      %v5215 = vrot.slane %v5081, 7
      %v5216 = vsel %vm879, %v5214, %v5215
      %v5217 = vrot.slane %v5091, 7
      %v5218 = vrot.slane %v5096, 7
      %v5219 = vsel %vm879, %v5217, %v5218
      %v5220 = vrot.slane %v5106, 7
      %v5221 = vrot.slane %v5111, 7
      %v5222 = vsel %vm879, %v5220, %v5221
      %v5223 = vrot.slane %v5121, 7
      %v5224 = vrot.slane %v5126, 7
      %v5225 = vsel %vm879, %v5223, %v5224
      %v5226 = vrot.slane %v5136, 7
      %v5227 = vrot.slane %v5141, 7
      %v5228 = vsel %vm879, %v5226, %v5227
      %v5261 = vsel %vm879, 0.0, %v5181
      %v5262 = vsel %vm879, 0.0, %v5184
      %v5263 = vsel %vm879, 0.0, %v5187
      %v5264 = vsel %vm879, 0.0, %v5190
      %v5265 = vsel %vm879, 0.0, %v5193
      %v5266 = vsel %vm879, 0.0, %v5196
      %v5267 = vsel %vm879, 0.0, %v5199
      %v5268 = vsel %vm879, 0.0, %v5202
      %v5269 = vsel %vm879, 0.0, %v5205
      %v5270 = vsel %vm879, 0.0, %v5208
      %v5271 = vsel %vm879, 0.0, %v5211
      %v5272 = vsel %vm879, 0.0, %v5214
      %v5273 = vsel %vm879, 0.0, %v5217
      %v5274 = vsel %vm879, 0.0, %v5220
      %v5275 = vsel %vm879, 0.0, %v5223
      %v5276 = vsel %vm879, 0.0, %v5226
      %5277 = vrot.lane.b32.xlu0 %v4911, 124
      %v5278 = vpop.permute.xlu0 %5277
      %5279 = vrot.lane.b32.xlu0 %v4916, 124
      %v5280 = vpop.permute.xlu0 %5279
      %5281 = vrot.lane.b32.xlu0 %v4926, 124
      %v5282 = vpop.permute.xlu0 %5281
      %5283 = vrot.lane.b32.xlu0 %v4931, 124
      %v5284 = vpop.permute.xlu0 %5283
      %5285 = vrot.lane.b32.xlu0 %v4941, 124
      %v5286 = vpop.permute.xlu0 %5285
      %5287 = vrot.lane.b32.xlu0 %v4946, 124
      %v5288 = vpop.permute.xlu0 %5287
      %5289 = vrot.lane.b32.xlu0 %v4956, 124
      %v5290 = vpop.permute.xlu0 %5289
      %5291 = vrot.lane.b32.xlu0 %v4961, 124
      %v5292 = vpop.permute.xlu0 %5291
      %5293 = vrot.lane.b32.xlu0 %v4971, 124
      %v5294 = vpop.permute.xlu0 %5293
      %5295 = vrot.lane.b32.xlu0 %v4976, 124
      %v5296 = vpop.permute.xlu0 %5295
      %5297 = vrot.lane.b32.xlu0 %v4986, 124
      %v5298 = vpop.permute.xlu0 %5297
      %5299 = vrot.lane.b32.xlu0 %v4991, 124
      %v5300 = vpop.permute.xlu0 %5299
      %5301 = vrot.lane.b32.xlu0 %v5001, 124
      %v5302 = vpop.permute.xlu0 %5301
      %5303 = vrot.lane.b32.xlu0 %v5006, 124
      %v5304 = vpop.permute.xlu0 %5303
      %5305 = vrot.lane.b32.xlu0 %v5016, 124
      %v5306 = vpop.permute.xlu0 %5305
      %5307 = vrot.lane.b32.xlu0 %v5021, 124
      %v5308 = vpop.permute.xlu0 %5307
      %5309 = vrot.lane.b32.xlu0 %v5031, 124
      %v5310 = vpop.permute.xlu0 %5309
      %5311 = vrot.lane.b32.xlu0 %v5036, 124
      %v5312 = vpop.permute.xlu0 %5311
      %5313 = vrot.lane.b32.xlu0 %v5046, 124
      %v5314 = vpop.permute.xlu0 %5313
      %5315 = vrot.lane.b32.xlu0 %v5051, 124
      %v5316 = vpop.permute.xlu0 %5315
      %5317 = vrot.lane.b32.xlu0 %v5061, 124
      %v5318 = vpop.permute.xlu0 %5317
      %5319 = vrot.lane.b32.xlu0 %v5066, 124
      %v5320 = vpop.permute.xlu0 %5319
      %5321 = vrot.lane.b32.xlu0 %v5076, 124
      %v5322 = vpop.permute.xlu0 %5321
      %5323 = vrot.lane.b32.xlu0 %v5081, 124
      %v5324 = vpop.permute.xlu0 %5323
      %5325 = vrot.lane.b32.xlu0 %v5091, 124
      %v5326 = vpop.permute.xlu0 %5325
      %5327 = vrot.lane.b32.xlu0 %v5096, 124
      %v5328 = vpop.permute.xlu0 %5327
      %5329 = vrot.lane.b32.xlu0 %v5106, 124
      %v5330 = vpop.permute.xlu0 %5329
      %5331 = vrot.lane.b32.xlu0 %v5111, 124
      %v5332 = vpop.permute.xlu0 %5331
      %5333 = vrot.lane.b32.xlu0 %v5121, 124
      %v5334 = vpop.permute.xlu0 %5333
      %5335 = vrot.lane.b32.xlu0 %v5126, 124
      %v5336 = vpop.permute.xlu0 %5335
      %5337 = vrot.lane.b32.xlu0 %v5136, 124
      %v5338 = vpop.permute.xlu0 %5337
      %5339 = vrot.lane.b32.xlu0 %v5141, 124
      %v5340 = vpop.permute.xlu0 %5339
      %v5373 = vadd.f32 %v5261, %v5278
      %v5374 = vadd.f32 %v5183, %v5280
      %v5375 = vadd.f32 %v5262, %v5282
      %v5376 = vadd.f32 %v5186, %v5284
      %v5377 = vadd.f32 %v5263, %v5286
      %v5378 = vadd.f32 %v5189, %v5288
      %v5379 = vadd.f32 %v5264, %v5290
      %v5380 = vadd.f32 %v5192, %v5292
      %v5381 = vadd.f32 %v5265, %v5294
      %v5382 = vadd.f32 %v5195, %v5296
      %v5383 = vadd.f32 %v5266, %v5298
      %v5384 = vadd.f32 %v5198, %v5300
      %v5385 = vadd.f32 %v5267, %v5302
      %v5386 = vadd.f32 %v5201, %v5304
      %v5387 = vadd.f32 %v5268, %v5306
      %v5388 = vadd.f32 %v5204, %v5308
      %v5389 = vadd.f32 %v5269, %v5310
      %v5390 = vadd.f32 %v5207, %v5312
      %v5391 = vadd.f32 %v5270, %v5314
      %v5392 = vadd.f32 %v5210, %v5316
      %v5393 = vadd.f32 %v5271, %v5318
      %v5394 = vadd.f32 %v5213, %v5320
      %v5395 = vadd.f32 %v5272, %v5322
      %v5396 = vadd.f32 %v5216, %v5324
      %v5397 = vadd.f32 %v5273, %v5326
      %v5398 = vadd.f32 %v5219, %v5328
      %v5399 = vadd.f32 %v5274, %v5330
      %v5400 = vadd.f32 %v5222, %v5332
      %v5401 = vadd.f32 %v5275, %v5334
      %v5402 = vadd.f32 %v5225, %v5336
      %v5403 = vadd.f32 %v5276, %v5338
      %v5404 = vadd.f32 %v5228, %v5340
      %v5421 = vrot.slane %v4911, 1
      %v5422 = vrot.slane %v4916, 1
      %v5423 = vsel %vm1120, %v5421, %v5422
      %v5424 = vrot.slane %v4921, 1
      %v5425 = vsel %vm1120, %v5422, %v5424
      %v5426 = vrot.slane %v4926, 1
      %v5427 = vrot.slane %v4931, 1
      %v5428 = vsel %vm1120, %v5426, %v5427
      %v5429 = vrot.slane %v4936, 1
      %v5430 = vsel %vm1120, %v5427, %v5429
      %v5431 = vrot.slane %v4941, 1
      %v5432 = vrot.slane %v4946, 1
      %v5433 = vsel %vm1120, %v5431, %v5432
      %v5434 = vrot.slane %v4951, 1
      %v5435 = vsel %vm1120, %v5432, %v5434
      %v5436 = vrot.slane %v4956, 1
      %v5437 = vrot.slane %v4961, 1
      %v5438 = vsel %vm1120, %v5436, %v5437
      %v5439 = vrot.slane %v4966, 1
      %v5440 = vsel %vm1120, %v5437, %v5439
      %v5441 = vrot.slane %v4971, 1
      %v5442 = vrot.slane %v4976, 1
      %v5443 = vsel %vm1120, %v5441, %v5442
      %v5444 = vrot.slane %v4981, 1
      %v5445 = vsel %vm1120, %v5442, %v5444
      %v5446 = vrot.slane %v4986, 1
      %v5447 = vrot.slane %v4991, 1
      %v5448 = vsel %vm1120, %v5446, %v5447
      %v5449 = vrot.slane %v4996, 1
      %v5450 = vsel %vm1120, %v5447, %v5449
      %v5451 = vrot.slane %v5001, 1
      %v5452 = vrot.slane %v5006, 1
      %v5453 = vsel %vm1120, %v5451, %v5452
      %v5454 = vrot.slane %v5011, 1
      %v5455 = vsel %vm1120, %v5452, %v5454
      %v5456 = vrot.slane %v5016, 1
      %v5457 = vrot.slane %v5021, 1
      %v5458 = vsel %vm1120, %v5456, %v5457
      %v5459 = vrot.slane %v5026, 1
      %v5460 = vsel %vm1120, %v5457, %v5459
      %v5461 = vrot.slane %v5031, 1
      %v5462 = vrot.slane %v5036, 1
      %v5463 = vsel %vm1120, %v5461, %v5462
      %v5464 = vrot.slane %v5041, 1
      %v5465 = vsel %vm1120, %v5462, %v5464
      %v5466 = vrot.slane %v5046, 1
      %v5467 = vrot.slane %v5051, 1
      %v5468 = vsel %vm1120, %v5466, %v5467
      %v5469 = vrot.slane %v5056, 1
      %v5470 = vsel %vm1120, %v5467, %v5469
      %v5471 = vrot.slane %v5061, 1
      %v5472 = vrot.slane %v5066, 1
      %v5473 = vsel %vm1120, %v5471, %v5472
      %v5474 = vrot.slane %v5071, 1
      %v5475 = vsel %vm1120, %v5472, %v5474
      %v5476 = vrot.slane %v5076, 1
      %v5477 = vrot.slane %v5081, 1
      %v5478 = vsel %vm1120, %v5476, %v5477
      %v5479 = vrot.slane %v5086, 1
      %v5480 = vsel %vm1120, %v5477, %v5479
      %v5481 = vrot.slane %v5091, 1
      %v5482 = vrot.slane %v5096, 1
      %v5483 = vsel %vm1120, %v5481, %v5482
      %v5484 = vrot.slane %v5101, 1
      %v5485 = vsel %vm1120, %v5482, %v5484
      %v5486 = vrot.slane %v5106, 1
      %v5487 = vrot.slane %v5111, 1
      %v5488 = vsel %vm1120, %v5486, %v5487
      %v5489 = vrot.slane %v5116, 1
      %v5490 = vsel %vm1120, %v5487, %v5489
      %v5491 = vrot.slane %v5121, 1
      %v5492 = vrot.slane %v5126, 1
      %v5493 = vsel %vm1120, %v5491, %v5492
      %v5494 = vrot.slane %v5131, 1
      %v5495 = vsel %vm1120, %v5492, %v5494
      %v5496 = vrot.slane %v5136, 1
      %v5497 = vrot.slane %v5141, 1
      %v5498 = vsel %vm1120, %v5496, %v5497
      %v5499 = vrot.slane %v5146, 1
      %v5500 = vsel %vm1120, %v5497, %v5499
      %5501 = vrot.lane.b32.xlu0 %v5423, 120
      %v5502 = vpop.permute.xlu0 %5501
      %5503 = vrot.lane.b32.xlu0 %v5425, 120
      %v5504 = vpop.permute.xlu0 %5503
      %5505 = vrot.lane.b32.xlu0 %v5428, 120
      %v5506 = vpop.permute.xlu0 %5505
      %5507 = vrot.lane.b32.xlu0 %v5430, 120
      %v5508 = vpop.permute.xlu0 %5507
      %5509 = vrot.lane.b32.xlu0 %v5433, 120
      %v5510 = vpop.permute.xlu0 %5509
      %5511 = vrot.lane.b32.xlu0 %v5435, 120
      %v5512 = vpop.permute.xlu0 %5511
      %5513 = vrot.lane.b32.xlu0 %v5438, 120
      %v5514 = vpop.permute.xlu0 %5513
      %5515 = vrot.lane.b32.xlu0 %v5440, 120
      %v5516 = vpop.permute.xlu0 %5515
      %5517 = vrot.lane.b32.xlu0 %v5443, 120
      %v5518 = vpop.permute.xlu0 %5517
      %5519 = vrot.lane.b32.xlu0 %v5445, 120
      %v5520 = vpop.permute.xlu0 %5519
      %5521 = vrot.lane.b32.xlu0 %v5448, 120
      %v5522 = vpop.permute.xlu0 %5521
      %5523 = vrot.lane.b32.xlu0 %v5450, 120
      %v5524 = vpop.permute.xlu0 %5523
      %5525 = vrot.lane.b32.xlu0 %v5453, 120
      %v5526 = vpop.permute.xlu0 %5525
      %5527 = vrot.lane.b32.xlu0 %v5455, 120
      %v5528 = vpop.permute.xlu0 %5527
      %5529 = vrot.lane.b32.xlu0 %v5458, 120
      %v5530 = vpop.permute.xlu0 %5529
      %5531 = vrot.lane.b32.xlu0 %v5460, 120
      %v5532 = vpop.permute.xlu0 %5531
      %5533 = vrot.lane.b32.xlu0 %v5463, 120
      %v5534 = vpop.permute.xlu0 %5533
      %5535 = vrot.lane.b32.xlu0 %v5465, 120
      %v5536 = vpop.permute.xlu0 %5535
      %5537 = vrot.lane.b32.xlu0 %v5468, 120
      %v5538 = vpop.permute.xlu0 %5537
      %5539 = vrot.lane.b32.xlu0 %v5470, 120
      %v5540 = vpop.permute.xlu0 %5539
      %5541 = vrot.lane.b32.xlu0 %v5473, 120
      %v5542 = vpop.permute.xlu0 %5541
      %5543 = vrot.lane.b32.xlu0 %v5475, 120
      %v5544 = vpop.permute.xlu0 %5543
      %5545 = vrot.lane.b32.xlu0 %v5478, 120
      %v5546 = vpop.permute.xlu0 %5545
      %5547 = vrot.lane.b32.xlu0 %v5480, 120
      %v5548 = vpop.permute.xlu0 %5547
      %5549 = vrot.lane.b32.xlu0 %v5483, 120
      %v5550 = vpop.permute.xlu0 %5549
      %5551 = vrot.lane.b32.xlu0 %v5485, 120
      %v5552 = vpop.permute.xlu0 %5551
      %5553 = vrot.lane.b32.xlu0 %v5488, 120
      %v5554 = vpop.permute.xlu0 %5553
      %5555 = vrot.lane.b32.xlu0 %v5490, 120
      %v5556 = vpop.permute.xlu0 %5555
      %5557 = vrot.lane.b32.xlu0 %v5493, 120
      %v5558 = vpop.permute.xlu0 %5557
      %5559 = vrot.lane.b32.xlu0 %v5495, 120
      %v5560 = vpop.permute.xlu0 %5559
      %5561 = vrot.lane.b32.xlu0 %v5498, 120
      %v5562 = vpop.permute.xlu0 %5561
      %5563 = vrot.lane.b32.xlu0 %v5500, 120
      %v5564 = vpop.permute.xlu0 %5563
      %v5597 = vadd.f32 %v5373, %v5502
      %v5598 = vadd.f32 %v5374, %v5504
      %v5599 = vadd.f32 %v5375, %v5506
      %v5600 = vadd.f32 %v5376, %v5508
      %v5601 = vadd.f32 %v5377, %v5510
      %v5602 = vadd.f32 %v5378, %v5512
      %v5603 = vadd.f32 %v5379, %v5514
      %v5604 = vadd.f32 %v5380, %v5516
      %v5605 = vadd.f32 %v5381, %v5518
      %v5606 = vadd.f32 %v5382, %v5520
      %v5607 = vadd.f32 %v5383, %v5522
      %v5608 = vadd.f32 %v5384, %v5524
      %v5609 = vadd.f32 %v5385, %v5526
      %v5610 = vadd.f32 %v5386, %v5528
      %v5611 = vadd.f32 %v5387, %v5530
      %v5612 = vadd.f32 %v5388, %v5532
      %v5613 = vadd.f32 %v5389, %v5534
      %v5614 = vadd.f32 %v5390, %v5536
      %v5615 = vadd.f32 %v5391, %v5538
      %v5616 = vadd.f32 %v5392, %v5540
      %v5617 = vadd.f32 %v5393, %v5542
      %v5618 = vadd.f32 %v5394, %v5544
      %v5619 = vadd.f32 %v5395, %v5546
      %v5620 = vadd.f32 %v5396, %v5548
      %v5621 = vadd.f32 %v5397, %v5550
      %v5622 = vadd.f32 %v5398, %v5552
      %v5623 = vadd.f32 %v5399, %v5554
      %v5624 = vadd.f32 %v5400, %v5556
      %v5625 = vadd.f32 %v5401, %v5558
      %v5626 = vadd.f32 %v5402, %v5560
      %v5627 = vadd.f32 %v5403, %v5562
      %v5628 = vadd.f32 %v5404, %v5564
      %v5629 = vadd.f32 %v4615, %v5597
      %v5630 = vadd.f32 %v4616, %v5598
      %v5631 = vadd.f32 %v4617, %v5599
      %v5632 = vadd.f32 %v4618, %v5600
      %v5633 = vadd.f32 %v4619, %v5601
      %v5634 = vadd.f32 %v4620, %v5602
      %v5635 = vadd.f32 %v4621, %v5603
      %v5636 = vadd.f32 %v4622, %v5604
      %v5637 = vadd.f32 %v4623, %v5605
      %v5638 = vadd.f32 %v4624, %v5606
      %v5639 = vadd.f32 %v4625, %v5607
      %v5640 = vadd.f32 %v4626, %v5608
      %v5641 = vadd.f32 %v4627, %v5609
      %v5642 = vadd.f32 %v4628, %v5610
      %v5643 = vadd.f32 %v4629, %v5611
      %v5644 = vadd.f32 %v4630, %v5612
      %v5645 = vadd.f32 %v4631, %v5613
      %v5646 = vadd.f32 %v4632, %v5614
      %v5647 = vadd.f32 %v4633, %v5615
      %v5648 = vadd.f32 %v4634, %v5616
      %v5649 = vadd.f32 %v4635, %v5617
      %v5650 = vadd.f32 %v4636, %v5618
      %v5651 = vadd.f32 %v4637, %v5619
      %v5652 = vadd.f32 %v4638, %v5620
      %v5653 = vadd.f32 %v4639, %v5621
      %v5654 = vadd.f32 %v4640, %v5622
      %v5655 = vadd.f32 %v4641, %v5623
      %v5656 = vadd.f32 %v4642, %v5624
      %v5657 = vadd.f32 %v4643, %v5625
      %v5658 = vadd.f32 %v4644, %v5626
      %v5659 = vadd.f32 %v4645, %v5627
      %v5660 = vadd.f32 %v4646, %v5628
      %s5661 = scalar_lea.vmem %s2, %s2346
      %v5662 = vld [vmem:[%s5661] sm:$0xf]
      %v5663 = vld [vmem:[%s2349] sm:$0xff]
      %v5664 = vld [vmem:[%s2349 + $0x8] sm:$0xff]
      %v5665 = vld [vmem:[%s2349 + $0x10] sm:$0xff]
      %v5666 = vld [vmem:[%s2349 + $0x18] sm:$0xff]
      %v5667 = vld [vmem:[%s2349 + $0x20] sm:$0xff]
      %v5668 = vld [vmem:[%s2349 + $0x28] sm:$0xff]
      %v5669 = vld [vmem:[%s2349 + $0x30] sm:$0xff]
      %v5670 = vld [vmem:[%s2349 + $0x38] sm:$0xff]
      %v5671 = vld [vmem:[%s2349 + $0x40] sm:$0xff]
      %v5672 = vld [vmem:[%s2349 + $0x48] sm:$0xff]
      %v5673 = vld [vmem:[%s2349 + $0x50] sm:$0xff]
      %v5674 = vld [vmem:[%s2349 + $0x58] sm:$0xff]
      %v5675 = vld [vmem:[%s2349 + $0x60] sm:$0xff]
      %v5676 = vld [vmem:[%s2349 + $0x68] sm:$0xff]
      %v5677 = vld [vmem:[%s2349 + $0x70] sm:$0xff]
      %v5678 = vld [vmem:[%s2349 + $0x78] sm:$0xff]
      %v5679 = vld [vmem:[%s2349 + $0x80] sm:$0xff]
      %v5680 = vld [vmem:[%s2349 + $0x88] sm:$0xff]
      %v5681 = vld [vmem:[%s2349 + $0x90] sm:$0xff]
      %v5682 = vld [vmem:[%s2349 + $0x98] sm:$0xff]
      %v5683 = vld [vmem:[%s2349 + $0xa0] sm:$0xff]
      %v5684 = vld [vmem:[%s2349 + $0xa8] sm:$0xff]
      %v5685 = vld [vmem:[%s2349 + $0xb0] sm:$0xff]
      %v5686 = vld [vmem:[%s2349 + $0xb8] sm:$0xff]
      %v5687 = vld [vmem:[%s2349 + $0xc0] sm:$0xff]
      %v5688 = vld [vmem:[%s2349 + $0xc8] sm:$0xff]
      %v5689 = vld [vmem:[%s2349 + $0xd0] sm:$0xff]
      %v5690 = vld [vmem:[%s2349 + $0xd8] sm:$0xff]
      %v5691 = vld [vmem:[%s2349 + $0xe0] sm:$0xff]
      %v5692 = vld [vmem:[%s2349 + $0xe8] sm:$0xff]
      %v5693 = vld [vmem:[%s2349 + $0xf0] sm:$0xff]
      %v5694 = vld [vmem:[%s2349 + $0xf8] sm:$0xff]
      %v5695 = vld [vmem:[%s2349 + $0x100] sm:$0xff]
      %v5696 = vld [vmem:[%s2349 + $0x108] sm:$0xff]
      %v5697 = vld [vmem:[%s2349 + $0x110] sm:$0xff]
      %v5698 = vld [vmem:[%s2349 + $0x118] sm:$0xff]
      %v5699 = vld [vmem:[%s2349 + $0x120] sm:$0xff]
      %v5700 = vld [vmem:[%s2349 + $0x128] sm:$0xff]
      %v5701 = vld [vmem:[%s2349 + $0x130] sm:$0xff]
      %v5702 = vld [vmem:[%s2349 + $0x138] sm:$0xff]
      %v5703 = vld [vmem:[%s2349 + $0x140] sm:$0xff]
      %v5704 = vld [vmem:[%s2349 + $0x148] sm:$0xff]
      %v5705 = vld [vmem:[%s2349 + $0x150] sm:$0xff]
      %v5706 = vld [vmem:[%s2349 + $0x158] sm:$0xff]
      %v5707 = vld [vmem:[%s2349 + $0x160] sm:$0xff]
      %v5708 = vld [vmem:[%s2349 + $0x168] sm:$0xff]
      %v5709 = vld [vmem:[%s2349 + $0x170] sm:$0xff]
      %v5710 = vld [vmem:[%s2349 + $0x178] sm:$0xff]
      %v5712 = vsel %vm309, %v5663, 0
      %v5715 = vsel %vm309, %v5664, 0
      %v5718 = vsel %vm309, %v5665, 0
      %v5721 = vsel %vm309, %v5666, 0
      %v5724 = vsel %vm309, %v5667, 0
      %v5727 = vsel %vm309, %v5668, 0
      %v5730 = vsel %vm309, %v5669, 0
      %v5733 = vsel %vm309, %v5670, 0
      %v5736 = vsel %vm309, %v5671, 0
      %v5739 = vsel %vm309, %v5672, 0
      %v5742 = vsel %vm309, %v5673, 0
      %v5745 = vsel %vm309, %v5674, 0
      %v5748 = vsel %vm309, %v5675, 0
      %v5751 = vsel %vm309, %v5676, 0
      %v5754 = vsel %vm309, %v5677, 0
      %v5757 = vsel %vm309, %v5678, 0
      %v5760 = vsel %vm309, %v5679, 0
      %v5763 = vsel %vm309, %v5680, 0
      %v5766 = vsel %vm309, %v5681, 0
      %v5769 = vsel %vm309, %v5682, 0
      %v5772 = vsel %vm309, %v5683, 0
      %v5775 = vsel %vm309, %v5684, 0
      %v5778 = vsel %vm309, %v5685, 0
      %v5781 = vsel %vm309, %v5686, 0
      %v5784 = vsel %vm309, %v5687, 0
      %v5787 = vsel %vm309, %v5688, 0
      %v5790 = vsel %vm309, %v5689, 0
      %v5793 = vsel %vm309, %v5690, 0
      %v5796 = vsel %vm309, %v5691, 0
      %v5799 = vsel %vm309, %v5692, 0
      %v5802 = vsel %vm309, %v5693, 0
      %v5805 = vsel %vm309, %v5694, 0
      %v5808 = vsel %vm309, %v5695, 0
      %v5811 = vsel %vm309, %v5696, 0
      %v5814 = vsel %vm309, %v5697, 0
      %v5817 = vsel %vm309, %v5698, 0
      %v5820 = vsel %vm309, %v5699, 0
      %v5823 = vsel %vm309, %v5700, 0
      %v5826 = vsel %vm309, %v5701, 0
      %v5829 = vsel %vm309, %v5702, 0
      %v5832 = vsel %vm309, %v5703, 0
      %v5835 = vsel %vm309, %v5704, 0
      %v5838 = vsel %vm309, %v5705, 0
      %v5841 = vsel %vm309, %v5706, 0
      %v5844 = vsel %vm309, %v5707, 0
      %v5847 = vsel %vm309, %v5708, 0
      %v5850 = vsel %vm309, %v5709, 0
      %v5853 = vsel %vm309, %v5710, 0
      %v5856 = vsel %vm538, %v5662, 0
      %5858 = vmatprep.subr.mxu0 0.0
      %5859 = vmatpush1.msra.mxu0 %v5856
      %5860 = vmatprep.subr.mxu0 0.0
      %5861 = vmatpush1.msra.mxu0 0.0
      %5862 = vmatprep.subr.mxu0 0.0
      %5863 = vmatpush1.msra.mxu0 0.0
      %5864 = vmatprep.subr.mxu0 0.0
      %5865 = vmatpush1.msra.mxu0 0.0
      %5866 = vmatprep.subr.mxu0 0.0
      %5867 = vmatpush1.msra.mxu0 0.0
      %5868 = vmatprep.subr.mxu0 0.0
      %5869 = vmatpush1.msra.mxu0 0.0
      %5870 = vmatprep.subr.mxu0 0.0
      %5871 = vmatpush1.msra.mxu0 0.0
      %5872 = vmatprep.subr.mxu0 0.0
      %5873 = vmatpush1.msra.mxu0 0.0
      %5874 = vmatprep.subr.mxu0 0.0
      %5875 = vmatpush1.msra.mxu0 0.0
      %5876 = vmatprep.subr.mxu0 0.0
      %5877 = vmatpush1.msra.mxu0 0.0
      %5878 = vmatprep.subr.mxu0 0.0
      %5879 = vmatpush1.msra.mxu0 0.0
      %5880 = vmatprep.subr.mxu0 0.0
      %5881 = vmatpush1.msra.mxu0 0.0
      %5882 = vmatprep.subr.mxu0 0.0
      %5883 = vmatpush1.msra.mxu0 0.0
      %5884 = vmatprep.subr.mxu0 0.0
      %5885 = vmatpush1.msra.mxu0 0.0
      %5886 = vmatprep.subr.mxu0 0.0
      %5887 = vmatpush1.msra.mxu0 0.0
      %5888 = vmatprep.subr.mxu0 0.0
      %5889 = vmatpush1.msra.mxu0 0.0
      %5890 = vmatprep.subr.mxu0 0.0
      %5891 = vmatpush1.msra.mxu0 0.0
      %5892 = vmatprep.subr.mxu0 0.0
      %5893 = vmatpush1.msra.mxu0 0.0
      %5894 = vmatprep.subr.mxu0 0.0
      %5895 = vmatpush1.msra.mxu0 0.0
      %5896 = vmatprep.subr.mxu0 0.0
      %5897 = vmatpush1.msra.mxu0 0.0
      %5898 = vmatprep.subr.mxu0 0.0
      %5899 = vmatpush1.msra.mxu0 0.0
      %5900 = vmatprep.subr.mxu0 0.0
      %5901 = vmatpush1.msra.mxu0 0.0
      %5902 = vmatprep.subr.mxu0 0.0
      %5903 = vmatpush1.msra.mxu0 0.0
      %5904 = vmatprep.subr.mxu0 0.0
      %5905 = vmatpush1.msra.mxu0 0.0
      %5906 = vmatprep.subr.mxu0 0.0
      %5907 = vmatpush1.msra.mxu0 0.0
      %5908 = vmatprep.subr.mxu0 0.0
      %5909 = vmatpush1.msra.mxu0 0.0
      %5910 = vmatprep.subr.mxu0 0.0
      %5911 = vmatpush1.msra.mxu0 0.0
      %5912 = vmatprep.subr.mxu0 0.0
      %5913 = vmatpush1.msra.mxu0 0.0
      %5914 = vmatprep.subr.mxu0 0.0
      %5915 = vmatpush1.msra.mxu0 0.0
      %5916 = vmatprep.subr.mxu0 0.0
      %5917 = vmatpush1.msra.mxu0 0.0
      %5918 = vmatprep.subr.mxu0 0.0
      %5919 = vmatpush1.msra.mxu0 0.0
      %5920 = vmatprep.subr.mxu0 0.0
      %5921 = vmatpush1.msra.mxu0 0.0
      %5922 = vmatprep.mubr.f32.mxu0 0.0
      %5923 = vmatmul.mubr.f32.gmra.mrb[0].mxu0 %v5712
      %v5924 = vpop.f32.mrb[0].mxu0
      %v5925 = vadd.f32 0.0, %v5924
      %v5926 = vpop.f32.mrb[0].mxu0
      %5927 = vmatprep.mubr.f32.mxu0 0.0
      %5928 = vmatmul.mubr.f32.gmra.mrb[0].mxu0 %v5715
      %v5929 = vpop.f32.mrb[0].mxu0
      %v5930 = vadd.f32 0.0, %v5929
      %v5931 = vpop.f32.mrb[0].mxu0
      %5932 = vmatprep.mubr.f32.mxu0 0.0
      %5933 = vmatmul.mubr.f32.gmra.mrb[0].mxu0 %v5718
      %v5934 = vpop.f32.mrb[0].mxu0
      %v5935 = vadd.f32 0.0, %v5934
      %v5936 = vpop.f32.mrb[0].mxu0
      %5937 = vmatprep.mubr.f32.mxu0 0.0
      %5938 = vmatmul.mubr.f32.gmra.mrb[0].mxu0 %v5721
      %v5939 = vpop.f32.mrb[0].mxu0
      %v5940 = vadd.f32 0.0, %v5939
      %v5941 = vpop.f32.mrb[0].mxu0
      %5942 = vmatprep.mubr.f32.mxu0 0.0
      %5943 = vmatmul.mubr.f32.gmra.mrb[0].mxu0 %v5724
      %v5944 = vpop.f32.mrb[0].mxu0
      %v5945 = vadd.f32 0.0, %v5944
      %v5946 = vpop.f32.mrb[0].mxu0
      %5947 = vmatprep.mubr.f32.mxu0 0.0
      %5948 = vmatmul.mubr.f32.gmra.mrb[0].mxu0 %v5727
      %v5949 = vpop.f32.mrb[0].mxu0
      %v5950 = vadd.f32 0.0, %v5949
      %v5951 = vpop.f32.mrb[0].mxu0
      %5952 = vmatprep.mubr.f32.mxu0 0.0
      %5953 = vmatmul.mubr.f32.gmra.mrb[0].mxu0 %v5730
      %v5954 = vpop.f32.mrb[0].mxu0
      %v5955 = vadd.f32 0.0, %v5954
      %v5956 = vpop.f32.mrb[0].mxu0
      %5957 = vmatprep.mubr.f32.mxu0 0.0
      %5958 = vmatmul.mubr.f32.gmra.mrb[0].mxu0 %v5733
      %v5959 = vpop.f32.mrb[0].mxu0
      %v5960 = vadd.f32 0.0, %v5959
      %v5961 = vpop.f32.mrb[0].mxu0
      %5962 = vmatprep.mubr.f32.mxu0 0.0
      %5963 = vmatmul.mubr.f32.gmra.mrb[0].mxu0 %v5736
      %v5964 = vpop.f32.mrb[0].mxu0
      %v5965 = vadd.f32 0.0, %v5964
      %v5966 = vpop.f32.mrb[0].mxu0
      %5967 = vmatprep.mubr.f32.mxu0 0.0
      %5968 = vmatmul.mubr.f32.gmra.mrb[0].mxu0 %v5739
      %v5969 = vpop.f32.mrb[0].mxu0
      %v5970 = vadd.f32 0.0, %v5969
      %v5971 = vpop.f32.mrb[0].mxu0
      %5972 = vmatprep.mubr.f32.mxu0 0.0
      %5973 = vmatmul.mubr.f32.gmra.mrb[0].mxu0 %v5742
      %v5974 = vpop.f32.mrb[0].mxu0
      %v5975 = vadd.f32 0.0, %v5974
      %v5976 = vpop.f32.mrb[0].mxu0
      %5977 = vmatprep.mubr.f32.mxu0 0.0
      %5978 = vmatmul.mubr.f32.gmra.mrb[0].mxu0 %v5745
      %v5979 = vpop.f32.mrb[0].mxu0
      %v5980 = vadd.f32 0.0, %v5979
      %v5981 = vpop.f32.mrb[0].mxu0
      %5982 = vmatprep.mubr.f32.mxu0 0.0
      %5983 = vmatmul.mubr.f32.gmra.mrb[0].mxu0 %v5748
      %v5984 = vpop.f32.mrb[0].mxu0
      %v5985 = vadd.f32 0.0, %v5984
      %v5986 = vpop.f32.mrb[0].mxu0
      %5987 = vmatprep.mubr.f32.mxu0 0.0
      %5988 = vmatmul.mubr.f32.gmra.mrb[0].mxu0 %v5751
      %v5989 = vpop.f32.mrb[0].mxu0
      %v5990 = vadd.f32 0.0, %v5989
      %v5991 = vpop.f32.mrb[0].mxu0
      %5992 = vmatprep.mubr.f32.mxu0 0.0
      %5993 = vmatmul.mubr.f32.gmra.mrb[0].mxu0 %v5754
      %v5994 = vpop.f32.mrb[0].mxu0
      %v5995 = vadd.f32 0.0, %v5994
      %v5996 = vpop.f32.mrb[0].mxu0
      %5997 = vmatprep.mubr.f32.mxu0 0.0
      %5998 = vmatmul.mubr.f32.gmra.mrb[0].mxu0 %v5757
      %v5999 = vpop.f32.mrb[0].mxu0
      %v6000 = vadd.f32 0.0, %v5999
      %v6001 = vpop.f32.mrb[0].mxu0
      %6002 = vmatprep.mubr.f32.mxu0 0.0
      %6003 = vmatmul.mubr.f32.gmra.mrb[0].mxu0 %v5760
      %v6004 = vpop.f32.mrb[0].mxu0
      %v6005 = vadd.f32 0.0, %v6004
      %v6006 = vpop.f32.mrb[0].mxu0
      %6007 = vmatprep.mubr.f32.mxu0 0.0
      %6008 = vmatmul.mubr.f32.gmra.mrb[0].mxu0 %v5763
      %v6009 = vpop.f32.mrb[0].mxu0
      %v6010 = vadd.f32 0.0, %v6009
      %v6011 = vpop.f32.mrb[0].mxu0
      %6012 = vmatprep.mubr.f32.mxu0 0.0
      %6013 = vmatmul.mubr.f32.gmra.mrb[0].mxu0 %v5766
      %v6014 = vpop.f32.mrb[0].mxu0
      %v6015 = vadd.f32 0.0, %v6014
      %v6016 = vpop.f32.mrb[0].mxu0
      %6017 = vmatprep.mubr.f32.mxu0 0.0
      %6018 = vmatmul.mubr.f32.gmra.mrb[0].mxu0 %v5769
      %v6019 = vpop.f32.mrb[0].mxu0
      %v6020 = vadd.f32 0.0, %v6019
      %v6021 = vpop.f32.mrb[0].mxu0
      %6022 = vmatprep.mubr.f32.mxu0 0.0
      %6023 = vmatmul.mubr.f32.gmra.mrb[0].mxu0 %v5772
      %v6024 = vpop.f32.mrb[0].mxu0
      %v6025 = vadd.f32 0.0, %v6024
      %v6026 = vpop.f32.mrb[0].mxu0
      %6027 = vmatprep.mubr.f32.mxu0 0.0
      %6028 = vmatmul.mubr.f32.gmra.mrb[0].mxu0 %v5775
      %v6029 = vpop.f32.mrb[0].mxu0
      %v6030 = vadd.f32 0.0, %v6029
      %v6031 = vpop.f32.mrb[0].mxu0
      %6032 = vmatprep.mubr.f32.mxu0 0.0
      %6033 = vmatmul.mubr.f32.gmra.mrb[0].mxu0 %v5778
      %v6034 = vpop.f32.mrb[0].mxu0
      %v6035 = vadd.f32 0.0, %v6034
      %v6036 = vpop.f32.mrb[0].mxu0
      %6037 = vmatprep.mubr.f32.mxu0 0.0
      %6038 = vmatmul.mubr.f32.gmra.mrb[0].mxu0 %v5781
      %v6039 = vpop.f32.mrb[0].mxu0
      %v6040 = vadd.f32 0.0, %v6039
      %v6041 = vpop.f32.mrb[0].mxu0
      %6042 = vmatprep.mubr.f32.mxu0 0.0
      %6043 = vmatmul.mubr.f32.gmra.mrb[0].mxu0 %v5784
      %v6044 = vpop.f32.mrb[0].mxu0
      %v6045 = vadd.f32 0.0, %v6044
      %v6046 = vpop.f32.mrb[0].mxu0
      %6047 = vmatprep.mubr.f32.mxu0 0.0
      %6048 = vmatmul.mubr.f32.gmra.mrb[0].mxu0 %v5787
      %v6049 = vpop.f32.mrb[0].mxu0
      %v6050 = vadd.f32 0.0, %v6049
      %v6051 = vpop.f32.mrb[0].mxu0
      %6052 = vmatprep.mubr.f32.mxu0 0.0
      %6053 = vmatmul.mubr.f32.gmra.mrb[0].mxu0 %v5790
      %v6054 = vpop.f32.mrb[0].mxu0
      %v6055 = vadd.f32 0.0, %v6054
      %v6056 = vpop.f32.mrb[0].mxu0
      %6057 = vmatprep.mubr.f32.mxu0 0.0
      %6058 = vmatmul.mubr.f32.gmra.mrb[0].mxu0 %v5793
      %v6059 = vpop.f32.mrb[0].mxu0
      %v6060 = vadd.f32 0.0, %v6059
      %v6061 = vpop.f32.mrb[0].mxu0
      %6062 = vmatprep.mubr.f32.mxu0 0.0
      %6063 = vmatmul.mubr.f32.gmra.mrb[0].mxu0 %v5796
      %v6064 = vpop.f32.mrb[0].mxu0
      %v6065 = vadd.f32 0.0, %v6064
      %v6066 = vpop.f32.mrb[0].mxu0
      %6067 = vmatprep.mubr.f32.mxu0 0.0
      %6068 = vmatmul.mubr.f32.gmra.mrb[0].mxu0 %v5799
      %v6069 = vpop.f32.mrb[0].mxu0
      %v6070 = vadd.f32 0.0, %v6069
      %v6071 = vpop.f32.mrb[0].mxu0
      %6072 = vmatprep.mubr.f32.mxu0 0.0
      %6073 = vmatmul.mubr.f32.gmra.mrb[0].mxu0 %v5802
      %v6074 = vpop.f32.mrb[0].mxu0
      %v6075 = vadd.f32 0.0, %v6074
      %v6076 = vpop.f32.mrb[0].mxu0
      %6077 = vmatprep.mubr.f32.mxu0 0.0
      %6078 = vmatmul.mubr.f32.gmra.mrb[0].mxu0 %v5805
      %v6079 = vpop.f32.mrb[0].mxu0
      %v6080 = vadd.f32 0.0, %v6079
      %v6081 = vpop.f32.mrb[0].mxu0
      %6082 = vmatprep.mubr.f32.mxu0 0.0
      %6083 = vmatmul.mubr.f32.gmra.mrb[0].mxu0 %v5808
      %v6084 = vpop.f32.mrb[0].mxu0
      %v6085 = vadd.f32 0.0, %v6084
      %v6086 = vpop.f32.mrb[0].mxu0
      %6087 = vmatprep.mubr.f32.mxu0 0.0
      %6088 = vmatmul.mubr.f32.gmra.mrb[0].mxu0 %v5811
      %v6089 = vpop.f32.mrb[0].mxu0
      %v6090 = vadd.f32 0.0, %v6089
      %v6091 = vpop.f32.mrb[0].mxu0
      %6092 = vmatprep.mubr.f32.mxu0 0.0
      %6093 = vmatmul.mubr.f32.gmra.mrb[0].mxu0 %v5814
      %v6094 = vpop.f32.mrb[0].mxu0
      %v6095 = vadd.f32 0.0, %v6094
      %v6096 = vpop.f32.mrb[0].mxu0
      %6097 = vmatprep.mubr.f32.mxu0 0.0
      %6098 = vmatmul.mubr.f32.gmra.mrb[0].mxu0 %v5817
      %v6099 = vpop.f32.mrb[0].mxu0
      %v6100 = vadd.f32 0.0, %v6099
      %v6101 = vpop.f32.mrb[0].mxu0
      %6102 = vmatprep.mubr.f32.mxu0 0.0
      %6103 = vmatmul.mubr.f32.gmra.mrb[0].mxu0 %v5820
      %v6104 = vpop.f32.mrb[0].mxu0
      %v6105 = vadd.f32 0.0, %v6104
      %v6106 = vpop.f32.mrb[0].mxu0
      %6107 = vmatprep.mubr.f32.mxu0 0.0
      %6108 = vmatmul.mubr.f32.gmra.mrb[0].mxu0 %v5823
      %v6109 = vpop.f32.mrb[0].mxu0
      %v6110 = vadd.f32 0.0, %v6109
      %v6111 = vpop.f32.mrb[0].mxu0
      %6112 = vmatprep.mubr.f32.mxu0 0.0
      %6113 = vmatmul.mubr.f32.gmra.mrb[0].mxu0 %v5826
      %v6114 = vpop.f32.mrb[0].mxu0
      %v6115 = vadd.f32 0.0, %v6114
      %v6116 = vpop.f32.mrb[0].mxu0
      %6117 = vmatprep.mubr.f32.mxu0 0.0
      %6118 = vmatmul.mubr.f32.gmra.mrb[0].mxu0 %v5829
      %v6119 = vpop.f32.mrb[0].mxu0
      %v6120 = vadd.f32 0.0, %v6119
      %v6121 = vpop.f32.mrb[0].mxu0
      %6122 = vmatprep.mubr.f32.mxu0 0.0
      %6123 = vmatmul.mubr.f32.gmra.mrb[0].mxu0 %v5832
      %v6124 = vpop.f32.mrb[0].mxu0
      %v6125 = vadd.f32 0.0, %v6124
      %v6126 = vpop.f32.mrb[0].mxu0
      %6127 = vmatprep.mubr.f32.mxu0 0.0
      %6128 = vmatmul.mubr.f32.gmra.mrb[0].mxu0 %v5835
      %v6129 = vpop.f32.mrb[0].mxu0
      %v6130 = vadd.f32 0.0, %v6129
      %v6131 = vpop.f32.mrb[0].mxu0
      %6132 = vmatprep.mubr.f32.mxu0 0.0
      %6133 = vmatmul.mubr.f32.gmra.mrb[0].mxu0 %v5838
      %v6134 = vpop.f32.mrb[0].mxu0
      %v6135 = vadd.f32 0.0, %v6134
      %v6136 = vpop.f32.mrb[0].mxu0
      %6137 = vmatprep.mubr.f32.mxu0 0.0
      %6138 = vmatmul.mubr.f32.gmra.mrb[0].mxu0 %v5841
      %v6139 = vpop.f32.mrb[0].mxu0
      %v6140 = vadd.f32 0.0, %v6139
      %v6141 = vpop.f32.mrb[0].mxu0
      %6142 = vmatprep.mubr.f32.mxu0 0.0
      %6143 = vmatmul.mubr.f32.gmra.mrb[0].mxu0 %v5844
      %v6144 = vpop.f32.mrb[0].mxu0
      %v6145 = vadd.f32 0.0, %v6144
      %v6146 = vpop.f32.mrb[0].mxu0
      %6147 = vmatprep.mubr.f32.mxu0 0.0
      %6148 = vmatmul.mubr.f32.gmra.mrb[0].mxu0 %v5847
      %v6149 = vpop.f32.mrb[0].mxu0
      %v6150 = vadd.f32 0.0, %v6149
      %v6151 = vpop.f32.mrb[0].mxu0
      %6152 = vmatprep.mubr.f32.mxu0 0.0
      %6153 = vmatmul.mubr.f32.gmra.mrb[0].mxu0 %v5850
      %v6154 = vpop.f32.mrb[0].mxu0
      %v6155 = vadd.f32 0.0, %v6154
      %v6156 = vpop.f32.mrb[0].mxu0
      %6157 = vmatprep.mubr.f32.mxu0 0.0
      %6158 = vmatmul.mubr.f32.gmra.mrb[0].mxu0 %v5853
      %v6159 = vpop.f32.mrb[0].mxu0
      %v6160 = vadd.f32 0.0, %v6159
      %v6161 = vpop.f32.mrb[0].mxu0
      %6162 = vdwg.mxu0
      %v6195 = vrot.slane %v5925, 7
      %v6196 = vrot.slane %v5930, 7
      %v6197 = vsel %vm879, %v6195, %v6196
      %v6198 = vrot.slane %v5940, 7
      %v6199 = vrot.slane %v5945, 7
      %v6200 = vsel %vm879, %v6198, %v6199
      %v6201 = vrot.slane %v5955, 7
      %v6202 = vrot.slane %v5960, 7
      %v6203 = vsel %vm879, %v6201, %v6202
      %v6204 = vrot.slane %v5970, 7
      %v6205 = vrot.slane %v5975, 7
      %v6206 = vsel %vm879, %v6204, %v6205
      %v6207 = vrot.slane %v5985, 7
      %v6208 = vrot.slane %v5990, 7
      %v6209 = vsel %vm879, %v6207, %v6208
      %v6210 = vrot.slane %v6000, 7
      %v6211 = vrot.slane %v6005, 7
      %v6212 = vsel %vm879, %v6210, %v6211
      %v6213 = vrot.slane %v6015, 7
      %v6214 = vrot.slane %v6020, 7
      %v6215 = vsel %vm879, %v6213, %v6214
      %v6216 = vrot.slane %v6030, 7
      %v6217 = vrot.slane %v6035, 7
      %v6218 = vsel %vm879, %v6216, %v6217
      %v6219 = vrot.slane %v6045, 7
      %v6220 = vrot.slane %v6050, 7
      %v6221 = vsel %vm879, %v6219, %v6220
      %v6222 = vrot.slane %v6060, 7
      %v6223 = vrot.slane %v6065, 7
      %v6224 = vsel %vm879, %v6222, %v6223
      %v6225 = vrot.slane %v6075, 7
      %v6226 = vrot.slane %v6080, 7
      %v6227 = vsel %vm879, %v6225, %v6226
      %v6228 = vrot.slane %v6090, 7
      %v6229 = vrot.slane %v6095, 7
      %v6230 = vsel %vm879, %v6228, %v6229
      %v6231 = vrot.slane %v6105, 7
      %v6232 = vrot.slane %v6110, 7
      %v6233 = vsel %vm879, %v6231, %v6232
      %v6234 = vrot.slane %v6120, 7
      %v6235 = vrot.slane %v6125, 7
      %v6236 = vsel %vm879, %v6234, %v6235
      %v6237 = vrot.slane %v6135, 7
      %v6238 = vrot.slane %v6140, 7
      %v6239 = vsel %vm879, %v6237, %v6238
      %v6240 = vrot.slane %v6150, 7
      %v6241 = vrot.slane %v6155, 7
      %v6242 = vsel %vm879, %v6240, %v6241
      %v6275 = vsel %vm879, 0.0, %v6195
      %v6276 = vsel %vm879, 0.0, %v6198
      %v6277 = vsel %vm879, 0.0, %v6201
      %v6278 = vsel %vm879, 0.0, %v6204
      %v6279 = vsel %vm879, 0.0, %v6207
      %v6280 = vsel %vm879, 0.0, %v6210
      %v6281 = vsel %vm879, 0.0, %v6213
      %v6282 = vsel %vm879, 0.0, %v6216
      %v6283 = vsel %vm879, 0.0, %v6219
      %v6284 = vsel %vm879, 0.0, %v6222
      %v6285 = vsel %vm879, 0.0, %v6225
      %v6286 = vsel %vm879, 0.0, %v6228
      %v6287 = vsel %vm879, 0.0, %v6231
      %v6288 = vsel %vm879, 0.0, %v6234
      %v6289 = vsel %vm879, 0.0, %v6237
      %v6290 = vsel %vm879, 0.0, %v6240
      %6291 = vrot.lane.b32.xlu0 %v5925, 124
      %v6292 = vpop.permute.xlu0 %6291
      %6293 = vrot.lane.b32.xlu0 %v5930, 124
      %v6294 = vpop.permute.xlu0 %6293
      %6295 = vrot.lane.b32.xlu0 %v5940, 124
      %v6296 = vpop.permute.xlu0 %6295
      %6297 = vrot.lane.b32.xlu0 %v5945, 124
      %v6298 = vpop.permute.xlu0 %6297
      %6299 = vrot.lane.b32.xlu0 %v5955, 124
      %v6300 = vpop.permute.xlu0 %6299
      %6301 = vrot.lane.b32.xlu0 %v5960, 124
      %v6302 = vpop.permute.xlu0 %6301
      %6303 = vrot.lane.b32.xlu0 %v5970, 124
      %v6304 = vpop.permute.xlu0 %6303
      %6305 = vrot.lane.b32.xlu0 %v5975, 124
      %v6306 = vpop.permute.xlu0 %6305
      %6307 = vrot.lane.b32.xlu0 %v5985, 124
      %v6308 = vpop.permute.xlu0 %6307
      %6309 = vrot.lane.b32.xlu0 %v5990, 124
      %v6310 = vpop.permute.xlu0 %6309
      %6311 = vrot.lane.b32.xlu0 %v6000, 124
      %v6312 = vpop.permute.xlu0 %6311
      %6313 = vrot.lane.b32.xlu0 %v6005, 124
      %v6314 = vpop.permute.xlu0 %6313
      %6315 = vrot.lane.b32.xlu0 %v6015, 124
      %v6316 = vpop.permute.xlu0 %6315
      %6317 = vrot.lane.b32.xlu0 %v6020, 124
      %v6318 = vpop.permute.xlu0 %6317
      %6319 = vrot.lane.b32.xlu0 %v6030, 124
      %v6320 = vpop.permute.xlu0 %6319
      %6321 = vrot.lane.b32.xlu0 %v6035, 124
      %v6322 = vpop.permute.xlu0 %6321
      %6323 = vrot.lane.b32.xlu0 %v6045, 124
      %v6324 = vpop.permute.xlu0 %6323
      %6325 = vrot.lane.b32.xlu0 %v6050, 124
      %v6326 = vpop.permute.xlu0 %6325
      %6327 = vrot.lane.b32.xlu0 %v6060, 124
      %v6328 = vpop.permute.xlu0 %6327
      %6329 = vrot.lane.b32.xlu0 %v6065, 124
      %v6330 = vpop.permute.xlu0 %6329
      %6331 = vrot.lane.b32.xlu0 %v6075, 124
      %v6332 = vpop.permute.xlu0 %6331
      %6333 = vrot.lane.b32.xlu0 %v6080, 124
      %v6334 = vpop.permute.xlu0 %6333
      %6335 = vrot.lane.b32.xlu0 %v6090, 124
      %v6336 = vpop.permute.xlu0 %6335
      %6337 = vrot.lane.b32.xlu0 %v6095, 124
      %v6338 = vpop.permute.xlu0 %6337
      %6339 = vrot.lane.b32.xlu0 %v6105, 124
      %v6340 = vpop.permute.xlu0 %6339
      %6341 = vrot.lane.b32.xlu0 %v6110, 124
      %v6342 = vpop.permute.xlu0 %6341
      %6343 = vrot.lane.b32.xlu0 %v6120, 124
      %v6344 = vpop.permute.xlu0 %6343
      %6345 = vrot.lane.b32.xlu0 %v6125, 124
      %v6346 = vpop.permute.xlu0 %6345
      %6347 = vrot.lane.b32.xlu0 %v6135, 124
      %v6348 = vpop.permute.xlu0 %6347
      %6349 = vrot.lane.b32.xlu0 %v6140, 124
      %v6350 = vpop.permute.xlu0 %6349
      %6351 = vrot.lane.b32.xlu0 %v6150, 124
      %v6352 = vpop.permute.xlu0 %6351
      %6353 = vrot.lane.b32.xlu0 %v6155, 124
      %v6354 = vpop.permute.xlu0 %6353
      %v6387 = vadd.f32 %v6275, %v6292
      %v6388 = vadd.f32 %v6197, %v6294
      %v6389 = vadd.f32 %v6276, %v6296
      %v6390 = vadd.f32 %v6200, %v6298
      %v6391 = vadd.f32 %v6277, %v6300
      %v6392 = vadd.f32 %v6203, %v6302
      %v6393 = vadd.f32 %v6278, %v6304
      %v6394 = vadd.f32 %v6206, %v6306
      %v6395 = vadd.f32 %v6279, %v6308
      %v6396 = vadd.f32 %v6209, %v6310
      %v6397 = vadd.f32 %v6280, %v6312
      %v6398 = vadd.f32 %v6212, %v6314
      %v6399 = vadd.f32 %v6281, %v6316
      %v6400 = vadd.f32 %v6215, %v6318
      %v6401 = vadd.f32 %v6282, %v6320
      %v6402 = vadd.f32 %v6218, %v6322
      %v6403 = vadd.f32 %v6283, %v6324
      %v6404 = vadd.f32 %v6221, %v6326
      %v6405 = vadd.f32 %v6284, %v6328
      %v6406 = vadd.f32 %v6224, %v6330
      %v6407 = vadd.f32 %v6285, %v6332
      %v6408 = vadd.f32 %v6227, %v6334
      %v6409 = vadd.f32 %v6286, %v6336
      %v6410 = vadd.f32 %v6230, %v6338
      %v6411 = vadd.f32 %v6287, %v6340
      %v6412 = vadd.f32 %v6233, %v6342
      %v6413 = vadd.f32 %v6288, %v6344
      %v6414 = vadd.f32 %v6236, %v6346
      %v6415 = vadd.f32 %v6289, %v6348
      %v6416 = vadd.f32 %v6239, %v6350
      %v6417 = vadd.f32 %v6290, %v6352
      %v6418 = vadd.f32 %v6242, %v6354
      %v6435 = vrot.slane %v5925, 1
      %v6436 = vrot.slane %v5930, 1
      %v6437 = vsel %vm1120, %v6435, %v6436
      %v6438 = vrot.slane %v5935, 1
      %v6439 = vsel %vm1120, %v6436, %v6438
      %v6440 = vrot.slane %v5940, 1
      %v6441 = vrot.slane %v5945, 1
      %v6442 = vsel %vm1120, %v6440, %v6441
      %v6443 = vrot.slane %v5950, 1
      %v6444 = vsel %vm1120, %v6441, %v6443
      %v6445 = vrot.slane %v5955, 1
      %v6446 = vrot.slane %v5960, 1
      %v6447 = vsel %vm1120, %v6445, %v6446
      %v6448 = vrot.slane %v5965, 1
      %v6449 = vsel %vm1120, %v6446, %v6448
      %v6450 = vrot.slane %v5970, 1
      %v6451 = vrot.slane %v5975, 1
      %v6452 = vsel %vm1120, %v6450, %v6451
      %v6453 = vrot.slane %v5980, 1
      %v6454 = vsel %vm1120, %v6451, %v6453
      %v6455 = vrot.slane %v5985, 1
      %v6456 = vrot.slane %v5990, 1
      %v6457 = vsel %vm1120, %v6455, %v6456
      %v6458 = vrot.slane %v5995, 1
      %v6459 = vsel %vm1120, %v6456, %v6458
      %v6460 = vrot.slane %v6000, 1
      %v6461 = vrot.slane %v6005, 1
      %v6462 = vsel %vm1120, %v6460, %v6461
      %v6463 = vrot.slane %v6010, 1
      %v6464 = vsel %vm1120, %v6461, %v6463
      %v6465 = vrot.slane %v6015, 1
      %v6466 = vrot.slane %v6020, 1
      %v6467 = vsel %vm1120, %v6465, %v6466
      %v6468 = vrot.slane %v6025, 1
      %v6469 = vsel %vm1120, %v6466, %v6468
      %v6470 = vrot.slane %v6030, 1
      %v6471 = vrot.slane %v6035, 1
      %v6472 = vsel %vm1120, %v6470, %v6471
      %v6473 = vrot.slane %v6040, 1
      %v6474 = vsel %vm1120, %v6471, %v6473
      %v6475 = vrot.slane %v6045, 1
      %v6476 = vrot.slane %v6050, 1
      %v6477 = vsel %vm1120, %v6475, %v6476
      %v6478 = vrot.slane %v6055, 1
      %v6479 = vsel %vm1120, %v6476, %v6478
      %v6480 = vrot.slane %v6060, 1
      %v6481 = vrot.slane %v6065, 1
      %v6482 = vsel %vm1120, %v6480, %v6481
      %v6483 = vrot.slane %v6070, 1
      %v6484 = vsel %vm1120, %v6481, %v6483
      %v6485 = vrot.slane %v6075, 1
      %v6486 = vrot.slane %v6080, 1
      %v6487 = vsel %vm1120, %v6485, %v6486
      %v6488 = vrot.slane %v6085, 1
      %v6489 = vsel %vm1120, %v6486, %v6488
      %v6490 = vrot.slane %v6090, 1
      %v6491 = vrot.slane %v6095, 1
      %v6492 = vsel %vm1120, %v6490, %v6491
      %v6493 = vrot.slane %v6100, 1
      %v6494 = vsel %vm1120, %v6491, %v6493
      %v6495 = vrot.slane %v6105, 1
      %v6496 = vrot.slane %v6110, 1
      %v6497 = vsel %vm1120, %v6495, %v6496
      %v6498 = vrot.slane %v6115, 1
      %v6499 = vsel %vm1120, %v6496, %v6498
      %v6500 = vrot.slane %v6120, 1
      %v6501 = vrot.slane %v6125, 1
      %v6502 = vsel %vm1120, %v6500, %v6501
      %v6503 = vrot.slane %v6130, 1
      %v6504 = vsel %vm1120, %v6501, %v6503
      %v6505 = vrot.slane %v6135, 1
      %v6506 = vrot.slane %v6140, 1
      %v6507 = vsel %vm1120, %v6505, %v6506
      %v6508 = vrot.slane %v6145, 1
      %v6509 = vsel %vm1120, %v6506, %v6508
      %v6510 = vrot.slane %v6150, 1
      %v6511 = vrot.slane %v6155, 1
      %v6512 = vsel %vm1120, %v6510, %v6511
      %v6513 = vrot.slane %v6160, 1
      %v6514 = vsel %vm1120, %v6511, %v6513
      %6515 = vrot.lane.b32.xlu0 %v6437, 120
      %v6516 = vpop.permute.xlu0 %6515
      %6517 = vrot.lane.b32.xlu0 %v6439, 120
      %v6518 = vpop.permute.xlu0 %6517
      %6519 = vrot.lane.b32.xlu0 %v6442, 120
      %v6520 = vpop.permute.xlu0 %6519
      %6521 = vrot.lane.b32.xlu0 %v6444, 120
      %v6522 = vpop.permute.xlu0 %6521
      %6523 = vrot.lane.b32.xlu0 %v6447, 120
      %v6524 = vpop.permute.xlu0 %6523
      %6525 = vrot.lane.b32.xlu0 %v6449, 120
      %v6526 = vpop.permute.xlu0 %6525
      %6527 = vrot.lane.b32.xlu0 %v6452, 120
      %v6528 = vpop.permute.xlu0 %6527
      %6529 = vrot.lane.b32.xlu0 %v6454, 120
      %v6530 = vpop.permute.xlu0 %6529
      %6531 = vrot.lane.b32.xlu0 %v6457, 120
      %v6532 = vpop.permute.xlu0 %6531
      %6533 = vrot.lane.b32.xlu0 %v6459, 120
      %v6534 = vpop.permute.xlu0 %6533
      %6535 = vrot.lane.b32.xlu0 %v6462, 120
      %v6536 = vpop.permute.xlu0 %6535
      %6537 = vrot.lane.b32.xlu0 %v6464, 120
      %v6538 = vpop.permute.xlu0 %6537
      %6539 = vrot.lane.b32.xlu0 %v6467, 120
      %v6540 = vpop.permute.xlu0 %6539
      %6541 = vrot.lane.b32.xlu0 %v6469, 120
      %v6542 = vpop.permute.xlu0 %6541
      %6543 = vrot.lane.b32.xlu0 %v6472, 120
      %v6544 = vpop.permute.xlu0 %6543
      %6545 = vrot.lane.b32.xlu0 %v6474, 120
      %v6546 = vpop.permute.xlu0 %6545
      %6547 = vrot.lane.b32.xlu0 %v6477, 120
      %v6548 = vpop.permute.xlu0 %6547
      %6549 = vrot.lane.b32.xlu0 %v6479, 120
      %v6550 = vpop.permute.xlu0 %6549
      %6551 = vrot.lane.b32.xlu0 %v6482, 120
      %v6552 = vpop.permute.xlu0 %6551
      %6553 = vrot.lane.b32.xlu0 %v6484, 120
      %v6554 = vpop.permute.xlu0 %6553
      %6555 = vrot.lane.b32.xlu0 %v6487, 120
      %v6556 = vpop.permute.xlu0 %6555
      %6557 = vrot.lane.b32.xlu0 %v6489, 120
      %v6558 = vpop.permute.xlu0 %6557
      %6559 = vrot.lane.b32.xlu0 %v6492, 120
      %v6560 = vpop.permute.xlu0 %6559
      %6561 = vrot.lane.b32.xlu0 %v6494, 120
      %v6562 = vpop.permute.xlu0 %6561
      %6563 = vrot.lane.b32.xlu0 %v6497, 120
      %v6564 = vpop.permute.xlu0 %6563
      %6565 = vrot.lane.b32.xlu0 %v6499, 120
      %v6566 = vpop.permute.xlu0 %6565
      %6567 = vrot.lane.b32.xlu0 %v6502, 120
      %v6568 = vpop.permute.xlu0 %6567
      %6569 = vrot.lane.b32.xlu0 %v6504, 120
      %v6570 = vpop.permute.xlu0 %6569
      %6571 = vrot.lane.b32.xlu0 %v6507, 120
      %v6572 = vpop.permute.xlu0 %6571
      %6573 = vrot.lane.b32.xlu0 %v6509, 120
      %v6574 = vpop.permute.xlu0 %6573
      %6575 = vrot.lane.b32.xlu0 %v6512, 120
      %v6576 = vpop.permute.xlu0 %6575
      %6577 = vrot.lane.b32.xlu0 %v6514, 120
      %v6578 = vpop.permute.xlu0 %6577
      %v6611 = vadd.f32 %v6387, %v6516
      %v6612 = vadd.f32 %v6388, %v6518
      %v6613 = vadd.f32 %v6389, %v6520
      %v6614 = vadd.f32 %v6390, %v6522
      %v6615 = vadd.f32 %v6391, %v6524
      %v6616 = vadd.f32 %v6392, %v6526
      %v6617 = vadd.f32 %v6393, %v6528
      %v6618 = vadd.f32 %v6394, %v6530
      %v6619 = vadd.f32 %v6395, %v6532
      %v6620 = vadd.f32 %v6396, %v6534
      %v6621 = vadd.f32 %v6397, %v6536
      %v6622 = vadd.f32 %v6398, %v6538
      %v6623 = vadd.f32 %v6399, %v6540
      %v6624 = vadd.f32 %v6400, %v6542
      %v6625 = vadd.f32 %v6401, %v6544
      %v6626 = vadd.f32 %v6402, %v6546
      %v6627 = vadd.f32 %v6403, %v6548
      %v6628 = vadd.f32 %v6404, %v6550
      %v6629 = vadd.f32 %v6405, %v6552
      %v6630 = vadd.f32 %v6406, %v6554
      %v6631 = vadd.f32 %v6407, %v6556
      %v6632 = vadd.f32 %v6408, %v6558
      %v6633 = vadd.f32 %v6409, %v6560
      %v6634 = vadd.f32 %v6410, %v6562
      %v6635 = vadd.f32 %v6411, %v6564
      %v6636 = vadd.f32 %v6412, %v6566
      %v6637 = vadd.f32 %v6413, %v6568
      %v6638 = vadd.f32 %v6414, %v6570
      %v6639 = vadd.f32 %v6415, %v6572
      %v6640 = vadd.f32 %v6416, %v6574
      %v6641 = vadd.f32 %v6417, %v6576
      %v6642 = vadd.f32 %v6418, %v6578
      %v6643 = vadd.f32 %v5629, %v6611
      %v6644 = vadd.f32 %v5630, %v6612
      %v6645 = vadd.f32 %v5631, %v6613
      %v6646 = vadd.f32 %v5632, %v6614
      %v6647 = vadd.f32 %v5633, %v6615
      %v6648 = vadd.f32 %v5634, %v6616
      %v6649 = vadd.f32 %v5635, %v6617
      %v6650 = vadd.f32 %v5636, %v6618
      %v6651 = vadd.f32 %v5637, %v6619
      %v6652 = vadd.f32 %v5638, %v6620
      %v6653 = vadd.f32 %v5639, %v6621
      %v6654 = vadd.f32 %v5640, %v6622
      %v6655 = vadd.f32 %v5641, %v6623
      %v6656 = vadd.f32 %v5642, %v6624
      %v6657 = vadd.f32 %v5643, %v6625
      %v6658 = vadd.f32 %v5644, %v6626
      %v6659 = vadd.f32 %v5645, %v6627
      %v6660 = vadd.f32 %v5646, %v6628
      %v6661 = vadd.f32 %v5647, %v6629
      %v6662 = vadd.f32 %v5648, %v6630
      %v6663 = vadd.f32 %v5649, %v6631
      %v6664 = vadd.f32 %v5650, %v6632
      %v6665 = vadd.f32 %v5651, %v6633
      %v6666 = vadd.f32 %v5652, %v6634
      %v6667 = vadd.f32 %v5653, %v6635
      %v6668 = vadd.f32 %v5654, %v6636
      %v6669 = vadd.f32 %v5655, %v6637
      %v6670 = vadd.f32 %v5656, %v6638
      %v6671 = vadd.f32 %v5657, %v6639
      %v6672 = vadd.f32 %v5658, %v6640
      %v6673 = vadd.f32 %v5659, %v6641
      %v6674 = vadd.f32 %v5660, %v6642
      %v6675 = vsel %vm309, %v6643, 0.0
      %v6676 = vsel %vm309, %v6644, 0.0
      %v6677 = vadd.f32 %v6675, %v6676
      %v6678 = vsel %vm309, %v6645, 0.0
      %v6679 = vadd.f32 %v6677, %v6678
      %v6680 = vsel %vm309, %v6646, 0.0
      %v6681 = vadd.f32 %v6679, %v6680
      %v6682 = vsel %vm309, %v6647, 0.0
      %v6683 = vadd.f32 %v6681, %v6682
      %v6684 = vsel %vm309, %v6648, 0.0
      %v6685 = vadd.f32 %v6683, %v6684
      %v6686 = vsel %vm309, %v6649, 0.0
      %v6687 = vadd.f32 %v6685, %v6686
      %v6688 = vsel %vm309, %v6650, 0.0
      %v6689 = vadd.f32 %v6687, %v6688
      %v6690 = vsel %vm309, %v6651, 0.0
      %v6691 = vadd.f32 %v6689, %v6690
      %v6692 = vsel %vm309, %v6652, 0.0
      %v6693 = vadd.f32 %v6691, %v6692
      %v6694 = vsel %vm309, %v6653, 0.0
      %v6695 = vadd.f32 %v6693, %v6694
      %v6696 = vsel %vm309, %v6654, 0.0
      %v6697 = vadd.f32 %v6695, %v6696
      %v6698 = vsel %vm309, %v6655, 0.0
      %v6699 = vadd.f32 %v6697, %v6698
      %v6700 = vsel %vm309, %v6656, 0.0
      %v6701 = vadd.f32 %v6699, %v6700
      %v6702 = vsel %vm309, %v6657, 0.0
      %v6703 = vadd.f32 %v6701, %v6702
      %v6704 = vsel %vm309, %v6658, 0.0
      %v6705 = vadd.f32 %v6703, %v6704
      %v6706 = vsel %vm309, %v6659, 0.0
      %v6707 = vadd.f32 %v6705, %v6706
      %v6708 = vsel %vm309, %v6660, 0.0
      %v6709 = vadd.f32 %v6707, %v6708
      %v6710 = vsel %vm309, %v6661, 0.0
      %v6711 = vadd.f32 %v6709, %v6710
      %v6712 = vsel %vm309, %v6662, 0.0
      %v6713 = vadd.f32 %v6711, %v6712
      %v6714 = vsel %vm309, %v6663, 0.0
      %v6715 = vadd.f32 %v6713, %v6714
      %v6716 = vsel %vm309, %v6664, 0.0
      %v6717 = vadd.f32 %v6715, %v6716
      %v6718 = vsel %vm309, %v6665, 0.0
      %v6719 = vadd.f32 %v6717, %v6718
      %v6720 = vsel %vm309, %v6666, 0.0
      %v6721 = vadd.f32 %v6719, %v6720
      %v6722 = vsel %vm309, %v6667, 0.0
      %v6723 = vadd.f32 %v6721, %v6722
      %v6724 = vsel %vm309, %v6668, 0.0
      %v6725 = vadd.f32 %v6723, %v6724
      %v6726 = vsel %vm309, %v6669, 0.0
      %v6727 = vadd.f32 %v6725, %v6726
      %v6728 = vsel %vm309, %v6670, 0.0
      %v6729 = vadd.f32 %v6727, %v6728
      %v6730 = vsel %vm309, %v6671, 0.0
      %v6731 = vadd.f32 %v6729, %v6730
      %v6732 = vsel %vm309, %v6672, 0.0
      %v6733 = vadd.f32 %v6731, %v6732
      %v6734 = vsel %vm309, %v6673, 0.0
      %v6735 = vadd.f32 %v6733, %v6734
      %v6736 = vsel %vm309, %v6674, 0.0
      %v6737 = vadd.f32 %v6735, %v6736
      %v6738 = vrot.slane %v6737, 4
      %v6739 = vadd.f32 %v6737, %v6738
      %v6740 = vrot.slane %v6739, 2
      %v6741 = vadd.f32 %v6739, %v6740
      %v6742 = vrot.slane %v6741, 1
      %v6743 = vadd.f32 %v6741, %v6742
      %v6744 = vmul.f32 %v6743, %v3431
      %v6745 = vsub.f32 %v6643, %v6744
      %v6746 = vsub.f32 %v6644, %v6744
      %v6747 = vsub.f32 %v6645, %v6744
      %v6748 = vsub.f32 %v6646, %v6744
      %v6749 = vsub.f32 %v6647, %v6744
      %v6750 = vsub.f32 %v6648, %v6744
      %v6751 = vsub.f32 %v6649, %v6744
      %v6752 = vsub.f32 %v6650, %v6744
      %v6753 = vsub.f32 %v6651, %v6744
      %v6754 = vsub.f32 %v6652, %v6744
      %v6755 = vsub.f32 %v6653, %v6744
      %v6756 = vsub.f32 %v6654, %v6744
      %v6757 = vsub.f32 %v6655, %v6744
      %v6758 = vsub.f32 %v6656, %v6744
      %v6759 = vsub.f32 %v6657, %v6744
      %v6760 = vsub.f32 %v6658, %v6744
      %v6761 = vsub.f32 %v6659, %v6744
      %v6762 = vsub.f32 %v6660, %v6744
      %v6763 = vsub.f32 %v6661, %v6744
      %v6764 = vsub.f32 %v6662, %v6744
      %v6765 = vsub.f32 %v6663, %v6744
      %v6766 = vsub.f32 %v6664, %v6744
      %v6767 = vsub.f32 %v6665, %v6744
      %v6768 = vsub.f32 %v6666, %v6744
      %v6769 = vsub.f32 %v6667, %v6744
      %v6770 = vsub.f32 %v6668, %v6744
      %v6771 = vsub.f32 %v6669, %v6744
      %v6772 = vsub.f32 %v6670, %v6744
      %v6773 = vsub.f32 %v6671, %v6744
      %v6774 = vsub.f32 %v6672, %v6744
      %v6775 = vsub.f32 %v6673, %v6744
      %v6776 = vsub.f32 %v6674, %v6744
      %v6777 = vmul.f32 %v6745, %v6745
      %v6778 = vmul.f32 %v6746, %v6746
      %v6779 = vmul.f32 %v6747, %v6747
      %v6780 = vmul.f32 %v6748, %v6748
      %v6781 = vmul.f32 %v6749, %v6749
      %v6782 = vmul.f32 %v6750, %v6750
      %v6783 = vmul.f32 %v6751, %v6751
      %v6784 = vmul.f32 %v6752, %v6752
      %v6785 = vmul.f32 %v6753, %v6753
      %v6786 = vmul.f32 %v6754, %v6754
      %v6787 = vmul.f32 %v6755, %v6755
      %v6788 = vmul.f32 %v6756, %v6756
      %v6789 = vmul.f32 %v6757, %v6757
      %v6790 = vmul.f32 %v6758, %v6758
      %v6791 = vmul.f32 %v6759, %v6759
      %v6792 = vmul.f32 %v6760, %v6760
      %v6793 = vmul.f32 %v6761, %v6761
      %v6794 = vmul.f32 %v6762, %v6762
      %v6795 = vmul.f32 %v6763, %v6763
      %v6796 = vmul.f32 %v6764, %v6764
      %v6797 = vmul.f32 %v6765, %v6765
      %v6798 = vmul.f32 %v6766, %v6766
      %v6799 = vmul.f32 %v6767, %v6767
      %v6800 = vmul.f32 %v6768, %v6768
      %v6801 = vmul.f32 %v6769, %v6769
      %v6802 = vmul.f32 %v6770, %v6770
      %v6803 = vmul.f32 %v6771, %v6771
      %v6804 = vmul.f32 %v6772, %v6772
      %v6805 = vmul.f32 %v6773, %v6773
      %v6806 = vmul.f32 %v6774, %v6774
      %v6807 = vmul.f32 %v6775, %v6775
      %v6808 = vmul.f32 %v6776, %v6776
      %v6809 = vsel %vm309, %v6777, 0.0
      %v6810 = vsel %vm309, %v6778, 0.0
      %v6811 = vadd.f32 %v6809, %v6810
      %v6812 = vsel %vm309, %v6779, 0.0
      %v6813 = vadd.f32 %v6811, %v6812
      %v6814 = vsel %vm309, %v6780, 0.0
      %v6815 = vadd.f32 %v6813, %v6814
      %v6816 = vsel %vm309, %v6781, 0.0
      %v6817 = vadd.f32 %v6815, %v6816
      %v6818 = vsel %vm309, %v6782, 0.0
      %v6819 = vadd.f32 %v6817, %v6818
      %v6820 = vsel %vm309, %v6783, 0.0
      %v6821 = vadd.f32 %v6819, %v6820
      %v6822 = vsel %vm309, %v6784, 0.0
      %v6823 = vadd.f32 %v6821, %v6822
      %v6824 = vsel %vm309, %v6785, 0.0
      %v6825 = vadd.f32 %v6823, %v6824
      %v6826 = vsel %vm309, %v6786, 0.0
      %v6827 = vadd.f32 %v6825, %v6826
      %v6828 = vsel %vm309, %v6787, 0.0
      %v6829 = vadd.f32 %v6827, %v6828
      %v6830 = vsel %vm309, %v6788, 0.0
      %v6831 = vadd.f32 %v6829, %v6830
      %v6832 = vsel %vm309, %v6789, 0.0
      %v6833 = vadd.f32 %v6831, %v6832
      %v6834 = vsel %vm309, %v6790, 0.0
      %v6835 = vadd.f32 %v6833, %v6834
      %v6836 = vsel %vm309, %v6791, 0.0
      %v6837 = vadd.f32 %v6835, %v6836
      %v6838 = vsel %vm309, %v6792, 0.0
      %v6839 = vadd.f32 %v6837, %v6838
      %v6840 = vsel %vm309, %v6793, 0.0
      %v6841 = vadd.f32 %v6839, %v6840
      %v6842 = vsel %vm309, %v6794, 0.0
      %v6843 = vadd.f32 %v6841, %v6842
      %v6844 = vsel %vm309, %v6795, 0.0
      %v6845 = vadd.f32 %v6843, %v6844
      %v6846 = vsel %vm309, %v6796, 0.0
      %v6847 = vadd.f32 %v6845, %v6846
      %v6848 = vsel %vm309, %v6797, 0.0
      %v6849 = vadd.f32 %v6847, %v6848
      %v6850 = vsel %vm309, %v6798, 0.0
      %v6851 = vadd.f32 %v6849, %v6850
      %v6852 = vsel %vm309, %v6799, 0.0
      %v6853 = vadd.f32 %v6851, %v6852
      %v6854 = vsel %vm309, %v6800, 0.0
      %v6855 = vadd.f32 %v6853, %v6854
      %v6856 = vsel %vm309, %v6801, 0.0
      %v6857 = vadd.f32 %v6855, %v6856
      %v6858 = vsel %vm309, %v6802, 0.0
      %v6859 = vadd.f32 %v6857, %v6858
      %v6860 = vsel %vm309, %v6803, 0.0
      %v6861 = vadd.f32 %v6859, %v6860
      %v6862 = vsel %vm309, %v6804, 0.0
      %v6863 = vadd.f32 %v6861, %v6862
      %v6864 = vsel %vm309, %v6805, 0.0
      %v6865 = vadd.f32 %v6863, %v6864
      %v6866 = vsel %vm309, %v6806, 0.0
      %v6867 = vadd.f32 %v6865, %v6866
      %v6868 = vsel %vm309, %v6807, 0.0
      %v6869 = vadd.f32 %v6867, %v6868
      %v6870 = vsel %vm309, %v6808, 0.0
      %v6871 = vadd.f32 %v6869, %v6870
      %v6872 = vrot.slane %v6871, 4
      %v6873 = vadd.f32 %v6871, %v6872
      %v6874 = vrot.slane %v6873, 2
      %v6875 = vadd.f32 %v6873, %v6874
      %v6876 = vrot.slane %v6875, 1
      %v6877 = vadd.f32 %v6875, %v6876
      %v6878 = vmul.f32 %v6877, %v3431
      %v6879 = vadd.f32 %v6878, 1e-05
      %v6880 = vrsqrt.pop %v6879
      %v6881 = vmul.f32 %v6745, %v6880
      %v6882 = vmul.f32 %v6746, %v6880
      %v6883 = vmul.f32 %v6747, %v6880
      %v6884 = vmul.f32 %v6748, %v6880
      %v6885 = vmul.f32 %v6749, %v6880
      %v6886 = vmul.f32 %v6750, %v6880
      %v6887 = vmul.f32 %v6751, %v6880
      %v6888 = vmul.f32 %v6752, %v6880
      %v6889 = vmul.f32 %v6753, %v6880
      %v6890 = vmul.f32 %v6754, %v6880
      %v6891 = vmul.f32 %v6755, %v6880
      %v6892 = vmul.f32 %v6756, %v6880
      %v6893 = vmul.f32 %v6757, %v6880
      %v6894 = vmul.f32 %v6758, %v6880
      %v6895 = vmul.f32 %v6759, %v6880
      %v6896 = vmul.f32 %v6760, %v6880
      %v6897 = vmul.f32 %v6761, %v6880
      %v6898 = vmul.f32 %v6762, %v6880
      %v6899 = vmul.f32 %v6763, %v6880
      %v6900 = vmul.f32 %v6764, %v6880
      %v6901 = vmul.f32 %v6765, %v6880
      %v6902 = vmul.f32 %v6766, %v6880
      %v6903 = vmul.f32 %v6767, %v6880
      %v6904 = vmul.f32 %v6768, %v6880
      %v6905 = vmul.f32 %v6769, %v6880
      %v6906 = vmul.f32 %v6770, %v6880
      %v6907 = vmul.f32 %v6771, %v6880
      %v6908 = vmul.f32 %v6772, %v6880
      %v6909 = vmul.f32 %v6773, %v6880
      %v6910 = vmul.f32 %v6774, %v6880
      %v6911 = vmul.f32 %v6775, %v6880
      %v6912 = vmul.f32 %v6776, %v6880
      %v6913 = vadd.f32 %v276, %v6881
      %v6914 = vadd.f32 %v277, %v6882
      %v6915 = vadd.f32 %v278, %v6883
      %v6916 = vadd.f32 %v279, %v6884
      %v6917 = vadd.f32 %v280, %v6885
      %v6918 = vadd.f32 %v281, %v6886
      %v6919 = vadd.f32 %v282, %v6887
      %v6920 = vadd.f32 %v283, %v6888
      %v6921 = vadd.f32 %v284, %v6889
      %v6922 = vadd.f32 %v285, %v6890
      %v6923 = vadd.f32 %v286, %v6891
      %v6924 = vadd.f32 %v287, %v6892
      %v6925 = vadd.f32 %v288, %v6893
      %v6926 = vadd.f32 %v289, %v6894
      %v6927 = vadd.f32 %v290, %v6895
      %v6928 = vadd.f32 %v291, %v6896
      %v6929 = vadd.f32 %v292, %v6897
      %v6930 = vadd.f32 %v293, %v6898
      %v6931 = vadd.f32 %v294, %v6899
      %v6932 = vadd.f32 %v295, %v6900
      %v6933 = vadd.f32 %v296, %v6901
      %v6934 = vadd.f32 %v297, %v6902
      %v6935 = vadd.f32 %v298, %v6903
      %v6936 = vadd.f32 %v299, %v6904
      %v6937 = vadd.f32 %v300, %v6905
      %v6938 = vadd.f32 %v301, %v6906
      %v6939 = vadd.f32 %v302, %v6907
      %v6940 = vadd.f32 %v303, %v6908
      %v6941 = vadd.f32 %v304, %v6909
      %v6942 = vadd.f32 %v305, %v6910
      %v6943 = vadd.f32 %v306, %v6911
      %v6944 = vadd.f32 %v307, %v6912
      %6945 = vst.msk [vmem:[%s182] sm:$0xff] %vm309, %v6913
      %6946 = vst.msk [vmem:[%s182 + $0x8] sm:$0xff] %vm309, %v6914
      %6947 = vst.msk [vmem:[%s182 + $0x10] sm:$0xff] %vm309, %v6915
      %6948 = vst.msk [vmem:[%s182 + $0x18] sm:$0xff] %vm309, %v6916
      %6949 = vst.msk [vmem:[%s182 + $0x20] sm:$0xff] %vm309, %v6917
      %6950 = vst.msk [vmem:[%s182 + $0x28] sm:$0xff] %vm309, %v6918
      %6951 = vst.msk [vmem:[%s182 + $0x30] sm:$0xff] %vm309, %v6919
      %6952 = vst.msk [vmem:[%s182 + $0x38] sm:$0xff] %vm309, %v6920
      %6953 = vst.msk [vmem:[%s182 + $0x40] sm:$0xff] %vm309, %v6921
      %6954 = vst.msk [vmem:[%s182 + $0x48] sm:$0xff] %vm309, %v6922
      %6955 = vst.msk [vmem:[%s182 + $0x50] sm:$0xff] %vm309, %v6923
      %6956 = vst.msk [vmem:[%s182 + $0x58] sm:$0xff] %vm309, %v6924
      %6957 = vst.msk [vmem:[%s182 + $0x60] sm:$0xff] %vm309, %v6925
      %6958 = vst.msk [vmem:[%s182 + $0x68] sm:$0xff] %vm309, %v6926
      %6959 = vst.msk [vmem:[%s182 + $0x70] sm:$0xff] %vm309, %v6927
      %6960 = vst.msk [vmem:[%s182 + $0x78] sm:$0xff] %vm309, %v6928
      %6961 = vst.msk [vmem:[%s182 + $0x80] sm:$0xff] %vm309, %v6929
      %6962 = vst.msk [vmem:[%s182 + $0x88] sm:$0xff] %vm309, %v6930
      %6963 = vst.msk [vmem:[%s182 + $0x90] sm:$0xff] %vm309, %v6931
      %6964 = vst.msk [vmem:[%s182 + $0x98] sm:$0xff] %vm309, %v6932
      %6965 = vst.msk [vmem:[%s182 + $0xa0] sm:$0xff] %vm309, %v6933
      %6966 = vst.msk [vmem:[%s182 + $0xa8] sm:$0xff] %vm309, %v6934
      %6967 = vst.msk [vmem:[%s182 + $0xb0] sm:$0xff] %vm309, %v6935
      %6968 = vst.msk [vmem:[%s182 + $0xb8] sm:$0xff] %vm309, %v6936
      %6969 = vst.msk [vmem:[%s182 + $0xc0] sm:$0xff] %vm309, %v6937
      %6970 = vst.msk [vmem:[%s182 + $0xc8] sm:$0xff] %vm309, %v6938
      %6971 = vst.msk [vmem:[%s182 + $0xd0] sm:$0xff] %vm309, %v6939
      %6972 = vst.msk [vmem:[%s182 + $0xd8] sm:$0xff] %vm309, %v6940
      %6973 = vst.msk [vmem:[%s182 + $0xe0] sm:$0xff] %vm309, %v6941
      %6974 = vst.msk [vmem:[%s182 + $0xe8] sm:$0xff] %vm309, %v6942
      %6975 = vst.msk [vmem:[%s182 + $0xf0] sm:$0xff] %vm309, %v6943
      %6976 = vst.msk [vmem:[%s182 + $0xf8] sm:$0xff] %vm309, %v6944
      %p6977 = scmp.lt.s32.totalorder %s18, 1
      %s6978 = scalar_select %p6977, %s18, 1
      %s6979 = smul.addr %s6978, 32
      %s6980 = smul.addr %s6979, 8
      %s6981 = scalar_lea.vmem %s3, %s6980
      // Predicated region
      $region37: #{tpu_custom_call.1} parent=31 // pred_check
        %p6982 = pneg %p112
      $region38: #{tpu_custom_call.1} parent=31 // pred_check_branch
        %6984 = sbr.rel (%p6982) target = $region40
      $region39: #{tpu_custom_call.1} parent=31 // pred_region
        _
      $region40: #{tpu_custom_call.1} parent=31 // pred_fallthru
        _
    $region32: #{tpu_custom_call.1} parent=5 // pred_fallthru
      _
    %p6985 = scmp.le.s32.totalorder 2, %s9
    // Predicated region
    $region41: #{tpu_custom_call.1} parent=5 // pred_check
      %p6986 = pneg %p6985
    $region42: #{tpu_custom_call.1} parent=5 // pred_check_branch
      %6988 = sbr.rel (%p6986) target = $region44
    $region43: #{tpu_custom_call.1} parent=5 // pred_region
      %s6989 = ssub.s32 %s9, 2
      // Predicated region
      $region45: #{tpu_custom_call.1} parent=43 // pred_check
        %p6990 = pneg %p118
      $region46: #{tpu_custom_call.1} parent=43 // pred_check_branch
        %6992 = sbr.rel (%p6990) target = $region48
      $region47: #{tpu_custom_call.1} parent=43 // pred_region
        %p6993 = scmp.lt.s32.totalorder %s20, 1
        %s6994 = scalar_select %p6993, %s20, 1
        %s6995 = smul.addr %s6994, 32
        %s6996 = smul.addr %s6995, 8
        %s6997 = scalar_lea.vmem %s3, %s6996
      $region48: #{tpu_custom_call.1} parent=43 // pred_fallthru
        _
    $region44: #{tpu_custom_call.1} parent=5 // pred_fallthru
      _
  $region6: #{tpu_custom_call.1} parent=0 // loop_footer
    %s13 = sadd.s32 1, %s9
  $region7: #{tpu_custom_call.1} parent=0 // loop_footer_branch
    %8 = sbr.rel target = $region3
  $region8: #{tpu_custom_call.1} parent=0 // loop_exit
    _

</llo_original>
